<compile_context>
chip_gen: v5e
topology: v5e:2x2
jax: 0.10.0
libtpu: 0.0.40
codegen_flags: <defaults>
</compile_context>

<pallas_src>
import jax
import jax.numpy as jnp
from jax import lax
from jax.experimental import pallas as pl
from jax.experimental.pallas import tpu as pltpu


def _rnn_classifier_kernel(x_ref, w_ih_ref, w_hh_ref, bias_ref, w_fc_ref,
                           b_fc_ref, out_ref, proj_ref):
    """One packed batch tile.

    x_ref    : (T, rows, p*I)  time-major, p samples packed along lanes
    w_ih_ref : (p*I, p*H)      kron(eye(p), W_ih^T)   (block-diagonal)
    w_hh_ref : (p*H, p*H)      kron(eye(p), W_hh^T)
    bias_ref : (1, p*H)        tile(b_ih + b_hh, p)
    w_fc_ref : (p*H, p)        kron(eye(p), W_fc^T)
    b_fc_ref : (1, 1)
    out_ref  : (rows, p)       one fc output per packed sample slot
    proj_ref : (T, rows, p*H)  VMEM scratch for the hoisted input projection
    """
    seq_len = x_ref.shape[0]

    w_ih = w_ih_ref[...]
    bias = bias_ref[...]

    # ---- phase 1 (off the serial chain): per-step input projection ----------
    # Materialized into VMEM scratch; only one (rows, p*H) slab is ever live in
    # vregs at a time during the recurrence below.
    def project(t, carry):
        proj_ref[t] = (jnp.dot(x_ref[t], w_ih,
                               preferred_element_type=jnp.float32) + bias)
        return carry

    if seq_len <= 16:
        for t in range(seq_len):          # fully unrolled for short T
            project(t, 0)
    else:
        lax.fori_loop(0, seq_len, project, 0, unroll=4)

    # ---- phase 2: serial recurrence  h_t = tanh(proj[t] + h_{t-1} @ W_hh) ---
    w_hh = w_hh_ref[...]                  # resident across the loop

    def step(t, h):
        # Time-major scratch: proj_ref[t] is a contiguous (rows, p*H) slab.
        return jnp.tanh(proj_ref[t] +
                        jnp.dot(h, w_hh, preferred_element_type=jnp.float32))

    h = jnp.zeros((x_ref.shape[1], w_hh_ref.shape[0]), jnp.float32)  # torch h0=0
    if seq_len <= 16:
        for t in range(seq_len):
            h = step(t, h)
    else:
        h = lax.fori_loop(0, seq_len, step, h, unroll=4)

    # ---- fc epilogue: block-diagonal (p*H, p) matmul folds each sample's H
    # lanes into its own output column (one tiny pass per tile).
    out_ref[...] = (jnp.dot(h, w_fc_ref[...],
                            preferred_element_type=jnp.float32)
                    + b_fc_ref[...])


def rnn_classifier_forward(x, w_ih, w_hh, b_ih, b_hh, w_fc, b_fc):
    """Forward pass of RNNClassifier.  x: (B, T, I) float32, batch_first."""
    B, T, I = x.shape
    H = w_hh.shape[0]

    # Lane-packing factor: p samples share one 128-lane vreg row when H | 128.
    p = 128 // H if (H <= 128 and 128 % H == 0) else 1
    Ip, Hp = p * I, p * H

    # ---- weights: right-multiply layout, block-diagonal for lane packing ----
    eye_p = jnp.eye(p, dtype=jnp.float32)
    w_ih_k = jnp.kron(eye_p, jnp.transpose(w_ih))          # (Ip, Hp)
    w_hh_k = jnp.kron(eye_p, jnp.transpose(w_hh))          # (Hp, Hp)
    bias = jnp.tile(b_ih + b_hh, (p,)).reshape(1, Hp)      # (1, Hp) pre-summed
    w_fc_k = jnp.kron(eye_p, jnp.transpose(w_fc))          # (Hp, p)
    b_fc_2d = b_fc.reshape(1, 1)

    # ---- batch tiling (packed rows of p samples each) ------------------------
    total_rows = pl.cdiv(B, p)
    if total_rows <= 8:
        block_rows = total_rows                            # single tile == full dim
    else:
        # ~256 samples per grid step, sublane-aligned, >=2 tiles when possible
        # (v7x megacore), capped so x + projection scratch fit the VMEM budget.
        budget_rows = max(8, (24 * 1024 * 1024) // (4 * T * (2 * Ip + Hp)))
        block_rows = min(max(256 // p, 8), pl.cdiv(total_rows, 2), budget_rows)
        block_rows = max(8, (block_rows // 8) * 8)
    grid_b = pl.cdiv(total_rows, block_rows)
    padded_rows = grid_b * block_rows
    b_pad = padded_rows * p

    # ---- time-major packed input: (B, T, I) -> (T, padded_rows, p*I) ---------
    x_t = jnp.transpose(x, (1, 0, 2))                      # (T, B, I)
    x_t = jnp.pad(x_t, ((0, 0), (0, b_pad - B), (0, 0)))   # zero-pad batch
    x_packed = x_t.reshape(T, padded_rows, Ip)

    # Explicit VMEM limit (v5e scoped default 16 MiB; v7x physical 64 MiB).
    tile_bytes = 4 * (2 * T * block_rows * Ip              # double-buffered x
                      + T * block_rows * Hp                # projection scratch
                      + Ip * Hp + Hp * Hp + Hp + Hp * p + 1
                      + 2 * block_rows * p)                # double-buffered out
    vmem_limit = int(min(48 * 1024 * 1024,
                         max(32 * 1024 * 1024, tile_bytes + 8 * 1024 * 1024)))

    out_packed = pl.pallas_call(
        _rnn_classifier_kernel,
        out_shape=jax.ShapeDtypeStruct((padded_rows, p), jnp.float32),
        grid=(grid_b,),
        in_specs=[
            pl.BlockSpec((T, block_rows, Ip), lambda b: (0, b, 0)),  # x tile
            pl.BlockSpec((Ip, Hp), lambda b: (0, 0)),                # W_ih^T (kron)
            pl.BlockSpec((Hp, Hp), lambda b: (0, 0)),                # W_hh^T (kron)
            pl.BlockSpec((1, Hp), lambda b: (0, 0)),                 # b_ih + b_hh
            pl.BlockSpec((Hp, p), lambda b: (0, 0)),                 # W_fc^T (kron)
            pl.BlockSpec((1, 1), lambda b: (0, 0)),                  # b_fc
        ],
        out_specs=pl.BlockSpec((block_rows, p), lambda b: (b, 0)),
        scratch_shapes=[pltpu.VMEM((T, block_rows, Hp), jnp.float32)],
        compiler_params=pltpu.CompilerParams(
            dimension_semantics=("parallel",),
            vmem_limit_bytes=vmem_limit),
    )(x_packed, w_ih_k, w_hh_k, bias, w_fc_k, b_fc_2d)

    # Unpack: packed row r, slot k  ->  sample r*p + k; drop batch padding.
    return out_packed.reshape(b_pad, 1)[:B]


def rnn_classifier_reference(x, w_ih, w_hh, b_ih, b_hh, w_fc, b_fc):
    """Plain-JAX reference matching torch semantics, for validation."""
    B, T, I = x.shape
    H = w_hh.shape[0]
    h = jnp.zeros((B, H), jnp.float32)
    for t in range(T):
        h = jnp.tanh(x[:, t, :] @ w_ih.T + b_ih + h @ w_hh.T + b_hh)
    return h @ w_fc.T + b_fc


if __name__ == "__main__":
    # Accurate f32 matmuls on the MXU for both the kernel and the reference.
    jax.config.update("jax_default_matmul_precision", "highest")

    # Small shapes consistent with the module's forward: x is (batch, seq, input)
    B, T, INPUT_SIZE, HIDDEN_SIZE = 2, 8, 4, 32

    key = jax.random.PRNGKey(0)
    k_x, k1, k2, k3, k4, k5, k6 = jax.random.split(key, 7)

    x = jax.random.normal(k_x, (B, T, INPUT_SIZE), dtype=jnp.float32)

    # Deterministic PyTorch-style uniform(-1/sqrt(H), 1/sqrt(H)) init.
    bound = 1.0 / jnp.sqrt(jnp.float32(HIDDEN_SIZE))
    w_ih = jax.random.uniform(k1, (HIDDEN_SIZE, INPUT_SIZE), jnp.float32, -bound, bound)
    w_hh = jax.random.uniform(k2, (HIDDEN_SIZE, HIDDEN_SIZE), jnp.float32, -bound, bound)
    b_ih = jax.random.uniform(k3, (HIDDEN_SIZE,), jnp.float32, -bound, bound)
    b_hh = jax.random.uniform(k4, (HIDDEN_SIZE,), jnp.float32, -bound, bound)
    w_fc = jax.random.uniform(k5, (1, HIDDEN_SIZE), jnp.float32, -bound, bound)
    b_fc = jax.random.uniform(k6, (1,), jnp.float32, -bound, bound)

    out = rnn_classifier_forward(x, w_ih, w_hh, b_ih, b_hh, w_fc, b_fc)
    out = jax.block_until_ready(out)

    ref = rnn_classifier_reference(x, w_ih, w_hh, b_ih, b_hh, w_fc, b_fc)
    assert out.shape == (B, 1), out.shape
    assert jnp.allclose(out, ref, atol=1e-4, rtol=1e-4), (out, ref)

    print("KERNEL_OK")
</pallas_src>

<mosaic_0001>
module attributes {stable_mosaic.version = 11 : i64} {
  func.func @_rnn_classifier_kernel(%arg0: i32, %arg1: memref<8x1x16xf32, #tpu.memory_space<vmem>>, %arg2: memref<16x128xf32, #tpu.memory_space<vmem>>, %arg3: memref<128x128xf32, #tpu.memory_space<vmem>>, %arg4: memref<1x128xf32, #tpu.memory_space<vmem>>, %arg5: memref<128x4xf32, #tpu.memory_space<vmem>>, %arg6: memref<1x1xf32, #tpu.memory_space<vmem>>, %arg7: memref<1x4xf32, #tpu.memory_space<vmem>>, %arg8: memref<8x1x128xf32, #tpu.memory_space<vmem>>) attributes {dimension_semantics = [#tpu.dimension_semantics<parallel>], iteration_bounds = array<i64: 1>, scalar_prefetch = 0 : i64, scratch_operands = 1 : i64, tpu.core_type = #tpu.core_type<tc>, window_params = [{transform_indices = @transform_0, window_bounds = array<i64: 8, 1, 16>}, {pipeline_mode = #tpu.pipeline_mode<synchronous>, transform_indices = @transform_1, window_bounds = array<i64: 16, 128>}, {pipeline_mode = #tpu.pipeline_mode<synchronous>, transform_indices = @transform_2, window_bounds = array<i64: 128, 128>}, {pipeline_mode = #tpu.pipeline_mode<synchronous>, transform_indices = @transform_3, window_bounds = array<i64: 1, 128>}, {pipeline_mode = #tpu.pipeline_mode<synchronous>, transform_indices = @transform_4, window_bounds = array<i64: 128, 4>}, {pipeline_mode = #tpu.pipeline_mode<synchronous>, transform_indices = @transform_5, window_bounds = array<i64: 1, 1>}, {transform_indices = @transform_6, window_bounds = array<i64: 1, 4>}]} {
    %c0 = arith.constant 0 : index
    %c0_0 = arith.constant 0 : index
    %0 = vector.load %arg2[%c0, %c0_0] : memref<16x128xf32, #tpu.memory_space<vmem>>, vector<16x128xf32>
    %c0_1 = arith.constant 0 : index
    %c0_2 = arith.constant 0 : index
    %1 = vector.load %arg4[%c0_1, %c0_2] : memref<1x128xf32, #tpu.memory_space<vmem>>, vector<1x128xf32>
    %c0_3 = arith.constant 0 : index
    %c0_4 = arith.constant 0 : index
    %c0_5 = arith.constant 0 : index
    %2 = vector.load %arg1[%c0_3, %c0_4, %c0_5] : memref<8x1x16xf32, #tpu.memory_space<vmem>>, vector<1x1x16xf32>
    %3 = vector.shape_cast %2 : vector<1x1x16xf32> to vector<1x16xf32>
    %cst = arith.constant dense<0.000000e+00> : vector<1x128xf32>
    %4 = tpu.matmul %3, %0, %cst {dimension_numbers = #tpu.dot_dimension_numbers<[1], [0], [0], [1], [0, 0, 1, 1], [], []>, precision = #tpu.contract_precision<fp32>} : vector<1x16xf32>, vector<16x128xf32>, vector<1x128xf32> -> vector<1x128xf32>
    %5 = arith.addf %4, %1 : vector<1x128xf32>
    %c0_6 = arith.constant 0 : index
    %c0_7 = arith.constant 0 : index
    %c0_8 = arith.constant 0 : index
    %6 = vector.load %arg8[%c0_6, %c0_7, %c0_8] : memref<8x1x128xf32, #tpu.memory_space<vmem>>, vector<1x1x128xf32>
    %7 = vector.shape_cast %6 : vector<1x1x128xf32> to vector<1x128xf32>
    %8 = vector.shape_cast %5 : vector<1x128xf32> to vector<1x1x128xf32>
    tpu.vector_store %arg8[%c0_6, %c0_7, %c0_8], %8 {strides = array<i32>} : memref<8x1x128xf32, #tpu.memory_space<vmem>>, vector<1x1x128xf32>,
    %c1 = arith.constant 1 : index
    %c0_9 = arith.constant 0 : index
    %c0_10 = arith.constant 0 : index
    %9 = vector.load %arg1[%c1, %c0_9, %c0_10] : memref<8x1x16xf32, #tpu.memory_space<vmem>>, vector<1x1x16xf32>
    %10 = vector.shape_cast %9 : vector<1x1x16xf32> to vector<1x16xf32>
    %cst_11 = arith.constant dense<0.000000e+00> : vector<1x128xf32>
    %11 = tpu.matmul %10, %0, %cst_11 {dimension_numbers = #tpu.dot_dimension_numbers<[1], [0], [0], [1], [0, 0, 1, 1], [], []>, precision = #tpu.contract_precision<fp32>} : vector<1x16xf32>, vector<16x128xf32>, vector<1x128xf32> -> vector<1x128xf32>
    %12 = arith.addf %11, %1 : vector<1x128xf32>
    %c1_12 = arith.constant 1 : index
    %c0_13 = arith.constant 0 : index
    %c0_14 = arith.constant 0 : index
    %13 = vector.load %arg8[%c1_12, %c0_13, %c0_14] : memref<8x1x128xf32, #tpu.memory_space<vmem>>, vector<1x1x128xf32>
    %14 = vector.shape_cast %13 : vector<1x1x128xf32> to vector<1x128xf32>
    %15 = vector.shape_cast %12 : vector<1x128xf32> to vector<1x1x128xf32>
    tpu.vector_store %arg8[%c1_12, %c0_13, %c0_14], %15 {strides = array<i32>} : memref<8x1x128xf32, #tpu.memory_space<vmem>>, vector<1x1x128xf32>,
    %c2 = arith.constant 2 : index
    %c0_15 = arith.constant 0 : index
    %c0_16 = arith.constant 0 : index
    %16 = vector.load %arg1[%c2, %c0_15, %c0_16] : memref<8x1x16xf32, #tpu.memory_space<vmem>>, vector<1x1x16xf32>
    %17 = vector.shape_cast %16 : vector<1x1x16xf32> to vector<1x16xf32>
    %cst_17 = arith.constant dense<0.000000e+00> : vector<1x128xf32>
    %18 = tpu.matmul %17, %0, %cst_17 {dimension_numbers = #tpu.dot_dimension_numbers<[1], [0], [0], [1], [0, 0, 1, 1], [], []>, precision = #tpu.contract_precision<fp32>} : vector<1x16xf32>, vector<16x128xf32>, vector<1x128xf32> -> vector<1x128xf32>
    %19 = arith.addf %18, %1 : vector<1x128xf32>
    %c2_18 = arith.constant 2 : index
    %c0_19 = arith.constant 0 : index
    %c0_20 = arith.constant 0 : index
    %20 = vector.load %arg8[%c2_18, %c0_19, %c0_20] : memref<8x1x128xf32, #tpu.memory_space<vmem>>, vector<1x1x128xf32>
    %21 = vector.shape_cast %20 : vector<1x1x128xf32> to vector<1x128xf32>
    %22 = vector.shape_cast %19 : vector<1x128xf32> to vector<1x1x128xf32>
    tpu.vector_store %arg8[%c2_18, %c0_19, %c0_20], %22 {strides = array<i32>} : memref<8x1x128xf32, #tpu.memory_space<vmem>>, vector<1x1x128xf32>,
    %c3 = arith.constant 3 : index
    %c0_21 = arith.constant 0 : index
    %c0_22 = arith.constant 0 : index
    %23 = vector.load %arg1[%c3, %c0_21, %c0_22] : memref<8x1x16xf32, #tpu.memory_space<vmem>>, vector<1x1x16xf32>
    %24 = vector.shape_cast %23 : vector<1x1x16xf32> to vector<1x16xf32>
    %cst_23 = arith.constant dense<0.000000e+00> : vector<1x128xf32>
    %25 = tpu.matmul %24, %0, %cst_23 {dimension_numbers = #tpu.dot_dimension_numbers<[1], [0], [0], [1], [0, 0, 1, 1], [], []>, precision = #tpu.contract_precision<fp32>} : vector<1x16xf32>, vector<16x128xf32>, vector<1x128xf32> -> vector<1x128xf32>
    %26 = arith.addf %25, %1 : vector<1x128xf32>
    %c3_24 = arith.constant 3 : index
    %c0_25 = arith.constant 0 : index
    %c0_26 = arith.constant 0 : index
    %27 = vector.load %arg8[%c3_24, %c0_25, %c0_26] : memref<8x1x128xf32, #tpu.memory_space<vmem>>, vector<1x1x128xf32>
    %28 = vector.shape_cast %27 : vector<1x1x128xf32> to vector<1x128xf32>
    %29 = vector.shape_cast %26 : vector<1x128xf32> to vector<1x1x128xf32>
    tpu.vector_store %arg8[%c3_24, %c0_25, %c0_26], %29 {strides = array<i32>} : memref<8x1x128xf32, #tpu.memory_space<vmem>>, vector<1x1x128xf32>,
    %c4 = arith.constant 4 : index
    %c0_27 = arith.constant 0 : index
    %c0_28 = arith.constant 0 : index
    %30 = vector.load %arg1[%c4, %c0_27, %c0_28] : memref<8x1x16xf32, #tpu.memory_space<vmem>>, vector<1x1x16xf32>
    %31 = vector.shape_cast %30 : vector<1x1x16xf32> to vector<1x16xf32>
    %cst_29 = arith.constant dense<0.000000e+00> : vector<1x128xf32>
    %32 = tpu.matmul %31, %0, %cst_29 {dimension_numbers = #tpu.dot_dimension_numbers<[1], [0], [0], [1], [0, 0, 1, 1], [], []>, precision = #tpu.contract_precision<fp32>} : vector<1x16xf32>, vector<16x128xf32>, vector<1x128xf32> -> vector<1x128xf32>
    %33 = arith.addf %32, %1 : vector<1x128xf32>
    %c4_30 = arith.constant 4 : index
    %c0_31 = arith.constant 0 : index
    %c0_32 = arith.constant 0 : index
    %34 = vector.load %arg8[%c4_30, %c0_31, %c0_32] : memref<8x1x128xf32, #tpu.memory_space<vmem>>, vector<1x1x128xf32>
    %35 = vector.shape_cast %34 : vector<1x1x128xf32> to vector<1x128xf32>
    %36 = vector.shape_cast %33 : vector<1x128xf32> to vector<1x1x128xf32>
    tpu.vector_store %arg8[%c4_30, %c0_31, %c0_32], %36 {strides = array<i32>} : memref<8x1x128xf32, #tpu.memory_space<vmem>>, vector<1x1x128xf32>,
    %c5 = arith.constant 5 : index
    %c0_33 = arith.constant 0 : index
    %c0_34 = arith.constant 0 : index
    %37 = vector.load %arg1[%c5, %c0_33, %c0_34] : memref<8x1x16xf32, #tpu.memory_space<vmem>>, vector<1x1x16xf32>
    %38 = vector.shape_cast %37 : vector<1x1x16xf32> to vector<1x16xf32>
    %cst_35 = arith.constant dense<0.000000e+00> : vector<1x128xf32>
    %39 = tpu.matmul %38, %0, %cst_35 {dimension_numbers = #tpu.dot_dimension_numbers<[1], [0], [0], [1], [0, 0, 1, 1], [], []>, precision = #tpu.contract_precision<fp32>} : vector<1x16xf32>, vector<16x128xf32>, vector<1x128xf32> -> vector<1x128xf32>
    %40 = arith.addf %39, %1 : vector<1x128xf32>
    %c5_36 = arith.constant 5 : index
    %c0_37 = arith.constant 0 : index
    %c0_38 = arith.constant 0 : index
    %41 = vector.load %arg8[%c5_36, %c0_37, %c0_38] : memref<8x1x128xf32, #tpu.memory_space<vmem>>, vector<1x1x128xf32>
    %42 = vector.shape_cast %41 : vector<1x1x128xf32> to vector<1x128xf32>
    %43 = vector.shape_cast %40 : vector<1x128xf32> to vector<1x1x128xf32>
    tpu.vector_store %arg8[%c5_36, %c0_37, %c0_38], %43 {strides = array<i32>} : memref<8x1x128xf32, #tpu.memory_space<vmem>>, vector<1x1x128xf32>,
    %c6 = arith.constant 6 : index
    %c0_39 = arith.constant 0 : index
    %c0_40 = arith.constant 0 : index
    %44 = vector.load %arg1[%c6, %c0_39, %c0_40] : memref<8x1x16xf32, #tpu.memory_space<vmem>>, vector<1x1x16xf32>
    %45 = vector.shape_cast %44 : vector<1x1x16xf32> to vector<1x16xf32>
    %cst_41 = arith.constant dense<0.000000e+00> : vector<1x128xf32>
    %46 = tpu.matmul %45, %0, %cst_41 {dimension_numbers = #tpu.dot_dimension_numbers<[1], [0], [0], [1], [0, 0, 1, 1], [], []>, precision = #tpu.contract_precision<fp32>} : vector<1x16xf32>, vector<16x128xf32>, vector<1x128xf32> -> vector<1x128xf32>
    %47 = arith.addf %46, %1 : vector<1x128xf32>
    %c6_42 = arith.constant 6 : index
    %c0_43 = arith.constant 0 : index
    %c0_44 = arith.constant 0 : index
    %48 = vector.load %arg8[%c6_42, %c0_43, %c0_44] : memref<8x1x128xf32, #tpu.memory_space<vmem>>, vector<1x1x128xf32>
    %49 = vector.shape_cast %48 : vector<1x1x128xf32> to vector<1x128xf32>
    %50 = vector.shape_cast %47 : vector<1x128xf32> to vector<1x1x128xf32>
    tpu.vector_store %arg8[%c6_42, %c0_43, %c0_44], %50 {strides = array<i32>} : memref<8x1x128xf32, #tpu.memory_space<vmem>>, vector<1x1x128xf32>,
    %c7 = arith.constant 7 : index
    %c0_45 = arith.constant 0 : index
    %c0_46 = arith.constant 0 : index
    %51 = vector.load %arg1[%c7, %c0_45, %c0_46] : memref<8x1x16xf32, #tpu.memory_space<vmem>>, vector<1x1x16xf32>
    %52 = vector.shape_cast %51 : vector<1x1x16xf32> to vector<1x16xf32>
    %cst_47 = arith.constant dense<0.000000e+00> : vector<1x128xf32>
    %53 = tpu.matmul %52, %0, %cst_47 {dimension_numbers = #tpu.dot_dimension_numbers<[1], [0], [0], [1], [0, 0, 1, 1], [], []>, precision = #tpu.contract_precision<fp32>} : vector<1x16xf32>, vector<16x128xf32>, vector<1x128xf32> -> vector<1x128xf32>
    %54 = arith.addf %53, %1 : vector<1x128xf32>
    %c7_48 = arith.constant 7 : index
    %c0_49 = arith.constant 0 : index
    %c0_50 = arith.constant 0 : index
    %55 = vector.load %arg8[%c7_48, %c0_49, %c0_50] : memref<8x1x128xf32, #tpu.memory_space<vmem>>, vector<1x1x128xf32>
    %56 = vector.shape_cast %55 : vector<1x1x128xf32> to vector<1x128xf32>
    %57 = vector.shape_cast %54 : vector<1x128xf32> to vector<1x1x128xf32>
    tpu.vector_store %arg8[%c7_48, %c0_49, %c0_50], %57 {strides = array<i32>} : memref<8x1x128xf32, #tpu.memory_space<vmem>>, vector<1x1x128xf32>,
    %c0_51 = arith.constant 0 : index
    %c0_52 = arith.constant 0 : index
    %58 = vector.load %arg3[%c0_51, %c0_52] : memref<128x128xf32, #tpu.memory_space<vmem>>, vector<128x128xf32>
    %cst_53 = arith.constant 0.000000e+00 : f32
    %59 = vector.broadcast %cst_53 : f32 to vector<1x128xf32>
    %c0_54 = arith.constant 0 : index
    %c0_55 = arith.constant 0 : index
    %c0_56 = arith.constant 0 : index
    %60 = vector.load %arg8[%c0_54, %c0_55, %c0_56] : memref<8x1x128xf32, #tpu.memory_space<vmem>>, vector<1x1x128xf32>
    %61 = vector.shape_cast %60 : vector<1x1x128xf32> to vector<1x128xf32>
    %cst_57 = arith.constant dense<0.000000e+00> : vector<1x128xf32>
    %62 = tpu.matmul %59, %58, %cst_57 {dimension_numbers = #tpu.dot_dimension_numbers<[1], [0], [0], [1], [0, 0, 1, 1], [], []>, precision = #tpu.contract_precision<fp32>} : vector<1x128xf32>, vector<128x128xf32>, vector<1x128xf32> -> vector<1x128xf32>
    %63 = arith.addf %61, %62 : vector<1x128xf32>
    %64 = math.tanh %63 : vector<1x128xf32>
    %c1_58 = arith.constant 1 : index
    %c0_59 = arith.constant 0 : index
    %c0_60 = arith.constant 0 : index
    %65 = vector.load %arg8[%c1_58, %c0_59, %c0_60] : memref<8x1x128xf32, #tpu.memory_space<vmem>>, vector<1x1x128xf32>
    %66 = vector.shape_cast %65 : vector<1x1x128xf32> to vector<1x128xf32>
    %cst_61 = arith.constant dense<0.000000e+00> : vector<1x128xf32>
    %67 = tpu.matmul %64, %58, %cst_61 {dimension_numbers = #tpu.dot_dimension_numbers<[1], [0], [0], [1], [0, 0, 1, 1], [], []>, precision = #tpu.contract_precision<fp32>} : vector<1x128xf32>, vector<128x128xf32>, vector<1x128xf32> -> vector<1x128xf32>
    %68 = arith.addf %66, %67 : vector<1x128xf32>
    %69 = math.tanh %68 : vector<1x128xf32>
    %c2_62 = arith.constant 2 : index
    %c0_63 = arith.constant 0 : index
    %c0_64 = arith.constant 0 : index
    %70 = vector.load %arg8[%c2_62, %c0_63, %c0_64] : memref<8x1x128xf32, #tpu.memory_space<vmem>>, vector<1x1x128xf32>
    %71 = vector.shape_cast %70 : vector<1x1x128xf32> to vector<1x128xf32>
    %cst_65 = arith.constant dense<0.000000e+00> : vector<1x128xf32>
    %72 = tpu.matmul %69, %58, %cst_65 {dimension_numbers = #tpu.dot_dimension_numbers<[1], [0], [0], [1], [0, 0, 1, 1], [], []>, precision = #tpu.contract_precision<fp32>} : vector<1x128xf32>, vector<128x128xf32>, vector<1x128xf32> -> vector<1x128xf32>
    %73 = arith.addf %71, %72 : vector<1x128xf32>
    %74 = math.tanh %73 : vector<1x128xf32>
    %c3_66 = arith.constant 3 : index
    %c0_67 = arith.constant 0 : index
    %c0_68 = arith.constant 0 : index
    %75 = vector.load %arg8[%c3_66, %c0_67, %c0_68] : memref<8x1x128xf32, #tpu.memory_space<vmem>>, vector<1x1x128xf32>
    %76 = vector.shape_cast %75 : vector<1x1x128xf32> to vector<1x128xf32>
    %cst_69 = arith.constant dense<0.000000e+00> : vector<1x128xf32>
    %77 = tpu.matmul %74, %58, %cst_69 {dimension_numbers = #tpu.dot_dimension_numbers<[1], [0], [0], [1], [0, 0, 1, 1], [], []>, precision = #tpu.contract_precision<fp32>} : vector<1x128xf32>, vector<128x128xf32>, vector<1x128xf32> -> vector<1x128xf32>
    %78 = arith.addf %76, %77 : vector<1x128xf32>
    %79 = math.tanh %78 : vector<1x128xf32>
    %c4_70 = arith.constant 4 : index
    %c0_71 = arith.constant 0 : index
    %c0_72 = arith.constant 0 : index
    %80 = vector.load %arg8[%c4_70, %c0_71, %c0_72] : memref<8x1x128xf32, #tpu.memory_space<vmem>>, vector<1x1x128xf32>
    %81 = vector.shape_cast %80 : vector<1x1x128xf32> to vector<1x128xf32>
    %cst_73 = arith.constant dense<0.000000e+00> : vector<1x128xf32>
    %82 = tpu.matmul %79, %58, %cst_73 {dimension_numbers = #tpu.dot_dimension_numbers<[1], [0], [0], [1], [0, 0, 1, 1], [], []>, precision = #tpu.contract_precision<fp32>} : vector<1x128xf32>, vector<128x128xf32>, vector<1x128xf32> -> vector<1x128xf32>
    %83 = arith.addf %81, %82 : vector<1x128xf32>
    %84 = math.tanh %83 : vector<1x128xf32>
    %c5_74 = arith.constant 5 : index
    %c0_75 = arith.constant 0 : index
    %c0_76 = arith.constant 0 : index
    %85 = vector.load %arg8[%c5_74, %c0_75, %c0_76] : memref<8x1x128xf32, #tpu.memory_space<vmem>>, vector<1x1x128xf32>
    %86 = vector.shape_cast %85 : vector<1x1x128xf32> to vector<1x128xf32>
    %cst_77 = arith.constant dense<0.000000e+00> : vector<1x128xf32>
    %87 = tpu.matmul %84, %58, %cst_77 {dimension_numbers = #tpu.dot_dimension_numbers<[1], [0], [0], [1], [0, 0, 1, 1], [], []>, precision = #tpu.contract_precision<fp32>} : vector<1x128xf32>, vector<128x128xf32>, vector<1x128xf32> -> vector<1x128xf32>
    %88 = arith.addf %86, %87 : vector<1x128xf32>
    %89 = math.tanh %88 : vector<1x128xf32>
    %c6_78 = arith.constant 6 : index
    %c0_79 = arith.constant 0 : index
    %c0_80 = arith.constant 0 : index
    %90 = vector.load %arg8[%c6_78, %c0_79, %c0_80] : memref<8x1x128xf32, #tpu.memory_space<vmem>>, vector<1x1x128xf32>
    %91 = vector.shape_cast %90 : vector<1x1x128xf32> to vector<1x128xf32>
    %cst_81 = arith.constant dense<0.000000e+00> : vector<1x128xf32>
    %92 = tpu.matmul %89, %58, %cst_81 {dimension_numbers = #tpu.dot_dimension_numbers<[1], [0], [0], [1], [0, 0, 1, 1], [], []>, precision = #tpu.contract_precision<fp32>} : vector<1x128xf32>, vector<128x128xf32>, vector<1x128xf32> -> vector<1x128xf32>
    %93 = arith.addf %91, %92 : vector<1x128xf32>
    %94 = math.tanh %93 : vector<1x128xf32>
    %c7_82 = arith.constant 7 : index
    %c0_83 = arith.constant 0 : index
    %c0_84 = arith.constant 0 : index
    %95 = vector.load %arg8[%c7_82, %c0_83, %c0_84] : memref<8x1x128xf32, #tpu.memory_space<vmem>>, vector<1x1x128xf32>
    %96 = vector.shape_cast %95 : vector<1x1x128xf32> to vector<1x128xf32>
    %cst_85 = arith.constant dense<0.000000e+00> : vector<1x128xf32>
    %97 = tpu.matmul %94, %58, %cst_85 {dimension_numbers = #tpu.dot_dimension_numbers<[1], [0], [0], [1], [0, 0, 1, 1], [], []>, precision = #tpu.contract_precision<fp32>} : vector<1x128xf32>, vector<128x128xf32>, vector<1x128xf32> -> vector<1x128xf32>
    %98 = arith.addf %96, %97 : vector<1x128xf32>
    %99 = math.tanh %98 : vector<1x128xf32>
    %c0_86 = arith.constant 0 : index
    %c0_87 = arith.constant 0 : index
    %100 = vector.load %arg5[%c0_86, %c0_87] : memref<128x4xf32, #tpu.memory_space<vmem>>, vector<128x4xf32>
    %cst_88 = arith.constant dense<0.000000e+00> : vector<1x4xf32>
    %101 = tpu.matmul %99, %100, %cst_88 {dimension_numbers = #tpu.dot_dimension_numbers<[1], [0], [0], [1], [0, 0, 1, 1], [], []>, precision = #tpu.contract_precision<fp32>} : vector<1x128xf32>, vector<128x4xf32>, vector<1x4xf32> -> vector<1x4xf32>
    %c0_89 = arith.constant 0 : index
    %c0_90 = arith.constant 0 : index
    %102 = vector.load %arg6[%c0_89, %c0_90] : memref<1x1xf32, #tpu.memory_space<vmem>>, vector<1x1xf32>
    %103 = vector.broadcast %102 : vector<1x1xf32> to vector<1x4xf32>
    %104 = arith.addf %101, %103 : vector<1x4xf32>
    %c0_91 = arith.constant 0 : index
    %c0_92 = arith.constant 0 : index
    %105 = vector.load %arg7[%c0_91, %c0_92] : memref<1x4xf32, #tpu.memory_space<vmem>>, vector<1x4xf32>
    tpu.vector_store %arg7[%c0_91, %c0_92], %104 {strides = array<i32>} : memref<1x4xf32, #tpu.memory_space<vmem>>, vector<1x4xf32>,
    return
  }
  func.func @transform_0(%arg0: i32) -> (i32, i32, i32) {
    %c0_i32 = arith.constant 0 : i32
    %c0_i32_0 = arith.constant 0 : i32
    %c0_i32_1 = arith.constant 0 : i32
    return %c0_i32, %arg0, %c0_i32_0 : i32, i32, i32
  }
  func.func @transform_1(%arg0: i32) -> (i32, i32) {
    %c0_i32 = arith.constant 0 : i32
    %c0_i32_0 = arith.constant 0 : i32
    %c0_i32_1 = arith.constant 0 : i32
    return %c0_i32, %c0_i32_0 : i32, i32
  }
  func.func @transform_2(%arg0: i32) -> (i32, i32) {
    %c0_i32 = arith.constant 0 : i32
    %c0_i32_0 = arith.constant 0 : i32
    %c0_i32_1 = arith.constant 0 : i32
    return %c0_i32, %c0_i32_0 : i32, i32
  }
  func.func @transform_3(%arg0: i32) -> (i32, i32) {
    %c0_i32 = arith.constant 0 : i32
    %c0_i32_0 = arith.constant 0 : i32
    %c0_i32_1 = arith.constant 0 : i32
    return %c0_i32, %c0_i32_0 : i32, i32
  }
  func.func @transform_4(%arg0: i32) -> (i32, i32) {
    %c0_i32 = arith.constant 0 : i32
    %c0_i32_0 = arith.constant 0 : i32
    %c0_i32_1 = arith.constant 0 : i32
    return %c0_i32, %c0_i32_0 : i32, i32
  }
  func.func @transform_5(%arg0: i32) -> (i32, i32) {
    %c0_i32 = arith.constant 0 : i32
    %c0_i32_0 = arith.constant 0 : i32
    %c0_i32_1 = arith.constant 0 : i32
    return %c0_i32, %c0_i32_0 : i32, i32
  }
  func.func @transform_6(%arg0: i32) -> (i32, i32) {
    %c0_i32 = arith.constant 0 : i32
    %c0_i32_0 = arith.constant 0 : i32
    return %arg0, %c0_i32 : i32, i32
  }
}

</mosaic_0001>

<llo_original>
// kernel: tpu_custom_call.1
$region0: #{tpu_custom_call.1}
  #allocation0 [shape = 'u32[]', space=smem, size = 0x4, offset = 0x4, fixed_abs, tag = 'smem constant byte address 0x4 - core index']
  #allocation1 [shape = 'u32[72,128]{1,0:T(1,128)}', space=vmem, size = 0x9000, scoped, tag = 'internal scratch']
  #allocation2 [shape = 'f32[8,1,128]{2,1,0:T(1,128)}', space=vmem, size = 0x1000, scoped, tag = 'scratch operand']
  #allocation3 [shape = 'f32[1,1]{1,0:T(1,128)S(1)}', space=vmem, size = 0x200, scoped, tag = 'scoped memory for tpu_custom_call.1']
  %s0 = inlined_call_operand.hbm [shape: f32[8,1,16], index: 0, kind: input, shape index: {}]
  %s1 = inlined_call_operand.hbm [shape: f32[16,128], index: 1, kind: input, shape index: {}]
  %s2 = inlined_call_operand.vmem [shape: f32[128,128], index: 2, kind: input, shape index: {}]
  %s3 = inlined_call_operand.vmem [shape: f32[1,128], index: 3, kind: input, shape index: {}]
  %s4 = inlined_call_operand.vmem [shape: f32[128,4], index: 4, kind: input, shape index: {}]
  %s5 = inlined_call_operand.<no memory space> [shape: f32[1,1], index: 5, kind: input, shape index: {}]
  %s6 = inlined_call_operand.hbm [shape: f32[1,4], index: 6, kind: output, shape index: {}]
  %s7 = sld [smem:[#allocation0]]
  $region42: #{tpu_custom_call.1} parent=0
    _
  %s9 = ssub.s32 1, %s7
  %s10 = scalar_select 0, %s9, %s7
  %v11 = vstv %s5
  %12 = vst [vmem:[#allocation3] sm:$0x1] %v11
  $region1: #{tpu_custom_call.1} parent=0
    #allocation4 [shape = 'u8[4096]{0}', space=vmem, size = 0x1000, scoped, tag = 'input window, operand 0, single buffered']
    #allocation5 [shape = 's32[1]{0}', space=sflag, size = 0x4, scoped, tag = 'scoped memory for tpu_custom_call.1']
    #allocation6 [shape = 's32[1]{0}', space=sflag, size = 0x4, scoped, tag = 'scoped memory for tpu_custom_call.1']
    #allocation7 [shape = 'u8[8192]{0}', space=vmem, size = 0x2000, scoped, tag = 'input window, operand 1, single buffered']
    #allocation8 [shape = 's32[1]{0}', space=sflag, size = 0x4, scoped, tag = 'scoped memory for tpu_custom_call.1']
    #allocation9 [shape = 'u8[512]{0}', space=vmem, size = 0x400, scoped, tag = 'output window, operand 0, single buffered']
    %13 = vsyncpa [#allocation5], 0
    %14 = vsyncpa [#allocation8], 0
    %15 = vsyncpa [#allocation6], 0
    // Predicated region
    $region2: #{tpu_custom_call.1} parent=1 // pred_check
      _
    $region3: #{tpu_custom_call.1} parent=1 // pred_check_branch
      %17 = sbr.rel (0) target = $region5
    $region4: #{tpu_custom_call.1} parent=1 // pred_region
      %19 = vsyncadd [#allocation5], 0
      %s20 = sshll.u32 %s0, 4
      %s21 = int_to_ptr.hbm [resolvable:$true] %s20
      %s22 = sshll.u32 [#allocation4], 4
      %s23 = int_to_ptr.vmem [resolvable:$true] %s22
      %28 = dma.hbm_to_vmem [thread:$0]  %s21, 128, %s23, [#allocation5], 16, 16, 1
    $region5: #{tpu_custom_call.1} parent=1 // pred_fallthru
      _
    // Predicated region
    $region6: #{tpu_custom_call.1} parent=1 // pred_check
      _
    $region7: #{tpu_custom_call.1} parent=1 // pred_check_branch
      %30 = sbr.rel (0) target = $region9
    $region8: #{tpu_custom_call.1} parent=1 // pred_region
      %32 = vsyncadd [#allocation8], 0
      %s33 = sshll.u32 %s1, 4
      %s34 = int_to_ptr.hbm [resolvable:$true] %s33
      %s35 = sshll.u32 [#allocation7], 4
      %s36 = int_to_ptr.vmem [resolvable:$true] %s35
      %41 = dma.hbm_to_vmem [thread:$0]  %s34, 256, %s36, [#allocation8], 128, 128, 8
    $region9: #{tpu_custom_call.1} parent=1 // pred_fallthru
      _
    // Predicated region
    $region10: #{tpu_custom_call.1} parent=1 // pred_check
      _
    $region11: #{tpu_custom_call.1} parent=1 // pred_check_branch
      %43 = sbr.rel (0) target = $region13
    $region12: #{tpu_custom_call.1} parent=1 // pred_region
      _
    $region13: #{tpu_custom_call.1} parent=1 // pred_fallthru
      _
    // Predicated region
    $region14: #{tpu_custom_call.1} parent=1 // pred_check
      _
    $region15: #{tpu_custom_call.1} parent=1 // pred_check_branch
      %45 = sbr.rel (0) target = $region17
    $region16: #{tpu_custom_call.1} parent=1 // pred_region
      _
    $region17: #{tpu_custom_call.1} parent=1 // pred_fallthru
      _
    // Predicated region
    $region18: #{tpu_custom_call.1} parent=1 // pred_check
      _
    $region19: #{tpu_custom_call.1} parent=1 // pred_check_branch
      %47 = sbr.rel (0) target = $region21
    $region20: #{tpu_custom_call.1} parent=1 // pred_region
      _
    $region21: #{tpu_custom_call.1} parent=1 // pred_fallthru
      _
    // Predicated region
    $region22: #{tpu_custom_call.1} parent=1 // pred_check
      _
    $region23: #{tpu_custom_call.1} parent=1 // pred_check_branch
      %49 = sbr.rel (0) target = $region25
    $region24: #{tpu_custom_call.1} parent=1 // pred_region
      _
    $region25: #{tpu_custom_call.1} parent=1 // pred_fallthru
      _
    // Predicated region
    $region26: #{tpu_custom_call.1} parent=1 // pred_check
      _
    $region27: #{tpu_custom_call.1} parent=1 // pred_check_branch
      %51 = sbr.rel (0) target = $region29
    $region28: #{tpu_custom_call.1} parent=1 // pred_region
      %53 = dma.done [#allocation5], 128
    $region29: #{tpu_custom_call.1} parent=1 // pred_fallthru
      _
    // Predicated region
    $region30: #{tpu_custom_call.1} parent=1 // pred_check
      _
    $region31: #{tpu_custom_call.1} parent=1 // pred_check_branch
      %55 = sbr.rel (0) target = $region33
    $region32: #{tpu_custom_call.1} parent=1 // pred_region
      %57 = dma.done [#allocation8], 256
    $region33: #{tpu_custom_call.1} parent=1 // pred_fallthru
      _
    %v58 = vld [vmem:[#allocation7] sm:$0xff]
    %v59 = vld [vmem:[#allocation7 + $0x8] sm:$0xff]
    %v60 = vld [vmem:[%s3] sm:$0x1]
    %v61 = vld [vmem:[#allocation4] sm:$0x1]
    %vm62 = vcmask 130048
    %v64 = vsel %vm62, %v61, 0
    %66 = vmatpush.msra.mxu0 0.0
    %67 = vmatpush.msra.mxu0 0.0
    %68 = vmatpush.msra.mxu0 0.0
    %69 = vmatpush.msra.mxu0 0.0
    %70 = vmatpush.msra.mxu0 0.0
    %71 = vmatpush.msra.mxu0 0.0
    %72 = vmatpush.msra.mxu0 0.0
    %73 = vmatpush.msra.mxu0 0.0
    %74 = vmatpush.msra.mxu0 0.0
    %75 = vmatpush.msra.mxu0 0.0
    %76 = vmatpush.msra.mxu0 0.0
    %77 = vmatpush.msra.mxu0 0.0
    %78 = vmatpush.msra.mxu0 0.0
    %79 = vmatpush.msra.mxu0 0.0
    %v80 = vand.u32 %v59, 4294901760
    %81 = vmatpush.msra.mxu0 %v80
    %v82 = vand.u32 %v58, 4294901760
    %83 = vmatpush.msra.mxu0 %v82
    %v84 = vand.u32 %v64, 4294901760
    %v85 = vsub.f32 %v64, %v84
    %v86 = vand.u32 %v85, 4294901760
    %v87 = vsub.f32 %v85, %v86
    %v88 = vand.u32 %v87, 4294901760
    %89 = vmatmul.f32.gmra.mxu0 %v88
    %v90 = vpop.f32.mrf.mxu0
    %v91 = vadd.f32 %v60, %v90
    %92 = vdwg.mxu0
    %93 = vmatpush.msra.mxu0 0.0
    %94 = vmatpush.msra.mxu0 0.0
    %95 = vmatpush.msra.mxu0 0.0
    %96 = vmatpush.msra.mxu0 0.0
    %97 = vmatpush.msra.mxu0 0.0
    %98 = vmatpush.msra.mxu0 0.0
    %99 = vmatpush.msra.mxu0 0.0
    %100 = vmatpush.msra.mxu0 0.0
    %101 = vmatpush.msra.mxu0 0.0
    %102 = vmatpush.msra.mxu0 0.0
    %103 = vmatpush.msra.mxu0 0.0
    %104 = vmatpush.msra.mxu0 0.0
    %105 = vmatpush.msra.mxu0 0.0
    %106 = vmatpush.msra.mxu0 0.0
    %v107 = vand.u32 %v59, 4294901760
    %v108 = vsub.f32 %v59, %v107
    %v109 = vand.u32 %v108, 4294901760
    %v110 = vsub.f32 %v108, %v109
    %v111 = vand.u32 %v110, 4294901760
    %112 = vmatpush.msra.mxu0 %v111
    %v113 = vand.u32 %v58, 4294901760
    %v114 = vsub.f32 %v58, %v113
    %v115 = vand.u32 %v114, 4294901760
    %v116 = vsub.f32 %v114, %v115
    %v117 = vand.u32 %v116, 4294901760
    %118 = vmatpush.msra.mxu0 %v117
    %v119 = vand.u32 %v64, 4294901760
    %120 = vmatmul.f32.gmra.mxu0 %v119
    %v121 = vpop.f32.mrf.mxu0
    %v122 = vadd.f32 %v91, %v121
    %123 = vdwg.mxu0
    %124 = vmatpush.msra.mxu0 0.0
    %125 = vmatpush.msra.mxu0 0.0
    %126 = vmatpush.msra.mxu0 0.0
    %127 = vmatpush.msra.mxu0 0.0
    %128 = vmatpush.msra.mxu0 0.0
    %129 = vmatpush.msra.mxu0 0.0
    %130 = vmatpush.msra.mxu0 0.0
    %131 = vmatpush.msra.mxu0 0.0
    %132 = vmatpush.msra.mxu0 0.0
    %133 = vmatpush.msra.mxu0 0.0
    %134 = vmatpush.msra.mxu0 0.0
    %135 = vmatpush.msra.mxu0 0.0
    %136 = vmatpush.msra.mxu0 0.0
    %137 = vmatpush.msra.mxu0 0.0
    %v138 = vand.u32 %v59, 4294901760
    %v139 = vsub.f32 %v59, %v138
    %140 = vmatpush.msra.mxu0 %v139
    %v141 = vand.u32 %v58, 4294901760
    %v142 = vsub.f32 %v58, %v141
    %143 = vmatpush.msra.mxu0 %v142
    %v144 = vand.u32 %v64, 4294901760
    %v145 = vsub.f32 %v64, %v144
    %146 = vmatmul.f32.gmra.mxu0 %v145
    %v147 = vpop.f32.mrf.mxu0
    %v148 = vadd.f32 %v122, %v147
    %149 = vdwg.mxu0
    %150 = vmatpush.msra.mxu0 0.0
    %151 = vmatpush.msra.mxu0 0.0
    %152 = vmatpush.msra.mxu0 0.0
    %153 = vmatpush.msra.mxu0 0.0
    %154 = vmatpush.msra.mxu0 0.0
    %155 = vmatpush.msra.mxu0 0.0
    %156 = vmatpush.msra.mxu0 0.0
    %157 = vmatpush.msra.mxu0 0.0
    %158 = vmatpush.msra.mxu0 0.0
    %159 = vmatpush.msra.mxu0 0.0
    %160 = vmatpush.msra.mxu0 0.0
    %161 = vmatpush.msra.mxu0 0.0
    %162 = vmatpush.msra.mxu0 0.0
    %163 = vmatpush.msra.mxu0 0.0
    %v164 = vand.u32 %v59, 4294901760
    %165 = vmatpush.msra.mxu0 %v164
    %v166 = vand.u32 %v58, 4294901760
    %167 = vmatpush.msra.mxu0 %v166
    %v168 = vand.u32 %v64, 4294901760
    %v169 = vsub.f32 %v64, %v168
    %v170 = vand.u32 %v169, 4294901760
    %171 = vmatmul.f32.gmra.mxu0 %v170
    %v172 = vpop.f32.mrf.mxu0
    %v173 = vadd.f32 %v148, %v172
    %174 = vdwg.mxu0
    %175 = vmatpush.msra.mxu0 0.0
    %176 = vmatpush.msra.mxu0 0.0
    %177 = vmatpush.msra.mxu0 0.0
    %178 = vmatpush.msra.mxu0 0.0
    %179 = vmatpush.msra.mxu0 0.0
    %180 = vmatpush.msra.mxu0 0.0
    %181 = vmatpush.msra.mxu0 0.0
    %182 = vmatpush.msra.mxu0 0.0
    %183 = vmatpush.msra.mxu0 0.0
    %184 = vmatpush.msra.mxu0 0.0
    %185 = vmatpush.msra.mxu0 0.0
    %186 = vmatpush.msra.mxu0 0.0
    %187 = vmatpush.msra.mxu0 0.0
    %188 = vmatpush.msra.mxu0 0.0
    %v189 = vand.u32 %v59, 4294901760
    %v190 = vsub.f32 %v59, %v189
    %v191 = vand.u32 %v190, 4294901760
    %192 = vmatpush.msra.mxu0 %v191
    %v193 = vand.u32 %v58, 4294901760
    %v194 = vsub.f32 %v58, %v193
    %v195 = vand.u32 %v194, 4294901760
    %196 = vmatpush.msra.mxu0 %v195
    %v197 = vand.u32 %v64, 4294901760
    %198 = vmatmul.f32.gmra.mxu0 %v197
    %v199 = vpop.f32.mrf.mxu0
    %v200 = vadd.f32 %v173, %v199
    %201 = vdwg.mxu0
    %202 = vmatpush.msra.mxu0 0.0
    %203 = vmatpush.msra.mxu0 0.0
    %204 = vmatpush.msra.mxu0 0.0
    %205 = vmatpush.msra.mxu0 0.0
    %206 = vmatpush.msra.mxu0 0.0
    %207 = vmatpush.msra.mxu0 0.0
    %208 = vmatpush.msra.mxu0 0.0
    %209 = vmatpush.msra.mxu0 0.0
    %210 = vmatpush.msra.mxu0 0.0
    %211 = vmatpush.msra.mxu0 0.0
    %212 = vmatpush.msra.mxu0 0.0
    %213 = vmatpush.msra.mxu0 0.0
    %214 = vmatpush.msra.mxu0 0.0
    %215 = vmatpush.msra.mxu0 0.0
    %v216 = vand.u32 %v59, 4294901760
    %217 = vmatpush.msra.mxu0 %v216
    %v218 = vand.u32 %v58, 4294901760
    %219 = vmatpush.msra.mxu0 %v218
    %v220 = vand.u32 %v64, 4294901760
    %221 = vmatmul.f32.gmra.mxu0 %v220
    %v222 = vpop.f32.mrf.mxu0
    %v223 = vadd.f32 %v200, %v222
    %224 = vdwg.mxu0
    %225 = vst [vmem:[#allocation2] sm:$0x1] %v223
    %s226 = scalar_lea.vmem [#allocation4], 1
    %v227 = vld [vmem:[%s226] sm:$0x1]
    %v229 = vsel %vm62, %v227, 0
    %231 = vmatpush.msra.mxu0 0.0
    %232 = vmatpush.msra.mxu0 0.0
    %233 = vmatpush.msra.mxu0 0.0
    %234 = vmatpush.msra.mxu0 0.0
    %235 = vmatpush.msra.mxu0 0.0
    %236 = vmatpush.msra.mxu0 0.0
    %237 = vmatpush.msra.mxu0 0.0
    %238 = vmatpush.msra.mxu0 0.0
    %239 = vmatpush.msra.mxu0 0.0
    %240 = vmatpush.msra.mxu0 0.0
    %241 = vmatpush.msra.mxu0 0.0
    %242 = vmatpush.msra.mxu0 0.0
    %243 = vmatpush.msra.mxu0 0.0
    %244 = vmatpush.msra.mxu0 0.0
    %v245 = vand.u32 %v59, 4294901760
    %246 = vmatpush.msra.mxu0 %v245
    %v247 = vand.u32 %v58, 4294901760
    %248 = vmatpush.msra.mxu0 %v247
    %v249 = vand.u32 %v229, 4294901760
    %v250 = vsub.f32 %v229, %v249
    %v251 = vand.u32 %v250, 4294901760
    %v252 = vsub.f32 %v250, %v251
    %v253 = vand.u32 %v252, 4294901760
    %254 = vmatmul.f32.gmra.mxu0 %v253
    %v255 = vpop.f32.mrf.mxu0
    %v256 = vadd.f32 %v60, %v255
    %257 = vdwg.mxu0
    %258 = vmatpush.msra.mxu0 0.0
    %259 = vmatpush.msra.mxu0 0.0
    %260 = vmatpush.msra.mxu0 0.0
    %261 = vmatpush.msra.mxu0 0.0
    %262 = vmatpush.msra.mxu0 0.0
    %263 = vmatpush.msra.mxu0 0.0
    %264 = vmatpush.msra.mxu0 0.0
    %265 = vmatpush.msra.mxu0 0.0
    %266 = vmatpush.msra.mxu0 0.0
    %267 = vmatpush.msra.mxu0 0.0
    %268 = vmatpush.msra.mxu0 0.0
    %269 = vmatpush.msra.mxu0 0.0
    %270 = vmatpush.msra.mxu0 0.0
    %271 = vmatpush.msra.mxu0 0.0
    %v272 = vand.u32 %v59, 4294901760
    %v273 = vsub.f32 %v59, %v272
    %v274 = vand.u32 %v273, 4294901760
    %v275 = vsub.f32 %v273, %v274
    %v276 = vand.u32 %v275, 4294901760
    %277 = vmatpush.msra.mxu0 %v276
    %v278 = vand.u32 %v58, 4294901760
    %v279 = vsub.f32 %v58, %v278
    %v280 = vand.u32 %v279, 4294901760
    %v281 = vsub.f32 %v279, %v280
    %v282 = vand.u32 %v281, 4294901760
    %283 = vmatpush.msra.mxu0 %v282
    %v284 = vand.u32 %v229, 4294901760
    %285 = vmatmul.f32.gmra.mxu0 %v284
    %v286 = vpop.f32.mrf.mxu0
    %v287 = vadd.f32 %v256, %v286
    %288 = vdwg.mxu0
    %289 = vmatpush.msra.mxu0 0.0
    %290 = vmatpush.msra.mxu0 0.0
    %291 = vmatpush.msra.mxu0 0.0
    %292 = vmatpush.msra.mxu0 0.0
    %293 = vmatpush.msra.mxu0 0.0
    %294 = vmatpush.msra.mxu0 0.0
    %295 = vmatpush.msra.mxu0 0.0
    %296 = vmatpush.msra.mxu0 0.0
    %297 = vmatpush.msra.mxu0 0.0
    %298 = vmatpush.msra.mxu0 0.0
    %299 = vmatpush.msra.mxu0 0.0
    %300 = vmatpush.msra.mxu0 0.0
    %301 = vmatpush.msra.mxu0 0.0
    %302 = vmatpush.msra.mxu0 0.0
    %v303 = vand.u32 %v59, 4294901760
    %v304 = vsub.f32 %v59, %v303
    %305 = vmatpush.msra.mxu0 %v304
    %v306 = vand.u32 %v58, 4294901760
    %v307 = vsub.f32 %v58, %v306
    %308 = vmatpush.msra.mxu0 %v307
    %v309 = vand.u32 %v229, 4294901760
    %v310 = vsub.f32 %v229, %v309
    %311 = vmatmul.f32.gmra.mxu0 %v310
    %v312 = vpop.f32.mrf.mxu0
    %v313 = vadd.f32 %v287, %v312
    %314 = vdwg.mxu0
    %315 = vmatpush.msra.mxu0 0.0
    %316 = vmatpush.msra.mxu0 0.0
    %317 = vmatpush.msra.mxu0 0.0
    %318 = vmatpush.msra.mxu0 0.0
    %319 = vmatpush.msra.mxu0 0.0
    %320 = vmatpush.msra.mxu0 0.0
    %321 = vmatpush.msra.mxu0 0.0
    %322 = vmatpush.msra.mxu0 0.0
    %323 = vmatpush.msra.mxu0 0.0
    %324 = vmatpush.msra.mxu0 0.0
    %325 = vmatpush.msra.mxu0 0.0
    %326 = vmatpush.msra.mxu0 0.0
    %327 = vmatpush.msra.mxu0 0.0
    %328 = vmatpush.msra.mxu0 0.0
    %v329 = vand.u32 %v59, 4294901760
    %330 = vmatpush.msra.mxu0 %v329
    %v331 = vand.u32 %v58, 4294901760
    %332 = vmatpush.msra.mxu0 %v331
    %v333 = vand.u32 %v229, 4294901760
    %v334 = vsub.f32 %v229, %v333
    %v335 = vand.u32 %v334, 4294901760
    %336 = vmatmul.f32.gmra.mxu0 %v335
    %v337 = vpop.f32.mrf.mxu0
    %v338 = vadd.f32 %v313, %v337
    %339 = vdwg.mxu0
    %340 = vmatpush.msra.mxu0 0.0
    %341 = vmatpush.msra.mxu0 0.0
    %342 = vmatpush.msra.mxu0 0.0
    %343 = vmatpush.msra.mxu0 0.0
    %344 = vmatpush.msra.mxu0 0.0
    %345 = vmatpush.msra.mxu0 0.0
    %346 = vmatpush.msra.mxu0 0.0
    %347 = vmatpush.msra.mxu0 0.0
    %348 = vmatpush.msra.mxu0 0.0
    %349 = vmatpush.msra.mxu0 0.0
    %350 = vmatpush.msra.mxu0 0.0
    %351 = vmatpush.msra.mxu0 0.0
    %352 = vmatpush.msra.mxu0 0.0
    %353 = vmatpush.msra.mxu0 0.0
    %v354 = vand.u32 %v59, 4294901760
    %v355 = vsub.f32 %v59, %v354
    %v356 = vand.u32 %v355, 4294901760
    %357 = vmatpush.msra.mxu0 %v356
    %v358 = vand.u32 %v58, 4294901760
    %v359 = vsub.f32 %v58, %v358
    %v360 = vand.u32 %v359, 4294901760
    %361 = vmatpush.msra.mxu0 %v360
    %v362 = vand.u32 %v229, 4294901760
    %363 = vmatmul.f32.gmra.mxu0 %v362
    %v364 = vpop.f32.mrf.mxu0
    %v365 = vadd.f32 %v338, %v364
    %366 = vdwg.mxu0
    %367 = vmatpush.msra.mxu0 0.0
    %368 = vmatpush.msra.mxu0 0.0
    %369 = vmatpush.msra.mxu0 0.0
    %370 = vmatpush.msra.mxu0 0.0
    %371 = vmatpush.msra.mxu0 0.0
    %372 = vmatpush.msra.mxu0 0.0
    %373 = vmatpush.msra.mxu0 0.0
    %374 = vmatpush.msra.mxu0 0.0
    %375 = vmatpush.msra.mxu0 0.0
    %376 = vmatpush.msra.mxu0 0.0
    %377 = vmatpush.msra.mxu0 0.0
    %378 = vmatpush.msra.mxu0 0.0
    %379 = vmatpush.msra.mxu0 0.0
    %380 = vmatpush.msra.mxu0 0.0
    %v381 = vand.u32 %v59, 4294901760
    %382 = vmatpush.msra.mxu0 %v381
    %v383 = vand.u32 %v58, 4294901760
    %384 = vmatpush.msra.mxu0 %v383
    %v385 = vand.u32 %v229, 4294901760
    %386 = vmatmul.f32.gmra.mxu0 %v385
    %v387 = vpop.f32.mrf.mxu0
    %v388 = vadd.f32 %v365, %v387
    %389 = vdwg.mxu0
    %s390 = scalar_lea.vmem [#allocation2], 1
    %391 = vst [vmem:[%s390] sm:$0x1] %v388
    %s392 = scalar_lea.vmem [#allocation4], 2
    %v393 = vld [vmem:[%s392] sm:$0x1]
    %v395 = vsel %vm62, %v393, 0
    %397 = vmatpush.msra.mxu0 0.0
    %398 = vmatpush.msra.mxu0 0.0
    %399 = vmatpush.msra.mxu0 0.0
    %400 = vmatpush.msra.mxu0 0.0
    %401 = vmatpush.msra.mxu0 0.0
    %402 = vmatpush.msra.mxu0 0.0
    %403 = vmatpush.msra.mxu0 0.0
    %404 = vmatpush.msra.mxu0 0.0
    %405 = vmatpush.msra.mxu0 0.0
    %406 = vmatpush.msra.mxu0 0.0
    %407 = vmatpush.msra.mxu0 0.0
    %408 = vmatpush.msra.mxu0 0.0
    %409 = vmatpush.msra.mxu0 0.0
    %410 = vmatpush.msra.mxu0 0.0
    %v411 = vand.u32 %v59, 4294901760
    %412 = vmatpush.msra.mxu0 %v411
    %v413 = vand.u32 %v58, 4294901760
    %414 = vmatpush.msra.mxu0 %v413
    %v415 = vand.u32 %v395, 4294901760
    %v416 = vsub.f32 %v395, %v415
    %v417 = vand.u32 %v416, 4294901760
    %v418 = vsub.f32 %v416, %v417
    %v419 = vand.u32 %v418, 4294901760
    %420 = vmatmul.f32.gmra.mxu0 %v419
    %v421 = vpop.f32.mrf.mxu0
    %v422 = vadd.f32 %v60, %v421
    %423 = vdwg.mxu0
    %424 = vmatpush.msra.mxu0 0.0
    %425 = vmatpush.msra.mxu0 0.0
    %426 = vmatpush.msra.mxu0 0.0
    %427 = vmatpush.msra.mxu0 0.0
    %428 = vmatpush.msra.mxu0 0.0
    %429 = vmatpush.msra.mxu0 0.0
    %430 = vmatpush.msra.mxu0 0.0
    %431 = vmatpush.msra.mxu0 0.0
    %432 = vmatpush.msra.mxu0 0.0
    %433 = vmatpush.msra.mxu0 0.0
    %434 = vmatpush.msra.mxu0 0.0
    %435 = vmatpush.msra.mxu0 0.0
    %436 = vmatpush.msra.mxu0 0.0
    %437 = vmatpush.msra.mxu0 0.0
    %v438 = vand.u32 %v59, 4294901760
    %v439 = vsub.f32 %v59, %v438
    %v440 = vand.u32 %v439, 4294901760
    %v441 = vsub.f32 %v439, %v440
    %v442 = vand.u32 %v441, 4294901760
    %443 = vmatpush.msra.mxu0 %v442
    %v444 = vand.u32 %v58, 4294901760
    %v445 = vsub.f32 %v58, %v444
    %v446 = vand.u32 %v445, 4294901760
    %v447 = vsub.f32 %v445, %v446
    %v448 = vand.u32 %v447, 4294901760
    %449 = vmatpush.msra.mxu0 %v448
    %v450 = vand.u32 %v395, 4294901760
    %451 = vmatmul.f32.gmra.mxu0 %v450
    %v452 = vpop.f32.mrf.mxu0
    %v453 = vadd.f32 %v422, %v452
    %454 = vdwg.mxu0
    %455 = vmatpush.msra.mxu0 0.0
    %456 = vmatpush.msra.mxu0 0.0
    %457 = vmatpush.msra.mxu0 0.0
    %458 = vmatpush.msra.mxu0 0.0
    %459 = vmatpush.msra.mxu0 0.0
    %460 = vmatpush.msra.mxu0 0.0
    %461 = vmatpush.msra.mxu0 0.0
    %462 = vmatpush.msra.mxu0 0.0
    %463 = vmatpush.msra.mxu0 0.0
    %464 = vmatpush.msra.mxu0 0.0
    %465 = vmatpush.msra.mxu0 0.0
    %466 = vmatpush.msra.mxu0 0.0
    %467 = vmatpush.msra.mxu0 0.0
    %468 = vmatpush.msra.mxu0 0.0
    %v469 = vand.u32 %v59, 4294901760
    %v470 = vsub.f32 %v59, %v469
    %471 = vmatpush.msra.mxu0 %v470
    %v472 = vand.u32 %v58, 4294901760
    %v473 = vsub.f32 %v58, %v472
    %474 = vmatpush.msra.mxu0 %v473
    %v475 = vand.u32 %v395, 4294901760
    %v476 = vsub.f32 %v395, %v475
    %477 = vmatmul.f32.gmra.mxu0 %v476
    %v478 = vpop.f32.mrf.mxu0
    %v479 = vadd.f32 %v453, %v478
    %480 = vdwg.mxu0
    %481 = vmatpush.msra.mxu0 0.0
    %482 = vmatpush.msra.mxu0 0.0
    %483 = vmatpush.msra.mxu0 0.0
    %484 = vmatpush.msra.mxu0 0.0
    %485 = vmatpush.msra.mxu0 0.0
    %486 = vmatpush.msra.mxu0 0.0
    %487 = vmatpush.msra.mxu0 0.0
    %488 = vmatpush.msra.mxu0 0.0
    %489 = vmatpush.msra.mxu0 0.0
    %490 = vmatpush.msra.mxu0 0.0
    %491 = vmatpush.msra.mxu0 0.0
    %492 = vmatpush.msra.mxu0 0.0
    %493 = vmatpush.msra.mxu0 0.0
    %494 = vmatpush.msra.mxu0 0.0
    %v495 = vand.u32 %v59, 4294901760
    %496 = vmatpush.msra.mxu0 %v495
    %v497 = vand.u32 %v58, 4294901760
    %498 = vmatpush.msra.mxu0 %v497
    %v499 = vand.u32 %v395, 4294901760
    %v500 = vsub.f32 %v395, %v499
    %v501 = vand.u32 %v500, 4294901760
    %502 = vmatmul.f32.gmra.mxu0 %v501
    %v503 = vpop.f32.mrf.mxu0
    %v504 = vadd.f32 %v479, %v503
    %505 = vdwg.mxu0
    %506 = vmatpush.msra.mxu0 0.0
    %507 = vmatpush.msra.mxu0 0.0
    %508 = vmatpush.msra.mxu0 0.0
    %509 = vmatpush.msra.mxu0 0.0
    %510 = vmatpush.msra.mxu0 0.0
    %511 = vmatpush.msra.mxu0 0.0
    %512 = vmatpush.msra.mxu0 0.0
    %513 = vmatpush.msra.mxu0 0.0
    %514 = vmatpush.msra.mxu0 0.0
    %515 = vmatpush.msra.mxu0 0.0
    %516 = vmatpush.msra.mxu0 0.0
    %517 = vmatpush.msra.mxu0 0.0
    %518 = vmatpush.msra.mxu0 0.0
    %519 = vmatpush.msra.mxu0 0.0
    %v520 = vand.u32 %v59, 4294901760
    %v521 = vsub.f32 %v59, %v520
    %v522 = vand.u32 %v521, 4294901760
    %523 = vmatpush.msra.mxu0 %v522
    %v524 = vand.u32 %v58, 4294901760
    %v525 = vsub.f32 %v58, %v524
    %v526 = vand.u32 %v525, 4294901760
    %527 = vmatpush.msra.mxu0 %v526
    %v528 = vand.u32 %v395, 4294901760
    %529 = vmatmul.f32.gmra.mxu0 %v528
    %v530 = vpop.f32.mrf.mxu0
    %v531 = vadd.f32 %v504, %v530
    %532 = vdwg.mxu0
    %533 = vmatpush.msra.mxu0 0.0
    %534 = vmatpush.msra.mxu0 0.0
    %535 = vmatpush.msra.mxu0 0.0
    %536 = vmatpush.msra.mxu0 0.0
    %537 = vmatpush.msra.mxu0 0.0
    %538 = vmatpush.msra.mxu0 0.0
    %539 = vmatpush.msra.mxu0 0.0
    %540 = vmatpush.msra.mxu0 0.0
    %541 = vmatpush.msra.mxu0 0.0
    %542 = vmatpush.msra.mxu0 0.0
    %543 = vmatpush.msra.mxu0 0.0
    %544 = vmatpush.msra.mxu0 0.0
    %545 = vmatpush.msra.mxu0 0.0
    %546 = vmatpush.msra.mxu0 0.0
    %v547 = vand.u32 %v59, 4294901760
    %548 = vmatpush.msra.mxu0 %v547
    %v549 = vand.u32 %v58, 4294901760
    %550 = vmatpush.msra.mxu0 %v549
    %v551 = vand.u32 %v395, 4294901760
    %552 = vmatmul.f32.gmra.mxu0 %v551
    %v553 = vpop.f32.mrf.mxu0
    %v554 = vadd.f32 %v531, %v553
    %555 = vdwg.mxu0
    %s556 = scalar_lea.vmem [#allocation2], 2
    %557 = vst [vmem:[%s556] sm:$0x1] %v554
    %s558 = scalar_lea.vmem [#allocation4], 3
    %v559 = vld [vmem:[%s558] sm:$0x1]
    %v561 = vsel %vm62, %v559, 0
    %563 = vmatpush.msra.mxu0 0.0
    %564 = vmatpush.msra.mxu0 0.0
    %565 = vmatpush.msra.mxu0 0.0
    %566 = vmatpush.msra.mxu0 0.0
    %567 = vmatpush.msra.mxu0 0.0
    %568 = vmatpush.msra.mxu0 0.0
    %569 = vmatpush.msra.mxu0 0.0
    %570 = vmatpush.msra.mxu0 0.0
    %571 = vmatpush.msra.mxu0 0.0
    %572 = vmatpush.msra.mxu0 0.0
    %573 = vmatpush.msra.mxu0 0.0
    %574 = vmatpush.msra.mxu0 0.0
    %575 = vmatpush.msra.mxu0 0.0
    %576 = vmatpush.msra.mxu0 0.0
    %v577 = vand.u32 %v59, 4294901760
    %578 = vmatpush.msra.mxu0 %v577
    %v579 = vand.u32 %v58, 4294901760
    %580 = vmatpush.msra.mxu0 %v579
    %v581 = vand.u32 %v561, 4294901760
    %v582 = vsub.f32 %v561, %v581
    %v583 = vand.u32 %v582, 4294901760
    %v584 = vsub.f32 %v582, %v583
    %v585 = vand.u32 %v584, 4294901760
    %586 = vmatmul.f32.gmra.mxu0 %v585
    %v587 = vpop.f32.mrf.mxu0
    %v588 = vadd.f32 %v60, %v587
    %589 = vdwg.mxu0
    %590 = vmatpush.msra.mxu0 0.0
    %591 = vmatpush.msra.mxu0 0.0
    %592 = vmatpush.msra.mxu0 0.0
    %593 = vmatpush.msra.mxu0 0.0
    %594 = vmatpush.msra.mxu0 0.0
    %595 = vmatpush.msra.mxu0 0.0
    %596 = vmatpush.msra.mxu0 0.0
    %597 = vmatpush.msra.mxu0 0.0
    %598 = vmatpush.msra.mxu0 0.0
    %599 = vmatpush.msra.mxu0 0.0
    %600 = vmatpush.msra.mxu0 0.0
    %601 = vmatpush.msra.mxu0 0.0
    %602 = vmatpush.msra.mxu0 0.0
    %603 = vmatpush.msra.mxu0 0.0
    %v604 = vand.u32 %v59, 4294901760
    %v605 = vsub.f32 %v59, %v604
    %v606 = vand.u32 %v605, 4294901760
    %v607 = vsub.f32 %v605, %v606
    %v608 = vand.u32 %v607, 4294901760
    %609 = vmatpush.msra.mxu0 %v608
    %v610 = vand.u32 %v58, 4294901760
    %v611 = vsub.f32 %v58, %v610
    %v612 = vand.u32 %v611, 4294901760
    %v613 = vsub.f32 %v611, %v612
    %v614 = vand.u32 %v613, 4294901760
    %615 = vmatpush.msra.mxu0 %v614
    %v616 = vand.u32 %v561, 4294901760
    %617 = vmatmul.f32.gmra.mxu0 %v616
    %v618 = vpop.f32.mrf.mxu0
    %v619 = vadd.f32 %v588, %v618
    %620 = vdwg.mxu0
    %621 = vmatpush.msra.mxu0 0.0
    %622 = vmatpush.msra.mxu0 0.0
    %623 = vmatpush.msra.mxu0 0.0
    %624 = vmatpush.msra.mxu0 0.0
    %625 = vmatpush.msra.mxu0 0.0
    %626 = vmatpush.msra.mxu0 0.0
    %627 = vmatpush.msra.mxu0 0.0
    %628 = vmatpush.msra.mxu0 0.0
    %629 = vmatpush.msra.mxu0 0.0
    %630 = vmatpush.msra.mxu0 0.0
    %631 = vmatpush.msra.mxu0 0.0
    %632 = vmatpush.msra.mxu0 0.0
    %633 = vmatpush.msra.mxu0 0.0
    %634 = vmatpush.msra.mxu0 0.0
    %v635 = vand.u32 %v59, 4294901760
    %v636 = vsub.f32 %v59, %v635
    %637 = vmatpush.msra.mxu0 %v636
    %v638 = vand.u32 %v58, 4294901760
    %v639 = vsub.f32 %v58, %v638
    %640 = vmatpush.msra.mxu0 %v639
    %v641 = vand.u32 %v561, 4294901760
    %v642 = vsub.f32 %v561, %v641
    %643 = vmatmul.f32.gmra.mxu0 %v642
    %v644 = vpop.f32.mrf.mxu0
    %v645 = vadd.f32 %v619, %v644
    %646 = vdwg.mxu0
    %647 = vmatpush.msra.mxu0 0.0
    %648 = vmatpush.msra.mxu0 0.0
    %649 = vmatpush.msra.mxu0 0.0
    %650 = vmatpush.msra.mxu0 0.0
    %651 = vmatpush.msra.mxu0 0.0
    %652 = vmatpush.msra.mxu0 0.0
    %653 = vmatpush.msra.mxu0 0.0
    %654 = vmatpush.msra.mxu0 0.0
    %655 = vmatpush.msra.mxu0 0.0
    %656 = vmatpush.msra.mxu0 0.0
    %657 = vmatpush.msra.mxu0 0.0
    %658 = vmatpush.msra.mxu0 0.0
    %659 = vmatpush.msra.mxu0 0.0
    %660 = vmatpush.msra.mxu0 0.0
    %v661 = vand.u32 %v59, 4294901760
    %662 = vmatpush.msra.mxu0 %v661
    %v663 = vand.u32 %v58, 4294901760
    %664 = vmatpush.msra.mxu0 %v663
    %v665 = vand.u32 %v561, 4294901760
    %v666 = vsub.f32 %v561, %v665
    %v667 = vand.u32 %v666, 4294901760
    %668 = vmatmul.f32.gmra.mxu0 %v667
    %v669 = vpop.f32.mrf.mxu0
    %v670 = vadd.f32 %v645, %v669
    %671 = vdwg.mxu0
    %672 = vmatpush.msra.mxu0 0.0
    %673 = vmatpush.msra.mxu0 0.0
    %674 = vmatpush.msra.mxu0 0.0
    %675 = vmatpush.msra.mxu0 0.0
    %676 = vmatpush.msra.mxu0 0.0
    %677 = vmatpush.msra.mxu0 0.0
    %678 = vmatpush.msra.mxu0 0.0
    %679 = vmatpush.msra.mxu0 0.0
    %680 = vmatpush.msra.mxu0 0.0
    %681 = vmatpush.msra.mxu0 0.0
    %682 = vmatpush.msra.mxu0 0.0
    %683 = vmatpush.msra.mxu0 0.0
    %684 = vmatpush.msra.mxu0 0.0
    %685 = vmatpush.msra.mxu0 0.0
    %v686 = vand.u32 %v59, 4294901760
    %v687 = vsub.f32 %v59, %v686
    %v688 = vand.u32 %v687, 4294901760
    %689 = vmatpush.msra.mxu0 %v688
    %v690 = vand.u32 %v58, 4294901760
    %v691 = vsub.f32 %v58, %v690
    %v692 = vand.u32 %v691, 4294901760
    %693 = vmatpush.msra.mxu0 %v692
    %v694 = vand.u32 %v561, 4294901760
    %695 = vmatmul.f32.gmra.mxu0 %v694
    %v696 = vpop.f32.mrf.mxu0
    %v697 = vadd.f32 %v670, %v696
    %698 = vdwg.mxu0
    %699 = vmatpush.msra.mxu0 0.0
    %700 = vmatpush.msra.mxu0 0.0
    %701 = vmatpush.msra.mxu0 0.0
    %702 = vmatpush.msra.mxu0 0.0
    %703 = vmatpush.msra.mxu0 0.0
    %704 = vmatpush.msra.mxu0 0.0
    %705 = vmatpush.msra.mxu0 0.0
    %706 = vmatpush.msra.mxu0 0.0
    %707 = vmatpush.msra.mxu0 0.0
    %708 = vmatpush.msra.mxu0 0.0
    %709 = vmatpush.msra.mxu0 0.0
    %710 = vmatpush.msra.mxu0 0.0
    %711 = vmatpush.msra.mxu0 0.0
    %712 = vmatpush.msra.mxu0 0.0
    %v713 = vand.u32 %v59, 4294901760
    %714 = vmatpush.msra.mxu0 %v713
    %v715 = vand.u32 %v58, 4294901760
    %716 = vmatpush.msra.mxu0 %v715
    %v717 = vand.u32 %v561, 4294901760
    %718 = vmatmul.f32.gmra.mxu0 %v717
    %v719 = vpop.f32.mrf.mxu0
    %v720 = vadd.f32 %v697, %v719
    %721 = vdwg.mxu0
    %s722 = scalar_lea.vmem [#allocation2], 3
    %723 = vst [vmem:[%s722] sm:$0x1] %v720
    %s724 = scalar_lea.vmem [#allocation4], 4
    %v725 = vld [vmem:[%s724] sm:$0x1]
    %v727 = vsel %vm62, %v725, 0
    %729 = vmatpush.msra.mxu0 0.0
    %730 = vmatpush.msra.mxu0 0.0
    %731 = vmatpush.msra.mxu0 0.0
    %732 = vmatpush.msra.mxu0 0.0
    %733 = vmatpush.msra.mxu0 0.0
    %734 = vmatpush.msra.mxu0 0.0
    %735 = vmatpush.msra.mxu0 0.0
    %736 = vmatpush.msra.mxu0 0.0
    %737 = vmatpush.msra.mxu0 0.0
    %738 = vmatpush.msra.mxu0 0.0
    %739 = vmatpush.msra.mxu0 0.0
    %740 = vmatpush.msra.mxu0 0.0
    %741 = vmatpush.msra.mxu0 0.0
    %742 = vmatpush.msra.mxu0 0.0
    %v743 = vand.u32 %v59, 4294901760
    %744 = vmatpush.msra.mxu0 %v743
    %v745 = vand.u32 %v58, 4294901760
    %746 = vmatpush.msra.mxu0 %v745
    %v747 = vand.u32 %v727, 4294901760
    %v748 = vsub.f32 %v727, %v747
    %v749 = vand.u32 %v748, 4294901760
    %v750 = vsub.f32 %v748, %v749
    %v751 = vand.u32 %v750, 4294901760
    %752 = vmatmul.f32.gmra.mxu0 %v751
    %v753 = vpop.f32.mrf.mxu0
    %v754 = vadd.f32 %v60, %v753
    %755 = vdwg.mxu0
    %756 = vmatpush.msra.mxu0 0.0
    %757 = vmatpush.msra.mxu0 0.0
    %758 = vmatpush.msra.mxu0 0.0
    %759 = vmatpush.msra.mxu0 0.0
    %760 = vmatpush.msra.mxu0 0.0
    %761 = vmatpush.msra.mxu0 0.0
    %762 = vmatpush.msra.mxu0 0.0
    %763 = vmatpush.msra.mxu0 0.0
    %764 = vmatpush.msra.mxu0 0.0
    %765 = vmatpush.msra.mxu0 0.0
    %766 = vmatpush.msra.mxu0 0.0
    %767 = vmatpush.msra.mxu0 0.0
    %768 = vmatpush.msra.mxu0 0.0
    %769 = vmatpush.msra.mxu0 0.0
    %v770 = vand.u32 %v59, 4294901760
    %v771 = vsub.f32 %v59, %v770
    %v772 = vand.u32 %v771, 4294901760
    %v773 = vsub.f32 %v771, %v772
    %v774 = vand.u32 %v773, 4294901760
    %775 = vmatpush.msra.mxu0 %v774
    %v776 = vand.u32 %v58, 4294901760
    %v777 = vsub.f32 %v58, %v776
    %v778 = vand.u32 %v777, 4294901760
    %v779 = vsub.f32 %v777, %v778
    %v780 = vand.u32 %v779, 4294901760
    %781 = vmatpush.msra.mxu0 %v780
    %v782 = vand.u32 %v727, 4294901760
    %783 = vmatmul.f32.gmra.mxu0 %v782
    %v784 = vpop.f32.mrf.mxu0
    %v785 = vadd.f32 %v754, %v784
    %786 = vdwg.mxu0
    %787 = vmatpush.msra.mxu0 0.0
    %788 = vmatpush.msra.mxu0 0.0
    %789 = vmatpush.msra.mxu0 0.0
    %790 = vmatpush.msra.mxu0 0.0
    %791 = vmatpush.msra.mxu0 0.0
    %792 = vmatpush.msra.mxu0 0.0
    %793 = vmatpush.msra.mxu0 0.0
    %794 = vmatpush.msra.mxu0 0.0
    %795 = vmatpush.msra.mxu0 0.0
    %796 = vmatpush.msra.mxu0 0.0
    %797 = vmatpush.msra.mxu0 0.0
    %798 = vmatpush.msra.mxu0 0.0
    %799 = vmatpush.msra.mxu0 0.0
    %800 = vmatpush.msra.mxu0 0.0
    %v801 = vand.u32 %v59, 4294901760
    %v802 = vsub.f32 %v59, %v801
    %803 = vmatpush.msra.mxu0 %v802
    %v804 = vand.u32 %v58, 4294901760
    %v805 = vsub.f32 %v58, %v804
    %806 = vmatpush.msra.mxu0 %v805
    %v807 = vand.u32 %v727, 4294901760
    %v808 = vsub.f32 %v727, %v807
    %809 = vmatmul.f32.gmra.mxu0 %v808
    %v810 = vpop.f32.mrf.mxu0
    %v811 = vadd.f32 %v785, %v810
    %812 = vdwg.mxu0
    %813 = vmatpush.msra.mxu0 0.0
    %814 = vmatpush.msra.mxu0 0.0
    %815 = vmatpush.msra.mxu0 0.0
    %816 = vmatpush.msra.mxu0 0.0
    %817 = vmatpush.msra.mxu0 0.0
    %818 = vmatpush.msra.mxu0 0.0
    %819 = vmatpush.msra.mxu0 0.0
    %820 = vmatpush.msra.mxu0 0.0
    %821 = vmatpush.msra.mxu0 0.0
    %822 = vmatpush.msra.mxu0 0.0
    %823 = vmatpush.msra.mxu0 0.0
    %824 = vmatpush.msra.mxu0 0.0
    %825 = vmatpush.msra.mxu0 0.0
    %826 = vmatpush.msra.mxu0 0.0
    %v827 = vand.u32 %v59, 4294901760
    %828 = vmatpush.msra.mxu0 %v827
    %v829 = vand.u32 %v58, 4294901760
    %830 = vmatpush.msra.mxu0 %v829
    %v831 = vand.u32 %v727, 4294901760
    %v832 = vsub.f32 %v727, %v831
    %v833 = vand.u32 %v832, 4294901760
    %834 = vmatmul.f32.gmra.mxu0 %v833
    %v835 = vpop.f32.mrf.mxu0
    %v836 = vadd.f32 %v811, %v835
    %837 = vdwg.mxu0
    %838 = vmatpush.msra.mxu0 0.0
    %839 = vmatpush.msra.mxu0 0.0
    %840 = vmatpush.msra.mxu0 0.0
    %841 = vmatpush.msra.mxu0 0.0
    %842 = vmatpush.msra.mxu0 0.0
    %843 = vmatpush.msra.mxu0 0.0
    %844 = vmatpush.msra.mxu0 0.0
    %845 = vmatpush.msra.mxu0 0.0
    %846 = vmatpush.msra.mxu0 0.0
    %847 = vmatpush.msra.mxu0 0.0
    %848 = vmatpush.msra.mxu0 0.0
    %849 = vmatpush.msra.mxu0 0.0
    %850 = vmatpush.msra.mxu0 0.0
    %851 = vmatpush.msra.mxu0 0.0
    %v852 = vand.u32 %v59, 4294901760
    %v853 = vsub.f32 %v59, %v852
    %v854 = vand.u32 %v853, 4294901760
    %855 = vmatpush.msra.mxu0 %v854
    %v856 = vand.u32 %v58, 4294901760
    %v857 = vsub.f32 %v58, %v856
    %v858 = vand.u32 %v857, 4294901760
    %859 = vmatpush.msra.mxu0 %v858
    %v860 = vand.u32 %v727, 4294901760
    %861 = vmatmul.f32.gmra.mxu0 %v860
    %v862 = vpop.f32.mrf.mxu0
    %v863 = vadd.f32 %v836, %v862
    %864 = vdwg.mxu0
    %865 = vmatpush.msra.mxu0 0.0
    %866 = vmatpush.msra.mxu0 0.0
    %867 = vmatpush.msra.mxu0 0.0
    %868 = vmatpush.msra.mxu0 0.0
    %869 = vmatpush.msra.mxu0 0.0
    %870 = vmatpush.msra.mxu0 0.0
    %871 = vmatpush.msra.mxu0 0.0
    %872 = vmatpush.msra.mxu0 0.0
    %873 = vmatpush.msra.mxu0 0.0
    %874 = vmatpush.msra.mxu0 0.0
    %875 = vmatpush.msra.mxu0 0.0
    %876 = vmatpush.msra.mxu0 0.0
    %877 = vmatpush.msra.mxu0 0.0
    %878 = vmatpush.msra.mxu0 0.0
    %v879 = vand.u32 %v59, 4294901760
    %880 = vmatpush.msra.mxu0 %v879
    %v881 = vand.u32 %v58, 4294901760
    %882 = vmatpush.msra.mxu0 %v881
    %v883 = vand.u32 %v727, 4294901760
    %884 = vmatmul.f32.gmra.mxu0 %v883
    %v885 = vpop.f32.mrf.mxu0
    %v886 = vadd.f32 %v863, %v885
    %887 = vdwg.mxu0
    %s888 = scalar_lea.vmem [#allocation2], 4
    %889 = vst [vmem:[%s888] sm:$0x1] %v886
    %s890 = scalar_lea.vmem [#allocation4], 5
    %v891 = vld [vmem:[%s890] sm:$0x1]
    %v893 = vsel %vm62, %v891, 0
    %895 = vmatpush.msra.mxu0 0.0
    %896 = vmatpush.msra.mxu0 0.0
    %897 = vmatpush.msra.mxu0 0.0
    %898 = vmatpush.msra.mxu0 0.0
    %899 = vmatpush.msra.mxu0 0.0
    %900 = vmatpush.msra.mxu0 0.0
    %901 = vmatpush.msra.mxu0 0.0
    %902 = vmatpush.msra.mxu0 0.0
    %903 = vmatpush.msra.mxu0 0.0
    %904 = vmatpush.msra.mxu0 0.0
    %905 = vmatpush.msra.mxu0 0.0
    %906 = vmatpush.msra.mxu0 0.0
    %907 = vmatpush.msra.mxu0 0.0
    %908 = vmatpush.msra.mxu0 0.0
    %v909 = vand.u32 %v59, 4294901760
    %910 = vmatpush.msra.mxu0 %v909
    %v911 = vand.u32 %v58, 4294901760
    %912 = vmatpush.msra.mxu0 %v911
    %v913 = vand.u32 %v893, 4294901760
    %v914 = vsub.f32 %v893, %v913
    %v915 = vand.u32 %v914, 4294901760
    %v916 = vsub.f32 %v914, %v915
    %v917 = vand.u32 %v916, 4294901760
    %918 = vmatmul.f32.gmra.mxu0 %v917
    %v919 = vpop.f32.mrf.mxu0
    %v920 = vadd.f32 %v60, %v919
    %921 = vdwg.mxu0
    %922 = vmatpush.msra.mxu0 0.0
    %923 = vmatpush.msra.mxu0 0.0
    %924 = vmatpush.msra.mxu0 0.0
    %925 = vmatpush.msra.mxu0 0.0
    %926 = vmatpush.msra.mxu0 0.0
    %927 = vmatpush.msra.mxu0 0.0
    %928 = vmatpush.msra.mxu0 0.0
    %929 = vmatpush.msra.mxu0 0.0
    %930 = vmatpush.msra.mxu0 0.0
    %931 = vmatpush.msra.mxu0 0.0
    %932 = vmatpush.msra.mxu0 0.0
    %933 = vmatpush.msra.mxu0 0.0
    %934 = vmatpush.msra.mxu0 0.0
    %935 = vmatpush.msra.mxu0 0.0
    %v936 = vand.u32 %v59, 4294901760
    %v937 = vsub.f32 %v59, %v936
    %v938 = vand.u32 %v937, 4294901760
    %v939 = vsub.f32 %v937, %v938
    %v940 = vand.u32 %v939, 4294901760
    %941 = vmatpush.msra.mxu0 %v940
    %v942 = vand.u32 %v58, 4294901760
    %v943 = vsub.f32 %v58, %v942
    %v944 = vand.u32 %v943, 4294901760
    %v945 = vsub.f32 %v943, %v944
    %v946 = vand.u32 %v945, 4294901760
    %947 = vmatpush.msra.mxu0 %v946
    %v948 = vand.u32 %v893, 4294901760
    %949 = vmatmul.f32.gmra.mxu0 %v948
    %v950 = vpop.f32.mrf.mxu0
    %v951 = vadd.f32 %v920, %v950
    %952 = vdwg.mxu0
    %953 = vmatpush.msra.mxu0 0.0
    %954 = vmatpush.msra.mxu0 0.0
    %955 = vmatpush.msra.mxu0 0.0
    %956 = vmatpush.msra.mxu0 0.0
    %957 = vmatpush.msra.mxu0 0.0
    %958 = vmatpush.msra.mxu0 0.0
    %959 = vmatpush.msra.mxu0 0.0
    %960 = vmatpush.msra.mxu0 0.0
    %961 = vmatpush.msra.mxu0 0.0
    %962 = vmatpush.msra.mxu0 0.0
    %963 = vmatpush.msra.mxu0 0.0
    %964 = vmatpush.msra.mxu0 0.0
    %965 = vmatpush.msra.mxu0 0.0
    %966 = vmatpush.msra.mxu0 0.0
    %v967 = vand.u32 %v59, 4294901760
    %v968 = vsub.f32 %v59, %v967
    %969 = vmatpush.msra.mxu0 %v968
    %v970 = vand.u32 %v58, 4294901760
    %v971 = vsub.f32 %v58, %v970
    %972 = vmatpush.msra.mxu0 %v971
    %v973 = vand.u32 %v893, 4294901760
    %v974 = vsub.f32 %v893, %v973
    %975 = vmatmul.f32.gmra.mxu0 %v974
    %v976 = vpop.f32.mrf.mxu0
    %v977 = vadd.f32 %v951, %v976
    %978 = vdwg.mxu0
    %979 = vmatpush.msra.mxu0 0.0
    %980 = vmatpush.msra.mxu0 0.0
    %981 = vmatpush.msra.mxu0 0.0
    %982 = vmatpush.msra.mxu0 0.0
    %983 = vmatpush.msra.mxu0 0.0
    %984 = vmatpush.msra.mxu0 0.0
    %985 = vmatpush.msra.mxu0 0.0
    %986 = vmatpush.msra.mxu0 0.0
    %987 = vmatpush.msra.mxu0 0.0
    %988 = vmatpush.msra.mxu0 0.0
    %989 = vmatpush.msra.mxu0 0.0
    %990 = vmatpush.msra.mxu0 0.0
    %991 = vmatpush.msra.mxu0 0.0
    %992 = vmatpush.msra.mxu0 0.0
    %v993 = vand.u32 %v59, 4294901760
    %994 = vmatpush.msra.mxu0 %v993
    %v995 = vand.u32 %v58, 4294901760
    %996 = vmatpush.msra.mxu0 %v995
    %v997 = vand.u32 %v893, 4294901760
    %v998 = vsub.f32 %v893, %v997
    %v999 = vand.u32 %v998, 4294901760
    %1000 = vmatmul.f32.gmra.mxu0 %v999
    %v1001 = vpop.f32.mrf.mxu0
    %v1002 = vadd.f32 %v977, %v1001
    %1003 = vdwg.mxu0
    %1004 = vmatpush.msra.mxu0 0.0
    %1005 = vmatpush.msra.mxu0 0.0
    %1006 = vmatpush.msra.mxu0 0.0
    %1007 = vmatpush.msra.mxu0 0.0
    %1008 = vmatpush.msra.mxu0 0.0
    %1009 = vmatpush.msra.mxu0 0.0
    %1010 = vmatpush.msra.mxu0 0.0
    %1011 = vmatpush.msra.mxu0 0.0
    %1012 = vmatpush.msra.mxu0 0.0
    %1013 = vmatpush.msra.mxu0 0.0
    %1014 = vmatpush.msra.mxu0 0.0
    %1015 = vmatpush.msra.mxu0 0.0
    %1016 = vmatpush.msra.mxu0 0.0
    %1017 = vmatpush.msra.mxu0 0.0
    %v1018 = vand.u32 %v59, 4294901760
    %v1019 = vsub.f32 %v59, %v1018
    %v1020 = vand.u32 %v1019, 4294901760
    %1021 = vmatpush.msra.mxu0 %v1020
    %v1022 = vand.u32 %v58, 4294901760
    %v1023 = vsub.f32 %v58, %v1022
    %v1024 = vand.u32 %v1023, 4294901760
    %1025 = vmatpush.msra.mxu0 %v1024
    %v1026 = vand.u32 %v893, 4294901760
    %1027 = vmatmul.f32.gmra.mxu0 %v1026
    %v1028 = vpop.f32.mrf.mxu0
    %v1029 = vadd.f32 %v1002, %v1028
    %1030 = vdwg.mxu0
    %1031 = vmatpush.msra.mxu0 0.0
    %1032 = vmatpush.msra.mxu0 0.0
    %1033 = vmatpush.msra.mxu0 0.0
    %1034 = vmatpush.msra.mxu0 0.0
    %1035 = vmatpush.msra.mxu0 0.0
    %1036 = vmatpush.msra.mxu0 0.0
    %1037 = vmatpush.msra.mxu0 0.0
    %1038 = vmatpush.msra.mxu0 0.0
    %1039 = vmatpush.msra.mxu0 0.0
    %1040 = vmatpush.msra.mxu0 0.0
    %1041 = vmatpush.msra.mxu0 0.0
    %1042 = vmatpush.msra.mxu0 0.0
    %1043 = vmatpush.msra.mxu0 0.0
    %1044 = vmatpush.msra.mxu0 0.0
    %v1045 = vand.u32 %v59, 4294901760
    %1046 = vmatpush.msra.mxu0 %v1045
    %v1047 = vand.u32 %v58, 4294901760
    %1048 = vmatpush.msra.mxu0 %v1047
    %v1049 = vand.u32 %v893, 4294901760
    %1050 = vmatmul.f32.gmra.mxu0 %v1049
    %v1051 = vpop.f32.mrf.mxu0
    %v1052 = vadd.f32 %v1029, %v1051
    %1053 = vdwg.mxu0
    %s1054 = scalar_lea.vmem [#allocation2], 5
    %1055 = vst [vmem:[%s1054] sm:$0x1] %v1052
    %s1056 = scalar_lea.vmem [#allocation4], 6
    %v1057 = vld [vmem:[%s1056] sm:$0x1]
    %v1059 = vsel %vm62, %v1057, 0
    %1061 = vmatpush.msra.mxu0 0.0
    %1062 = vmatpush.msra.mxu0 0.0
    %1063 = vmatpush.msra.mxu0 0.0
    %1064 = vmatpush.msra.mxu0 0.0
    %1065 = vmatpush.msra.mxu0 0.0
    %1066 = vmatpush.msra.mxu0 0.0
    %1067 = vmatpush.msra.mxu0 0.0
    %1068 = vmatpush.msra.mxu0 0.0
    %1069 = vmatpush.msra.mxu0 0.0
    %1070 = vmatpush.msra.mxu0 0.0
    %1071 = vmatpush.msra.mxu0 0.0
    %1072 = vmatpush.msra.mxu0 0.0
    %1073 = vmatpush.msra.mxu0 0.0
    %1074 = vmatpush.msra.mxu0 0.0
    %v1075 = vand.u32 %v59, 4294901760
    %1076 = vmatpush.msra.mxu0 %v1075
    %v1077 = vand.u32 %v58, 4294901760
    %1078 = vmatpush.msra.mxu0 %v1077
    %v1079 = vand.u32 %v1059, 4294901760
    %v1080 = vsub.f32 %v1059, %v1079
    %v1081 = vand.u32 %v1080, 4294901760
    %v1082 = vsub.f32 %v1080, %v1081
    %v1083 = vand.u32 %v1082, 4294901760
    %1084 = vmatmul.f32.gmra.mxu0 %v1083
    %v1085 = vpop.f32.mrf.mxu0
    %v1086 = vadd.f32 %v60, %v1085
    %1087 = vdwg.mxu0
    %1088 = vmatpush.msra.mxu0 0.0
    %1089 = vmatpush.msra.mxu0 0.0
    %1090 = vmatpush.msra.mxu0 0.0
    %1091 = vmatpush.msra.mxu0 0.0
    %1092 = vmatpush.msra.mxu0 0.0
    %1093 = vmatpush.msra.mxu0 0.0
    %1094 = vmatpush.msra.mxu0 0.0
    %1095 = vmatpush.msra.mxu0 0.0
    %1096 = vmatpush.msra.mxu0 0.0
    %1097 = vmatpush.msra.mxu0 0.0
    %1098 = vmatpush.msra.mxu0 0.0
    %1099 = vmatpush.msra.mxu0 0.0
    %1100 = vmatpush.msra.mxu0 0.0
    %1101 = vmatpush.msra.mxu0 0.0
    %v1102 = vand.u32 %v59, 4294901760
    %v1103 = vsub.f32 %v59, %v1102
    %v1104 = vand.u32 %v1103, 4294901760
    %v1105 = vsub.f32 %v1103, %v1104
    %v1106 = vand.u32 %v1105, 4294901760
    %1107 = vmatpush.msra.mxu0 %v1106
    %v1108 = vand.u32 %v58, 4294901760
    %v1109 = vsub.f32 %v58, %v1108
    %v1110 = vand.u32 %v1109, 4294901760
    %v1111 = vsub.f32 %v1109, %v1110
    %v1112 = vand.u32 %v1111, 4294901760
    %1113 = vmatpush.msra.mxu0 %v1112
    %v1114 = vand.u32 %v1059, 4294901760
    %1115 = vmatmul.f32.gmra.mxu0 %v1114
    %v1116 = vpop.f32.mrf.mxu0
    %v1117 = vadd.f32 %v1086, %v1116
    %1118 = vdwg.mxu0
    %1119 = vmatpush.msra.mxu0 0.0
    %1120 = vmatpush.msra.mxu0 0.0
    %1121 = vmatpush.msra.mxu0 0.0
    %1122 = vmatpush.msra.mxu0 0.0
    %1123 = vmatpush.msra.mxu0 0.0
    %1124 = vmatpush.msra.mxu0 0.0
    %1125 = vmatpush.msra.mxu0 0.0
    %1126 = vmatpush.msra.mxu0 0.0
    %1127 = vmatpush.msra.mxu0 0.0
    %1128 = vmatpush.msra.mxu0 0.0
    %1129 = vmatpush.msra.mxu0 0.0
    %1130 = vmatpush.msra.mxu0 0.0
    %1131 = vmatpush.msra.mxu0 0.0
    %1132 = vmatpush.msra.mxu0 0.0
    %v1133 = vand.u32 %v59, 4294901760
    %v1134 = vsub.f32 %v59, %v1133
    %1135 = vmatpush.msra.mxu0 %v1134
    %v1136 = vand.u32 %v58, 4294901760
    %v1137 = vsub.f32 %v58, %v1136
    %1138 = vmatpush.msra.mxu0 %v1137
    %v1139 = vand.u32 %v1059, 4294901760
    %v1140 = vsub.f32 %v1059, %v1139
    %1141 = vmatmul.f32.gmra.mxu0 %v1140
    %v1142 = vpop.f32.mrf.mxu0
    %v1143 = vadd.f32 %v1117, %v1142
    %1144 = vdwg.mxu0
    %1145 = vmatpush.msra.mxu0 0.0
    %1146 = vmatpush.msra.mxu0 0.0
    %1147 = vmatpush.msra.mxu0 0.0
    %1148 = vmatpush.msra.mxu0 0.0
    %1149 = vmatpush.msra.mxu0 0.0
    %1150 = vmatpush.msra.mxu0 0.0
    %1151 = vmatpush.msra.mxu0 0.0
    %1152 = vmatpush.msra.mxu0 0.0
    %1153 = vmatpush.msra.mxu0 0.0
    %1154 = vmatpush.msra.mxu0 0.0
    %1155 = vmatpush.msra.mxu0 0.0
    %1156 = vmatpush.msra.mxu0 0.0
    %1157 = vmatpush.msra.mxu0 0.0
    %1158 = vmatpush.msra.mxu0 0.0
    %v1159 = vand.u32 %v59, 4294901760
    %1160 = vmatpush.msra.mxu0 %v1159
    %v1161 = vand.u32 %v58, 4294901760
    %1162 = vmatpush.msra.mxu0 %v1161
    %v1163 = vand.u32 %v1059, 4294901760
    %v1164 = vsub.f32 %v1059, %v1163
    %v1165 = vand.u32 %v1164, 4294901760
    %1166 = vmatmul.f32.gmra.mxu0 %v1165
    %v1167 = vpop.f32.mrf.mxu0
    %v1168 = vadd.f32 %v1143, %v1167
    %1169 = vdwg.mxu0
    %1170 = vmatpush.msra.mxu0 0.0
    %1171 = vmatpush.msra.mxu0 0.0
    %1172 = vmatpush.msra.mxu0 0.0
    %1173 = vmatpush.msra.mxu0 0.0
    %1174 = vmatpush.msra.mxu0 0.0
    %1175 = vmatpush.msra.mxu0 0.0
    %1176 = vmatpush.msra.mxu0 0.0
    %1177 = vmatpush.msra.mxu0 0.0
    %1178 = vmatpush.msra.mxu0 0.0
    %1179 = vmatpush.msra.mxu0 0.0
    %1180 = vmatpush.msra.mxu0 0.0
    %1181 = vmatpush.msra.mxu0 0.0
    %1182 = vmatpush.msra.mxu0 0.0
    %1183 = vmatpush.msra.mxu0 0.0
    %v1184 = vand.u32 %v59, 4294901760
    %v1185 = vsub.f32 %v59, %v1184
    %v1186 = vand.u32 %v1185, 4294901760
    %1187 = vmatpush.msra.mxu0 %v1186
    %v1188 = vand.u32 %v58, 4294901760
    %v1189 = vsub.f32 %v58, %v1188
    %v1190 = vand.u32 %v1189, 4294901760
    %1191 = vmatpush.msra.mxu0 %v1190
    %v1192 = vand.u32 %v1059, 4294901760
    %1193 = vmatmul.f32.gmra.mxu0 %v1192
    %v1194 = vpop.f32.mrf.mxu0
    %v1195 = vadd.f32 %v1168, %v1194
    %1196 = vdwg.mxu0
    %1197 = vmatpush.msra.mxu0 0.0
    %1198 = vmatpush.msra.mxu0 0.0
    %1199 = vmatpush.msra.mxu0 0.0
    %1200 = vmatpush.msra.mxu0 0.0
    %1201 = vmatpush.msra.mxu0 0.0
    %1202 = vmatpush.msra.mxu0 0.0
    %1203 = vmatpush.msra.mxu0 0.0
    %1204 = vmatpush.msra.mxu0 0.0
    %1205 = vmatpush.msra.mxu0 0.0
    %1206 = vmatpush.msra.mxu0 0.0
    %1207 = vmatpush.msra.mxu0 0.0
    %1208 = vmatpush.msra.mxu0 0.0
    %1209 = vmatpush.msra.mxu0 0.0
    %1210 = vmatpush.msra.mxu0 0.0
    %v1211 = vand.u32 %v59, 4294901760
    %1212 = vmatpush.msra.mxu0 %v1211
    %v1213 = vand.u32 %v58, 4294901760
    %1214 = vmatpush.msra.mxu0 %v1213
    %v1215 = vand.u32 %v1059, 4294901760
    %1216 = vmatmul.f32.gmra.mxu0 %v1215
    %v1217 = vpop.f32.mrf.mxu0
    %v1218 = vadd.f32 %v1195, %v1217
    %1219 = vdwg.mxu0
    %s1220 = scalar_lea.vmem [#allocation2], 6
    %1221 = vst [vmem:[%s1220] sm:$0x1] %v1218
    %s1222 = scalar_lea.vmem [#allocation4], 7
    %v1223 = vld [vmem:[%s1222] sm:$0x1]
    %v1225 = vsel %vm62, %v1223, 0
    %1227 = vmatpush.msra.mxu0 0.0
    %1228 = vmatpush.msra.mxu0 0.0
    %1229 = vmatpush.msra.mxu0 0.0
    %1230 = vmatpush.msra.mxu0 0.0
    %1231 = vmatpush.msra.mxu0 0.0
    %1232 = vmatpush.msra.mxu0 0.0
    %1233 = vmatpush.msra.mxu0 0.0
    %1234 = vmatpush.msra.mxu0 0.0
    %1235 = vmatpush.msra.mxu0 0.0
    %1236 = vmatpush.msra.mxu0 0.0
    %1237 = vmatpush.msra.mxu0 0.0
    %1238 = vmatpush.msra.mxu0 0.0
    %1239 = vmatpush.msra.mxu0 0.0
    %1240 = vmatpush.msra.mxu0 0.0
    %v1241 = vand.u32 %v59, 4294901760
    %1242 = vmatpush.msra.mxu0 %v1241
    %v1243 = vand.u32 %v58, 4294901760
    %1244 = vmatpush.msra.mxu0 %v1243
    %v1245 = vand.u32 %v1225, 4294901760
    %v1246 = vsub.f32 %v1225, %v1245
    %v1247 = vand.u32 %v1246, 4294901760
    %v1248 = vsub.f32 %v1246, %v1247
    %v1249 = vand.u32 %v1248, 4294901760
    %1250 = vmatmul.f32.gmra.mxu0 %v1249
    %v1251 = vpop.f32.mrf.mxu0
    %v1252 = vadd.f32 %v60, %v1251
    %1253 = vdwg.mxu0
    %1254 = vmatpush.msra.mxu0 0.0
    %1255 = vmatpush.msra.mxu0 0.0
    %1256 = vmatpush.msra.mxu0 0.0
    %1257 = vmatpush.msra.mxu0 0.0
    %1258 = vmatpush.msra.mxu0 0.0
    %1259 = vmatpush.msra.mxu0 0.0
    %1260 = vmatpush.msra.mxu0 0.0
    %1261 = vmatpush.msra.mxu0 0.0
    %1262 = vmatpush.msra.mxu0 0.0
    %1263 = vmatpush.msra.mxu0 0.0
    %1264 = vmatpush.msra.mxu0 0.0
    %1265 = vmatpush.msra.mxu0 0.0
    %1266 = vmatpush.msra.mxu0 0.0
    %1267 = vmatpush.msra.mxu0 0.0
    %v1268 = vand.u32 %v59, 4294901760
    %v1269 = vsub.f32 %v59, %v1268
    %v1270 = vand.u32 %v1269, 4294901760
    %v1271 = vsub.f32 %v1269, %v1270
    %v1272 = vand.u32 %v1271, 4294901760
    %1273 = vmatpush.msra.mxu0 %v1272
    %v1274 = vand.u32 %v58, 4294901760
    %v1275 = vsub.f32 %v58, %v1274
    %v1276 = vand.u32 %v1275, 4294901760
    %v1277 = vsub.f32 %v1275, %v1276
    %v1278 = vand.u32 %v1277, 4294901760
    %1279 = vmatpush.msra.mxu0 %v1278
    %v1280 = vand.u32 %v1225, 4294901760
    %1281 = vmatmul.f32.gmra.mxu0 %v1280
    %v1282 = vpop.f32.mrf.mxu0
    %v1283 = vadd.f32 %v1252, %v1282
    %1284 = vdwg.mxu0
    %1285 = vmatpush.msra.mxu0 0.0
    %1286 = vmatpush.msra.mxu0 0.0
    %1287 = vmatpush.msra.mxu0 0.0
    %1288 = vmatpush.msra.mxu0 0.0
    %1289 = vmatpush.msra.mxu0 0.0
    %1290 = vmatpush.msra.mxu0 0.0
    %1291 = vmatpush.msra.mxu0 0.0
    %1292 = vmatpush.msra.mxu0 0.0
    %1293 = vmatpush.msra.mxu0 0.0
    %1294 = vmatpush.msra.mxu0 0.0
    %1295 = vmatpush.msra.mxu0 0.0
    %1296 = vmatpush.msra.mxu0 0.0
    %1297 = vmatpush.msra.mxu0 0.0
    %1298 = vmatpush.msra.mxu0 0.0
    %v1299 = vand.u32 %v59, 4294901760
    %v1300 = vsub.f32 %v59, %v1299
    %1301 = vmatpush.msra.mxu0 %v1300
    %v1302 = vand.u32 %v58, 4294901760
    %v1303 = vsub.f32 %v58, %v1302
    %1304 = vmatpush.msra.mxu0 %v1303
    %v1305 = vand.u32 %v1225, 4294901760
    %v1306 = vsub.f32 %v1225, %v1305
    %1307 = vmatmul.f32.gmra.mxu0 %v1306
    %v1308 = vpop.f32.mrf.mxu0
    %v1309 = vadd.f32 %v1283, %v1308
    %1310 = vdwg.mxu0
    %1311 = vmatpush.msra.mxu0 0.0
    %1312 = vmatpush.msra.mxu0 0.0
    %1313 = vmatpush.msra.mxu0 0.0
    %1314 = vmatpush.msra.mxu0 0.0
    %1315 = vmatpush.msra.mxu0 0.0
    %1316 = vmatpush.msra.mxu0 0.0
    %1317 = vmatpush.msra.mxu0 0.0
    %1318 = vmatpush.msra.mxu0 0.0
    %1319 = vmatpush.msra.mxu0 0.0
    %1320 = vmatpush.msra.mxu0 0.0
    %1321 = vmatpush.msra.mxu0 0.0
    %1322 = vmatpush.msra.mxu0 0.0
    %1323 = vmatpush.msra.mxu0 0.0
    %1324 = vmatpush.msra.mxu0 0.0
    %v1325 = vand.u32 %v59, 4294901760
    %1326 = vmatpush.msra.mxu0 %v1325
    %v1327 = vand.u32 %v58, 4294901760
    %1328 = vmatpush.msra.mxu0 %v1327
    %v1329 = vand.u32 %v1225, 4294901760
    %v1330 = vsub.f32 %v1225, %v1329
    %v1331 = vand.u32 %v1330, 4294901760
    %1332 = vmatmul.f32.gmra.mxu0 %v1331
    %v1333 = vpop.f32.mrf.mxu0
    %v1334 = vadd.f32 %v1309, %v1333
    %1335 = vdwg.mxu0
    %1336 = vmatpush.msra.mxu0 0.0
    %1337 = vmatpush.msra.mxu0 0.0
    %1338 = vmatpush.msra.mxu0 0.0
    %1339 = vmatpush.msra.mxu0 0.0
    %1340 = vmatpush.msra.mxu0 0.0
    %1341 = vmatpush.msra.mxu0 0.0
    %1342 = vmatpush.msra.mxu0 0.0
    %1343 = vmatpush.msra.mxu0 0.0
    %1344 = vmatpush.msra.mxu0 0.0
    %1345 = vmatpush.msra.mxu0 0.0
    %1346 = vmatpush.msra.mxu0 0.0
    %1347 = vmatpush.msra.mxu0 0.0
    %1348 = vmatpush.msra.mxu0 0.0
    %1349 = vmatpush.msra.mxu0 0.0
    %v1350 = vand.u32 %v59, 4294901760
    %v1351 = vsub.f32 %v59, %v1350
    %v1352 = vand.u32 %v1351, 4294901760
    %1353 = vmatpush.msra.mxu0 %v1352
    %v1354 = vand.u32 %v58, 4294901760
    %v1355 = vsub.f32 %v58, %v1354
    %v1356 = vand.u32 %v1355, 4294901760
    %1357 = vmatpush.msra.mxu0 %v1356
    %v1358 = vand.u32 %v1225, 4294901760
    %1359 = vmatmul.f32.gmra.mxu0 %v1358
    %v1360 = vpop.f32.mrf.mxu0
    %v1361 = vadd.f32 %v1334, %v1360
    %1362 = vdwg.mxu0
    %1363 = vmatpush.msra.mxu0 0.0
    %1364 = vmatpush.msra.mxu0 0.0
    %1365 = vmatpush.msra.mxu0 0.0
    %1366 = vmatpush.msra.mxu0 0.0
    %1367 = vmatpush.msra.mxu0 0.0
    %1368 = vmatpush.msra.mxu0 0.0
    %1369 = vmatpush.msra.mxu0 0.0
    %1370 = vmatpush.msra.mxu0 0.0
    %1371 = vmatpush.msra.mxu0 0.0
    %1372 = vmatpush.msra.mxu0 0.0
    %1373 = vmatpush.msra.mxu0 0.0
    %1374 = vmatpush.msra.mxu0 0.0
    %1375 = vmatpush.msra.mxu0 0.0
    %1376 = vmatpush.msra.mxu0 0.0
    %v1377 = vand.u32 %v59, 4294901760
    %1378 = vmatpush.msra.mxu0 %v1377
    %v1379 = vand.u32 %v58, 4294901760
    %1380 = vmatpush.msra.mxu0 %v1379
    %v1381 = vand.u32 %v1225, 4294901760
    %1382 = vmatmul.f32.gmra.mxu0 %v1381
    %v1383 = vpop.f32.mrf.mxu0
    %v1384 = vadd.f32 %v1361, %v1383
    %1385 = vdwg.mxu0
    %s1386 = scalar_lea.vmem [#allocation2], 7
    %1387 = vst [vmem:[%s1386] sm:$0x1] %v1384
    %v1388 = vld [vmem:[%s2] sm:$0xff]
    %v1389 = vld [vmem:[%s2 + $0x8] sm:$0xff]
    %v1390 = vld [vmem:[%s2 + $0x10] sm:$0xff]
    %v1391 = vld [vmem:[%s2 + $0x18] sm:$0xff]
    %v1392 = vld [vmem:[%s2 + $0x20] sm:$0xff]
    %v1393 = vld [vmem:[%s2 + $0x28] sm:$0xff]
    %v1394 = vld [vmem:[%s2 + $0x30] sm:$0xff]
    %v1395 = vld [vmem:[%s2 + $0x38] sm:$0xff]
    %v1396 = vld [vmem:[%s2 + $0x40] sm:$0xff]
    %v1397 = vld [vmem:[%s2 + $0x48] sm:$0xff]
    %v1398 = vld [vmem:[%s2 + $0x50] sm:$0xff]
    %v1399 = vld [vmem:[%s2 + $0x58] sm:$0xff]
    %v1400 = vld [vmem:[%s2 + $0x60] sm:$0xff]
    %v1401 = vld [vmem:[%s2 + $0x68] sm:$0xff]
    %v1402 = vld [vmem:[%s2 + $0x70] sm:$0xff]
    %v1403 = vld [vmem:[%s2 + $0x78] sm:$0xff]
    %v1404 = vld [vmem:[#allocation2] sm:$0x1]
    %v1405 = vand.u32 %v1403, 4294901760
    %1406 = vmatpush.msra.mxu0 %v1405
    %v1407 = vand.u32 %v1402, 4294901760
    %1408 = vmatpush.msra.mxu0 %v1407
    %v1409 = vand.u32 %v1401, 4294901760
    %1410 = vmatpush.msra.mxu0 %v1409
    %v1411 = vand.u32 %v1400, 4294901760
    %1412 = vmatpush.msra.mxu0 %v1411
    %v1413 = vand.u32 %v1399, 4294901760
    %1414 = vmatpush.msra.mxu0 %v1413
    %v1415 = vand.u32 %v1398, 4294901760
    %1416 = vmatpush.msra.mxu0 %v1415
    %v1417 = vand.u32 %v1397, 4294901760
    %1418 = vmatpush.msra.mxu0 %v1417
    %v1419 = vand.u32 %v1396, 4294901760
    %1420 = vmatpush.msra.mxu0 %v1419
    %v1421 = vand.u32 %v1395, 4294901760
    %1422 = vmatpush.msra.mxu0 %v1421
    %v1423 = vand.u32 %v1394, 4294901760
    %1424 = vmatpush.msra.mxu0 %v1423
    %v1425 = vand.u32 %v1393, 4294901760
    %1426 = vmatpush.msra.mxu0 %v1425
    %v1427 = vand.u32 %v1392, 4294901760
    %1428 = vmatpush.msra.mxu0 %v1427
    %v1429 = vand.u32 %v1391, 4294901760
    %1430 = vmatpush.msra.mxu0 %v1429
    %v1431 = vand.u32 %v1390, 4294901760
    %1432 = vmatpush.msra.mxu0 %v1431
    %v1433 = vand.u32 %v1389, 4294901760
    %1434 = vmatpush.msra.mxu0 %v1433
    %v1435 = vand.u32 %v1388, 4294901760
    %1436 = vmatpush.msra.mxu0 %v1435
    %1437 = vmatmul.f32.gmra.mxu0 0.0
    %v1438 = vpop.f32.mrf.mxu0
    %v1439 = vadd.f32 0.0, %v1438
    %1440 = vdwg.mxu0
    %v1441 = vand.u32 %v1403, 4294901760
    %v1442 = vsub.f32 %v1403, %v1441
    %v1443 = vand.u32 %v1442, 4294901760
    %v1444 = vsub.f32 %v1442, %v1443
    %v1445 = vand.u32 %v1444, 4294901760
    %1446 = vmatpush.msra.mxu0 %v1445
    %v1447 = vand.u32 %v1402, 4294901760
    %v1448 = vsub.f32 %v1402, %v1447
    %v1449 = vand.u32 %v1448, 4294901760
    %v1450 = vsub.f32 %v1448, %v1449
    %v1451 = vand.u32 %v1450, 4294901760
    %1452 = vmatpush.msra.mxu0 %v1451
    %v1453 = vand.u32 %v1401, 4294901760
    %v1454 = vsub.f32 %v1401, %v1453
    %v1455 = vand.u32 %v1454, 4294901760
    %v1456 = vsub.f32 %v1454, %v1455
    %v1457 = vand.u32 %v1456, 4294901760
    %1458 = vmatpush.msra.mxu0 %v1457
    %v1459 = vand.u32 %v1400, 4294901760
    %v1460 = vsub.f32 %v1400, %v1459
    %v1461 = vand.u32 %v1460, 4294901760
    %v1462 = vsub.f32 %v1460, %v1461
    %v1463 = vand.u32 %v1462, 4294901760
    %1464 = vmatpush.msra.mxu0 %v1463
    %v1465 = vand.u32 %v1399, 4294901760
    %v1466 = vsub.f32 %v1399, %v1465
    %v1467 = vand.u32 %v1466, 4294901760
    %v1468 = vsub.f32 %v1466, %v1467
    %v1469 = vand.u32 %v1468, 4294901760
    %1470 = vmatpush.msra.mxu0 %v1469
    %v1471 = vand.u32 %v1398, 4294901760
    %v1472 = vsub.f32 %v1398, %v1471
    %v1473 = vand.u32 %v1472, 4294901760
    %v1474 = vsub.f32 %v1472, %v1473
    %v1475 = vand.u32 %v1474, 4294901760
    %1476 = vmatpush.msra.mxu0 %v1475
    %v1477 = vand.u32 %v1397, 4294901760
    %v1478 = vsub.f32 %v1397, %v1477
    %v1479 = vand.u32 %v1478, 4294901760
    %v1480 = vsub.f32 %v1478, %v1479
    %v1481 = vand.u32 %v1480, 4294901760
    %1482 = vmatpush.msra.mxu0 %v1481
    %v1483 = vand.u32 %v1396, 4294901760
    %v1484 = vsub.f32 %v1396, %v1483
    %v1485 = vand.u32 %v1484, 4294901760
    %v1486 = vsub.f32 %v1484, %v1485
    %v1487 = vand.u32 %v1486, 4294901760
    %1488 = vmatpush.msra.mxu0 %v1487
    %v1489 = vand.u32 %v1395, 4294901760
    %v1490 = vsub.f32 %v1395, %v1489
    %v1491 = vand.u32 %v1490, 4294901760
    %v1492 = vsub.f32 %v1490, %v1491
    %v1493 = vand.u32 %v1492, 4294901760
    %1494 = vmatpush.msra.mxu0 %v1493
    %v1495 = vand.u32 %v1394, 4294901760
    %v1496 = vsub.f32 %v1394, %v1495
    %v1497 = vand.u32 %v1496, 4294901760
    %v1498 = vsub.f32 %v1496, %v1497
    %v1499 = vand.u32 %v1498, 4294901760
    %1500 = vmatpush.msra.mxu0 %v1499
    %v1501 = vand.u32 %v1393, 4294901760
    %v1502 = vsub.f32 %v1393, %v1501
    %v1503 = vand.u32 %v1502, 4294901760
    %v1504 = vsub.f32 %v1502, %v1503
    %v1505 = vand.u32 %v1504, 4294901760
    %1506 = vmatpush.msra.mxu0 %v1505
    %v1507 = vand.u32 %v1392, 4294901760
    %v1508 = vsub.f32 %v1392, %v1507
    %v1509 = vand.u32 %v1508, 4294901760
    %v1510 = vsub.f32 %v1508, %v1509
    %v1511 = vand.u32 %v1510, 4294901760
    %1512 = vmatpush.msra.mxu0 %v1511
    %v1513 = vand.u32 %v1391, 4294901760
    %v1514 = vsub.f32 %v1391, %v1513
    %v1515 = vand.u32 %v1514, 4294901760
    %v1516 = vsub.f32 %v1514, %v1515
    %v1517 = vand.u32 %v1516, 4294901760
    %1518 = vmatpush.msra.mxu0 %v1517
    %v1519 = vand.u32 %v1390, 4294901760
    %v1520 = vsub.f32 %v1390, %v1519
    %v1521 = vand.u32 %v1520, 4294901760
    %v1522 = vsub.f32 %v1520, %v1521
    %v1523 = vand.u32 %v1522, 4294901760
    %1524 = vmatpush.msra.mxu0 %v1523
    %v1525 = vand.u32 %v1389, 4294901760
    %v1526 = vsub.f32 %v1389, %v1525
    %v1527 = vand.u32 %v1526, 4294901760
    %v1528 = vsub.f32 %v1526, %v1527
    %v1529 = vand.u32 %v1528, 4294901760
    %1530 = vmatpush.msra.mxu0 %v1529
    %v1531 = vand.u32 %v1388, 4294901760
    %v1532 = vsub.f32 %v1388, %v1531
    %v1533 = vand.u32 %v1532, 4294901760
    %v1534 = vsub.f32 %v1532, %v1533
    %v1535 = vand.u32 %v1534, 4294901760
    %1536 = vmatpush.msra.mxu0 %v1535
    %1537 = vmatmul.f32.gmra.mxu0 0.0
    %v1538 = vpop.f32.mrf.mxu0
    %v1539 = vadd.f32 %v1439, %v1538
    %1540 = vdwg.mxu0
    %v1541 = vand.u32 %v1403, 4294901760
    %v1542 = vsub.f32 %v1403, %v1541
    %1543 = vmatpush.msra.mxu0 %v1542
    %v1544 = vand.u32 %v1402, 4294901760
    %v1545 = vsub.f32 %v1402, %v1544
    %1546 = vmatpush.msra.mxu0 %v1545
    %v1547 = vand.u32 %v1401, 4294901760
    %v1548 = vsub.f32 %v1401, %v1547
    %1549 = vmatpush.msra.mxu0 %v1548
    %v1550 = vand.u32 %v1400, 4294901760
    %v1551 = vsub.f32 %v1400, %v1550
    %1552 = vmatpush.msra.mxu0 %v1551
    %v1553 = vand.u32 %v1399, 4294901760
    %v1554 = vsub.f32 %v1399, %v1553
    %1555 = vmatpush.msra.mxu0 %v1554
    %v1556 = vand.u32 %v1398, 4294901760
    %v1557 = vsub.f32 %v1398, %v1556
    %1558 = vmatpush.msra.mxu0 %v1557
    %v1559 = vand.u32 %v1397, 4294901760
    %v1560 = vsub.f32 %v1397, %v1559
    %1561 = vmatpush.msra.mxu0 %v1560
    %v1562 = vand.u32 %v1396, 4294901760
    %v1563 = vsub.f32 %v1396, %v1562
    %1564 = vmatpush.msra.mxu0 %v1563
    %v1565 = vand.u32 %v1395, 4294901760
    %v1566 = vsub.f32 %v1395, %v1565
    %1567 = vmatpush.msra.mxu0 %v1566
    %v1568 = vand.u32 %v1394, 4294901760
    %v1569 = vsub.f32 %v1394, %v1568
    %1570 = vmatpush.msra.mxu0 %v1569
    %v1571 = vand.u32 %v1393, 4294901760
    %v1572 = vsub.f32 %v1393, %v1571
    %1573 = vmatpush.msra.mxu0 %v1572
    %v1574 = vand.u32 %v1392, 4294901760
    %v1575 = vsub.f32 %v1392, %v1574
    %1576 = vmatpush.msra.mxu0 %v1575
    %v1577 = vand.u32 %v1391, 4294901760
    %v1578 = vsub.f32 %v1391, %v1577
    %1579 = vmatpush.msra.mxu0 %v1578
    %v1580 = vand.u32 %v1390, 4294901760
    %v1581 = vsub.f32 %v1390, %v1580
    %1582 = vmatpush.msra.mxu0 %v1581
    %v1583 = vand.u32 %v1389, 4294901760
    %v1584 = vsub.f32 %v1389, %v1583
    %1585 = vmatpush.msra.mxu0 %v1584
    %v1586 = vand.u32 %v1388, 4294901760
    %v1587 = vsub.f32 %v1388, %v1586
    %1588 = vmatpush.msra.mxu0 %v1587
    %1589 = vmatmul.f32.gmra.mxu0 0.0
    %v1590 = vpop.f32.mrf.mxu0
    %v1591 = vadd.f32 %v1539, %v1590
    %1592 = vdwg.mxu0
    %v1593 = vand.u32 %v1403, 4294901760
    %1594 = vmatpush.msra.mxu0 %v1593
    %v1595 = vand.u32 %v1402, 4294901760
    %1596 = vmatpush.msra.mxu0 %v1595
    %v1597 = vand.u32 %v1401, 4294901760
    %1598 = vmatpush.msra.mxu0 %v1597
    %v1599 = vand.u32 %v1400, 4294901760
    %1600 = vmatpush.msra.mxu0 %v1599
    %v1601 = vand.u32 %v1399, 4294901760
    %1602 = vmatpush.msra.mxu0 %v1601
    %v1603 = vand.u32 %v1398, 4294901760
    %1604 = vmatpush.msra.mxu0 %v1603
    %v1605 = vand.u32 %v1397, 4294901760
    %1606 = vmatpush.msra.mxu0 %v1605
    %v1607 = vand.u32 %v1396, 4294901760
    %1608 = vmatpush.msra.mxu0 %v1607
    %v1609 = vand.u32 %v1395, 4294901760
    %1610 = vmatpush.msra.mxu0 %v1609
    %v1611 = vand.u32 %v1394, 4294901760
    %1612 = vmatpush.msra.mxu0 %v1611
    %v1613 = vand.u32 %v1393, 4294901760
    %1614 = vmatpush.msra.mxu0 %v1613
    %v1615 = vand.u32 %v1392, 4294901760
    %1616 = vmatpush.msra.mxu0 %v1615
    %v1617 = vand.u32 %v1391, 4294901760
    %1618 = vmatpush.msra.mxu0 %v1617
    %v1619 = vand.u32 %v1390, 4294901760
    %1620 = vmatpush.msra.mxu0 %v1619
    %v1621 = vand.u32 %v1389, 4294901760
    %1622 = vmatpush.msra.mxu0 %v1621
    %v1623 = vand.u32 %v1388, 4294901760
    %1624 = vmatpush.msra.mxu0 %v1623
    %1625 = vmatmul.f32.gmra.mxu0 0.0
    %v1626 = vpop.f32.mrf.mxu0
    %v1627 = vadd.f32 %v1591, %v1626
    %1628 = vdwg.mxu0
    %v1629 = vand.u32 %v1403, 4294901760
    %v1630 = vsub.f32 %v1403, %v1629
    %v1631 = vand.u32 %v1630, 4294901760
    %1632 = vmatpush.msra.mxu0 %v1631
    %v1633 = vand.u32 %v1402, 4294901760
    %v1634 = vsub.f32 %v1402, %v1633
    %v1635 = vand.u32 %v1634, 4294901760
    %1636 = vmatpush.msra.mxu0 %v1635
    %v1637 = vand.u32 %v1401, 4294901760
    %v1638 = vsub.f32 %v1401, %v1637
    %v1639 = vand.u32 %v1638, 4294901760
    %1640 = vmatpush.msra.mxu0 %v1639
    %v1641 = vand.u32 %v1400, 4294901760
    %v1642 = vsub.f32 %v1400, %v1641
    %v1643 = vand.u32 %v1642, 4294901760
    %1644 = vmatpush.msra.mxu0 %v1643
    %v1645 = vand.u32 %v1399, 4294901760
    %v1646 = vsub.f32 %v1399, %v1645
    %v1647 = vand.u32 %v1646, 4294901760
    %1648 = vmatpush.msra.mxu0 %v1647
    %v1649 = vand.u32 %v1398, 4294901760
    %v1650 = vsub.f32 %v1398, %v1649
    %v1651 = vand.u32 %v1650, 4294901760
    %1652 = vmatpush.msra.mxu0 %v1651
    %v1653 = vand.u32 %v1397, 4294901760
    %v1654 = vsub.f32 %v1397, %v1653
    %v1655 = vand.u32 %v1654, 4294901760
    %1656 = vmatpush.msra.mxu0 %v1655
    %v1657 = vand.u32 %v1396, 4294901760
    %v1658 = vsub.f32 %v1396, %v1657
    %v1659 = vand.u32 %v1658, 4294901760
    %1660 = vmatpush.msra.mxu0 %v1659
    %v1661 = vand.u32 %v1395, 4294901760
    %v1662 = vsub.f32 %v1395, %v1661
    %v1663 = vand.u32 %v1662, 4294901760
    %1664 = vmatpush.msra.mxu0 %v1663
    %v1665 = vand.u32 %v1394, 4294901760
    %v1666 = vsub.f32 %v1394, %v1665
    %v1667 = vand.u32 %v1666, 4294901760
    %1668 = vmatpush.msra.mxu0 %v1667
    %v1669 = vand.u32 %v1393, 4294901760
    %v1670 = vsub.f32 %v1393, %v1669
    %v1671 = vand.u32 %v1670, 4294901760
    %1672 = vmatpush.msra.mxu0 %v1671
    %v1673 = vand.u32 %v1392, 4294901760
    %v1674 = vsub.f32 %v1392, %v1673
    %v1675 = vand.u32 %v1674, 4294901760
    %1676 = vmatpush.msra.mxu0 %v1675
    %v1677 = vand.u32 %v1391, 4294901760
    %v1678 = vsub.f32 %v1391, %v1677
    %v1679 = vand.u32 %v1678, 4294901760
    %1680 = vmatpush.msra.mxu0 %v1679
    %v1681 = vand.u32 %v1390, 4294901760
    %v1682 = vsub.f32 %v1390, %v1681
    %v1683 = vand.u32 %v1682, 4294901760
    %1684 = vmatpush.msra.mxu0 %v1683
    %v1685 = vand.u32 %v1389, 4294901760
    %v1686 = vsub.f32 %v1389, %v1685
    %v1687 = vand.u32 %v1686, 4294901760
    %1688 = vmatpush.msra.mxu0 %v1687
    %v1689 = vand.u32 %v1388, 4294901760
    %v1690 = vsub.f32 %v1388, %v1689
    %v1691 = vand.u32 %v1690, 4294901760
    %1692 = vmatpush.msra.mxu0 %v1691
    %1693 = vmatmul.f32.gmra.mxu0 0.0
    %v1694 = vpop.f32.mrf.mxu0
    %v1695 = vadd.f32 %v1627, %v1694
    %1696 = vdwg.mxu0
    %v1697 = vand.u32 %v1403, 4294901760
    %1698 = vmatpush.msra.mxu0 %v1697
    %v1699 = vand.u32 %v1402, 4294901760
    %1700 = vmatpush.msra.mxu0 %v1699
    %v1701 = vand.u32 %v1401, 4294901760
    %1702 = vmatpush.msra.mxu0 %v1701
    %v1703 = vand.u32 %v1400, 4294901760
    %1704 = vmatpush.msra.mxu0 %v1703
    %v1705 = vand.u32 %v1399, 4294901760
    %1706 = vmatpush.msra.mxu0 %v1705
    %v1707 = vand.u32 %v1398, 4294901760
    %1708 = vmatpush.msra.mxu0 %v1707
    %v1709 = vand.u32 %v1397, 4294901760
    %1710 = vmatpush.msra.mxu0 %v1709
    %v1711 = vand.u32 %v1396, 4294901760
    %1712 = vmatpush.msra.mxu0 %v1711
    %v1713 = vand.u32 %v1395, 4294901760
    %1714 = vmatpush.msra.mxu0 %v1713
    %v1715 = vand.u32 %v1394, 4294901760
    %1716 = vmatpush.msra.mxu0 %v1715
    %v1717 = vand.u32 %v1393, 4294901760
    %1718 = vmatpush.msra.mxu0 %v1717
    %v1719 = vand.u32 %v1392, 4294901760
    %1720 = vmatpush.msra.mxu0 %v1719
    %v1721 = vand.u32 %v1391, 4294901760
    %1722 = vmatpush.msra.mxu0 %v1721
    %v1723 = vand.u32 %v1390, 4294901760
    %1724 = vmatpush.msra.mxu0 %v1723
    %v1725 = vand.u32 %v1389, 4294901760
    %1726 = vmatpush.msra.mxu0 %v1725
    %v1727 = vand.u32 %v1388, 4294901760
    %1728 = vmatpush.msra.mxu0 %v1727
    %1729 = vmatmul.f32.gmra.mxu0 0.0
    %v1730 = vpop.f32.mrf.mxu0
    %v1731 = vadd.f32 %v1695, %v1730
    %1732 = vdwg.mxu0
    %v1733 = vadd.f32 %v1404, %v1731
    %v1734 = vtanh.pop %v1733
    %v1735 = vld [vmem:[%s390] sm:$0x1]
    %v1736 = vand.u32 %v1403, 4294901760
    %1737 = vmatpush.msra.mxu0 %v1736
    %v1738 = vand.u32 %v1402, 4294901760
    %1739 = vmatpush.msra.mxu0 %v1738
    %v1740 = vand.u32 %v1401, 4294901760
    %1741 = vmatpush.msra.mxu0 %v1740
    %v1742 = vand.u32 %v1400, 4294901760
    %1743 = vmatpush.msra.mxu0 %v1742
    %v1744 = vand.u32 %v1399, 4294901760
    %1745 = vmatpush.msra.mxu0 %v1744
    %v1746 = vand.u32 %v1398, 4294901760
    %1747 = vmatpush.msra.mxu0 %v1746
    %v1748 = vand.u32 %v1397, 4294901760
    %1749 = vmatpush.msra.mxu0 %v1748
    %v1750 = vand.u32 %v1396, 4294901760
    %1751 = vmatpush.msra.mxu0 %v1750
    %v1752 = vand.u32 %v1395, 4294901760
    %1753 = vmatpush.msra.mxu0 %v1752
    %v1754 = vand.u32 %v1394, 4294901760
    %1755 = vmatpush.msra.mxu0 %v1754
    %v1756 = vand.u32 %v1393, 4294901760
    %1757 = vmatpush.msra.mxu0 %v1756
    %v1758 = vand.u32 %v1392, 4294901760
    %1759 = vmatpush.msra.mxu0 %v1758
    %v1760 = vand.u32 %v1391, 4294901760
    %1761 = vmatpush.msra.mxu0 %v1760
    %v1762 = vand.u32 %v1390, 4294901760
    %1763 = vmatpush.msra.mxu0 %v1762
    %v1764 = vand.u32 %v1389, 4294901760
    %1765 = vmatpush.msra.mxu0 %v1764
    %v1766 = vand.u32 %v1388, 4294901760
    %1767 = vmatpush.msra.mxu0 %v1766
    %v1768 = vand.u32 %v1734, 4294901760
    %v1769 = vsub.f32 %v1734, %v1768
    %v1770 = vand.u32 %v1769, 4294901760
    %v1771 = vsub.f32 %v1769, %v1770
    %v1772 = vand.u32 %v1771, 4294901760
    %1773 = vmatmul.f32.gmra.mxu0 %v1772
    %v1774 = vpop.f32.mrf.mxu0
    %v1775 = vadd.f32 0.0, %v1774
    %1776 = vdwg.mxu0
    %v1777 = vand.u32 %v1403, 4294901760
    %v1778 = vsub.f32 %v1403, %v1777
    %v1779 = vand.u32 %v1778, 4294901760
    %v1780 = vsub.f32 %v1778, %v1779
    %v1781 = vand.u32 %v1780, 4294901760
    %1782 = vmatpush.msra.mxu0 %v1781
    %v1783 = vand.u32 %v1402, 4294901760
    %v1784 = vsub.f32 %v1402, %v1783
    %v1785 = vand.u32 %v1784, 4294901760
    %v1786 = vsub.f32 %v1784, %v1785
    %v1787 = vand.u32 %v1786, 4294901760
    %1788 = vmatpush.msra.mxu0 %v1787
    %v1789 = vand.u32 %v1401, 4294901760
    %v1790 = vsub.f32 %v1401, %v1789
    %v1791 = vand.u32 %v1790, 4294901760
    %v1792 = vsub.f32 %v1790, %v1791
    %v1793 = vand.u32 %v1792, 4294901760
    %1794 = vmatpush.msra.mxu0 %v1793
    %v1795 = vand.u32 %v1400, 4294901760
    %v1796 = vsub.f32 %v1400, %v1795
    %v1797 = vand.u32 %v1796, 4294901760
    %v1798 = vsub.f32 %v1796, %v1797
    %v1799 = vand.u32 %v1798, 4294901760
    %1800 = vmatpush.msra.mxu0 %v1799
    %v1801 = vand.u32 %v1399, 4294901760
    %v1802 = vsub.f32 %v1399, %v1801
    %v1803 = vand.u32 %v1802, 4294901760
    %v1804 = vsub.f32 %v1802, %v1803
    %v1805 = vand.u32 %v1804, 4294901760
    %1806 = vmatpush.msra.mxu0 %v1805
    %v1807 = vand.u32 %v1398, 4294901760
    %v1808 = vsub.f32 %v1398, %v1807
    %v1809 = vand.u32 %v1808, 4294901760
    %v1810 = vsub.f32 %v1808, %v1809
    %v1811 = vand.u32 %v1810, 4294901760
    %1812 = vmatpush.msra.mxu0 %v1811
    %v1813 = vand.u32 %v1397, 4294901760
    %v1814 = vsub.f32 %v1397, %v1813
    %v1815 = vand.u32 %v1814, 4294901760
    %v1816 = vsub.f32 %v1814, %v1815
    %v1817 = vand.u32 %v1816, 4294901760
    %1818 = vmatpush.msra.mxu0 %v1817
    %v1819 = vand.u32 %v1396, 4294901760
    %v1820 = vsub.f32 %v1396, %v1819
    %v1821 = vand.u32 %v1820, 4294901760
    %v1822 = vsub.f32 %v1820, %v1821
    %v1823 = vand.u32 %v1822, 4294901760
    %1824 = vmatpush.msra.mxu0 %v1823
    %v1825 = vand.u32 %v1395, 4294901760
    %v1826 = vsub.f32 %v1395, %v1825
    %v1827 = vand.u32 %v1826, 4294901760
    %v1828 = vsub.f32 %v1826, %v1827
    %v1829 = vand.u32 %v1828, 4294901760
    %1830 = vmatpush.msra.mxu0 %v1829
    %v1831 = vand.u32 %v1394, 4294901760
    %v1832 = vsub.f32 %v1394, %v1831
    %v1833 = vand.u32 %v1832, 4294901760
    %v1834 = vsub.f32 %v1832, %v1833
    %v1835 = vand.u32 %v1834, 4294901760
    %1836 = vmatpush.msra.mxu0 %v1835
    %v1837 = vand.u32 %v1393, 4294901760
    %v1838 = vsub.f32 %v1393, %v1837
    %v1839 = vand.u32 %v1838, 4294901760
    %v1840 = vsub.f32 %v1838, %v1839
    %v1841 = vand.u32 %v1840, 4294901760
    %1842 = vmatpush.msra.mxu0 %v1841
    %v1843 = vand.u32 %v1392, 4294901760
    %v1844 = vsub.f32 %v1392, %v1843
    %v1845 = vand.u32 %v1844, 4294901760
    %v1846 = vsub.f32 %v1844, %v1845
    %v1847 = vand.u32 %v1846, 4294901760
    %1848 = vmatpush.msra.mxu0 %v1847
    %v1849 = vand.u32 %v1391, 4294901760
    %v1850 = vsub.f32 %v1391, %v1849
    %v1851 = vand.u32 %v1850, 4294901760
    %v1852 = vsub.f32 %v1850, %v1851
    %v1853 = vand.u32 %v1852, 4294901760
    %1854 = vmatpush.msra.mxu0 %v1853
    %v1855 = vand.u32 %v1390, 4294901760
    %v1856 = vsub.f32 %v1390, %v1855
    %v1857 = vand.u32 %v1856, 4294901760
    %v1858 = vsub.f32 %v1856, %v1857
    %v1859 = vand.u32 %v1858, 4294901760
    %1860 = vmatpush.msra.mxu0 %v1859
    %v1861 = vand.u32 %v1389, 4294901760
    %v1862 = vsub.f32 %v1389, %v1861
    %v1863 = vand.u32 %v1862, 4294901760
    %v1864 = vsub.f32 %v1862, %v1863
    %v1865 = vand.u32 %v1864, 4294901760
    %1866 = vmatpush.msra.mxu0 %v1865
    %v1867 = vand.u32 %v1388, 4294901760
    %v1868 = vsub.f32 %v1388, %v1867
    %v1869 = vand.u32 %v1868, 4294901760
    %v1870 = vsub.f32 %v1868, %v1869
    %v1871 = vand.u32 %v1870, 4294901760
    %1872 = vmatpush.msra.mxu0 %v1871
    %v1873 = vand.u32 %v1734, 4294901760
    %1874 = vmatmul.f32.gmra.mxu0 %v1873
    %v1875 = vpop.f32.mrf.mxu0
    %v1876 = vadd.f32 %v1775, %v1875
    %1877 = vdwg.mxu0
    %v1878 = vand.u32 %v1403, 4294901760
    %v1879 = vsub.f32 %v1403, %v1878
    %1880 = vmatpush.msra.mxu0 %v1879
    %v1881 = vand.u32 %v1402, 4294901760
    %v1882 = vsub.f32 %v1402, %v1881
    %1883 = vmatpush.msra.mxu0 %v1882
    %v1884 = vand.u32 %v1401, 4294901760
    %v1885 = vsub.f32 %v1401, %v1884
    %1886 = vmatpush.msra.mxu0 %v1885
    %v1887 = vand.u32 %v1400, 4294901760
    %v1888 = vsub.f32 %v1400, %v1887
    %1889 = vmatpush.msra.mxu0 %v1888
    %v1890 = vand.u32 %v1399, 4294901760
    %v1891 = vsub.f32 %v1399, %v1890
    %1892 = vmatpush.msra.mxu0 %v1891
    %v1893 = vand.u32 %v1398, 4294901760
    %v1894 = vsub.f32 %v1398, %v1893
    %1895 = vmatpush.msra.mxu0 %v1894
    %v1896 = vand.u32 %v1397, 4294901760
    %v1897 = vsub.f32 %v1397, %v1896
    %1898 = vmatpush.msra.mxu0 %v1897
    %v1899 = vand.u32 %v1396, 4294901760
    %v1900 = vsub.f32 %v1396, %v1899
    %1901 = vmatpush.msra.mxu0 %v1900
    %v1902 = vand.u32 %v1395, 4294901760
    %v1903 = vsub.f32 %v1395, %v1902
    %1904 = vmatpush.msra.mxu0 %v1903
    %v1905 = vand.u32 %v1394, 4294901760
    %v1906 = vsub.f32 %v1394, %v1905
    %1907 = vmatpush.msra.mxu0 %v1906
    %v1908 = vand.u32 %v1393, 4294901760
    %v1909 = vsub.f32 %v1393, %v1908
    %1910 = vmatpush.msra.mxu0 %v1909
    %v1911 = vand.u32 %v1392, 4294901760
    %v1912 = vsub.f32 %v1392, %v1911
    %1913 = vmatpush.msra.mxu0 %v1912
    %v1914 = vand.u32 %v1391, 4294901760
    %v1915 = vsub.f32 %v1391, %v1914
    %1916 = vmatpush.msra.mxu0 %v1915
    %v1917 = vand.u32 %v1390, 4294901760
    %v1918 = vsub.f32 %v1390, %v1917
    %1919 = vmatpush.msra.mxu0 %v1918
    %v1920 = vand.u32 %v1389, 4294901760
    %v1921 = vsub.f32 %v1389, %v1920
    %1922 = vmatpush.msra.mxu0 %v1921
    %v1923 = vand.u32 %v1388, 4294901760
    %v1924 = vsub.f32 %v1388, %v1923
    %1925 = vmatpush.msra.mxu0 %v1924
    %v1926 = vand.u32 %v1734, 4294901760
    %v1927 = vsub.f32 %v1734, %v1926
    %1928 = vmatmul.f32.gmra.mxu0 %v1927
    %v1929 = vpop.f32.mrf.mxu0
    %v1930 = vadd.f32 %v1876, %v1929
    %1931 = vdwg.mxu0
    %v1932 = vand.u32 %v1403, 4294901760
    %1933 = vmatpush.msra.mxu0 %v1932
    %v1934 = vand.u32 %v1402, 4294901760
    %1935 = vmatpush.msra.mxu0 %v1934
    %v1936 = vand.u32 %v1401, 4294901760
    %1937 = vmatpush.msra.mxu0 %v1936
    %v1938 = vand.u32 %v1400, 4294901760
    %1939 = vmatpush.msra.mxu0 %v1938
    %v1940 = vand.u32 %v1399, 4294901760
    %1941 = vmatpush.msra.mxu0 %v1940
    %v1942 = vand.u32 %v1398, 4294901760
    %1943 = vmatpush.msra.mxu0 %v1942
    %v1944 = vand.u32 %v1397, 4294901760
    %1945 = vmatpush.msra.mxu0 %v1944
    %v1946 = vand.u32 %v1396, 4294901760
    %1947 = vmatpush.msra.mxu0 %v1946
    %v1948 = vand.u32 %v1395, 4294901760
    %1949 = vmatpush.msra.mxu0 %v1948
    %v1950 = vand.u32 %v1394, 4294901760
    %1951 = vmatpush.msra.mxu0 %v1950
    %v1952 = vand.u32 %v1393, 4294901760
    %1953 = vmatpush.msra.mxu0 %v1952
    %v1954 = vand.u32 %v1392, 4294901760
    %1955 = vmatpush.msra.mxu0 %v1954
    %v1956 = vand.u32 %v1391, 4294901760
    %1957 = vmatpush.msra.mxu0 %v1956
    %v1958 = vand.u32 %v1390, 4294901760
    %1959 = vmatpush.msra.mxu0 %v1958
    %v1960 = vand.u32 %v1389, 4294901760
    %1961 = vmatpush.msra.mxu0 %v1960
    %v1962 = vand.u32 %v1388, 4294901760
    %1963 = vmatpush.msra.mxu0 %v1962
    %v1964 = vand.u32 %v1734, 4294901760
    %v1965 = vsub.f32 %v1734, %v1964
    %v1966 = vand.u32 %v1965, 4294901760
    %1967 = vmatmul.f32.gmra.mxu0 %v1966
    %v1968 = vpop.f32.mrf.mxu0
    %v1969 = vadd.f32 %v1930, %v1968
    %1970 = vdwg.mxu0
    %v1971 = vand.u32 %v1403, 4294901760
    %v1972 = vsub.f32 %v1403, %v1971
    %v1973 = vand.u32 %v1972, 4294901760
    %1974 = vmatpush.msra.mxu0 %v1973
    %v1975 = vand.u32 %v1402, 4294901760
    %v1976 = vsub.f32 %v1402, %v1975
    %v1977 = vand.u32 %v1976, 4294901760
    %1978 = vmatpush.msra.mxu0 %v1977
    %v1979 = vand.u32 %v1401, 4294901760
    %v1980 = vsub.f32 %v1401, %v1979
    %v1981 = vand.u32 %v1980, 4294901760
    %1982 = vmatpush.msra.mxu0 %v1981
    %v1983 = vand.u32 %v1400, 4294901760
    %v1984 = vsub.f32 %v1400, %v1983
    %v1985 = vand.u32 %v1984, 4294901760
    %1986 = vmatpush.msra.mxu0 %v1985
    %v1987 = vand.u32 %v1399, 4294901760
    %v1988 = vsub.f32 %v1399, %v1987
    %v1989 = vand.u32 %v1988, 4294901760
    %1990 = vmatpush.msra.mxu0 %v1989
    %v1991 = vand.u32 %v1398, 4294901760
    %v1992 = vsub.f32 %v1398, %v1991
    %v1993 = vand.u32 %v1992, 4294901760
    %1994 = vmatpush.msra.mxu0 %v1993
    %v1995 = vand.u32 %v1397, 4294901760
    %v1996 = vsub.f32 %v1397, %v1995
    %v1997 = vand.u32 %v1996, 4294901760
    %1998 = vmatpush.msra.mxu0 %v1997
    %v1999 = vand.u32 %v1396, 4294901760
    %v2000 = vsub.f32 %v1396, %v1999
    %v2001 = vand.u32 %v2000, 4294901760
    %2002 = vmatpush.msra.mxu0 %v2001
    %v2003 = vand.u32 %v1395, 4294901760
    %v2004 = vsub.f32 %v1395, %v2003
    %v2005 = vand.u32 %v2004, 4294901760
    %2006 = vmatpush.msra.mxu0 %v2005
    %v2007 = vand.u32 %v1394, 4294901760
    %v2008 = vsub.f32 %v1394, %v2007
    %v2009 = vand.u32 %v2008, 4294901760
    %2010 = vmatpush.msra.mxu0 %v2009
    %v2011 = vand.u32 %v1393, 4294901760
    %v2012 = vsub.f32 %v1393, %v2011
    %v2013 = vand.u32 %v2012, 4294901760
    %2014 = vmatpush.msra.mxu0 %v2013
    %v2015 = vand.u32 %v1392, 4294901760
    %v2016 = vsub.f32 %v1392, %v2015
    %v2017 = vand.u32 %v2016, 4294901760
    %2018 = vmatpush.msra.mxu0 %v2017
    %v2019 = vand.u32 %v1391, 4294901760
    %v2020 = vsub.f32 %v1391, %v2019
    %v2021 = vand.u32 %v2020, 4294901760
    %2022 = vmatpush.msra.mxu0 %v2021
    %v2023 = vand.u32 %v1390, 4294901760
    %v2024 = vsub.f32 %v1390, %v2023
    %v2025 = vand.u32 %v2024, 4294901760
    %2026 = vmatpush.msra.mxu0 %v2025
    %v2027 = vand.u32 %v1389, 4294901760
    %v2028 = vsub.f32 %v1389, %v2027
    %v2029 = vand.u32 %v2028, 4294901760
    %2030 = vmatpush.msra.mxu0 %v2029
    %v2031 = vand.u32 %v1388, 4294901760
    %v2032 = vsub.f32 %v1388, %v2031
    %v2033 = vand.u32 %v2032, 4294901760
    %2034 = vmatpush.msra.mxu0 %v2033
    %v2035 = vand.u32 %v1734, 4294901760
    %2036 = vmatmul.f32.gmra.mxu0 %v2035
    %v2037 = vpop.f32.mrf.mxu0
    %v2038 = vadd.f32 %v1969, %v2037
    %2039 = vdwg.mxu0
    %v2040 = vand.u32 %v1403, 4294901760
    %2041 = vmatpush.msra.mxu0 %v2040
    %v2042 = vand.u32 %v1402, 4294901760
    %2043 = vmatpush.msra.mxu0 %v2042
    %v2044 = vand.u32 %v1401, 4294901760
    %2045 = vmatpush.msra.mxu0 %v2044
    %v2046 = vand.u32 %v1400, 4294901760
    %2047 = vmatpush.msra.mxu0 %v2046
    %v2048 = vand.u32 %v1399, 4294901760
    %2049 = vmatpush.msra.mxu0 %v2048
    %v2050 = vand.u32 %v1398, 4294901760
    %2051 = vmatpush.msra.mxu0 %v2050
    %v2052 = vand.u32 %v1397, 4294901760
    %2053 = vmatpush.msra.mxu0 %v2052
    %v2054 = vand.u32 %v1396, 4294901760
    %2055 = vmatpush.msra.mxu0 %v2054
    %v2056 = vand.u32 %v1395, 4294901760
    %2057 = vmatpush.msra.mxu0 %v2056
    %v2058 = vand.u32 %v1394, 4294901760
    %2059 = vmatpush.msra.mxu0 %v2058
    %v2060 = vand.u32 %v1393, 4294901760
    %2061 = vmatpush.msra.mxu0 %v2060
    %v2062 = vand.u32 %v1392, 4294901760
    %2063 = vmatpush.msra.mxu0 %v2062
    %v2064 = vand.u32 %v1391, 4294901760
    %2065 = vmatpush.msra.mxu0 %v2064
    %v2066 = vand.u32 %v1390, 4294901760
    %2067 = vmatpush.msra.mxu0 %v2066
    %v2068 = vand.u32 %v1389, 4294901760
    %2069 = vmatpush.msra.mxu0 %v2068
    %v2070 = vand.u32 %v1388, 4294901760
    %2071 = vmatpush.msra.mxu0 %v2070
    %v2072 = vand.u32 %v1734, 4294901760
    %2073 = vmatmul.f32.gmra.mxu0 %v2072
    %v2074 = vpop.f32.mrf.mxu0
    %v2075 = vadd.f32 %v2038, %v2074
    %2076 = vdwg.mxu0
    %v2077 = vadd.f32 %v1735, %v2075
    %v2078 = vtanh.pop %v2077
    %v2079 = vld [vmem:[%s556] sm:$0x1]
    %v2080 = vand.u32 %v1403, 4294901760
    %2081 = vmatpush.msra.mxu0 %v2080
    %v2082 = vand.u32 %v1402, 4294901760
    %2083 = vmatpush.msra.mxu0 %v2082
    %v2084 = vand.u32 %v1401, 4294901760
    %2085 = vmatpush.msra.mxu0 %v2084
    %v2086 = vand.u32 %v1400, 4294901760
    %2087 = vmatpush.msra.mxu0 %v2086
    %v2088 = vand.u32 %v1399, 4294901760
    %2089 = vmatpush.msra.mxu0 %v2088
    %v2090 = vand.u32 %v1398, 4294901760
    %2091 = vmatpush.msra.mxu0 %v2090
    %v2092 = vand.u32 %v1397, 4294901760
    %2093 = vmatpush.msra.mxu0 %v2092
    %v2094 = vand.u32 %v1396, 4294901760
    %2095 = vmatpush.msra.mxu0 %v2094
    %v2096 = vand.u32 %v1395, 4294901760
    %2097 = vmatpush.msra.mxu0 %v2096
    %v2098 = vand.u32 %v1394, 4294901760
    %2099 = vmatpush.msra.mxu0 %v2098
    %v2100 = vand.u32 %v1393, 4294901760
    %2101 = vmatpush.msra.mxu0 %v2100
    %v2102 = vand.u32 %v1392, 4294901760
    %2103 = vmatpush.msra.mxu0 %v2102
    %v2104 = vand.u32 %v1391, 4294901760
    %2105 = vmatpush.msra.mxu0 %v2104
    %v2106 = vand.u32 %v1390, 4294901760
    %2107 = vmatpush.msra.mxu0 %v2106
    %v2108 = vand.u32 %v1389, 4294901760
    %2109 = vmatpush.msra.mxu0 %v2108
    %v2110 = vand.u32 %v1388, 4294901760
    %2111 = vmatpush.msra.mxu0 %v2110
    %v2112 = vand.u32 %v2078, 4294901760
    %v2113 = vsub.f32 %v2078, %v2112
    %v2114 = vand.u32 %v2113, 4294901760
    %v2115 = vsub.f32 %v2113, %v2114
    %v2116 = vand.u32 %v2115, 4294901760
    %2117 = vmatmul.f32.gmra.mxu0 %v2116
    %v2118 = vpop.f32.mrf.mxu0
    %v2119 = vadd.f32 0.0, %v2118
    %2120 = vdwg.mxu0
    %v2121 = vand.u32 %v1403, 4294901760
    %v2122 = vsub.f32 %v1403, %v2121
    %v2123 = vand.u32 %v2122, 4294901760
    %v2124 = vsub.f32 %v2122, %v2123
    %v2125 = vand.u32 %v2124, 4294901760
    %2126 = vmatpush.msra.mxu0 %v2125
    %v2127 = vand.u32 %v1402, 4294901760
    %v2128 = vsub.f32 %v1402, %v2127
    %v2129 = vand.u32 %v2128, 4294901760
    %v2130 = vsub.f32 %v2128, %v2129
    %v2131 = vand.u32 %v2130, 4294901760
    %2132 = vmatpush.msra.mxu0 %v2131
    %v2133 = vand.u32 %v1401, 4294901760
    %v2134 = vsub.f32 %v1401, %v2133
    %v2135 = vand.u32 %v2134, 4294901760
    %v2136 = vsub.f32 %v2134, %v2135
    %v2137 = vand.u32 %v2136, 4294901760
    %2138 = vmatpush.msra.mxu0 %v2137
    %v2139 = vand.u32 %v1400, 4294901760
    %v2140 = vsub.f32 %v1400, %v2139
    %v2141 = vand.u32 %v2140, 4294901760
    %v2142 = vsub.f32 %v2140, %v2141
    %v2143 = vand.u32 %v2142, 4294901760
    %2144 = vmatpush.msra.mxu0 %v2143
    %v2145 = vand.u32 %v1399, 4294901760
    %v2146 = vsub.f32 %v1399, %v2145
    %v2147 = vand.u32 %v2146, 4294901760
    %v2148 = vsub.f32 %v2146, %v2147
    %v2149 = vand.u32 %v2148, 4294901760
    %2150 = vmatpush.msra.mxu0 %v2149
    %v2151 = vand.u32 %v1398, 4294901760
    %v2152 = vsub.f32 %v1398, %v2151
    %v2153 = vand.u32 %v2152, 4294901760
    %v2154 = vsub.f32 %v2152, %v2153
    %v2155 = vand.u32 %v2154, 4294901760
    %2156 = vmatpush.msra.mxu0 %v2155
    %v2157 = vand.u32 %v1397, 4294901760
    %v2158 = vsub.f32 %v1397, %v2157
    %v2159 = vand.u32 %v2158, 4294901760
    %v2160 = vsub.f32 %v2158, %v2159
    %v2161 = vand.u32 %v2160, 4294901760
    %2162 = vmatpush.msra.mxu0 %v2161
    %v2163 = vand.u32 %v1396, 4294901760
    %v2164 = vsub.f32 %v1396, %v2163
    %v2165 = vand.u32 %v2164, 4294901760
    %v2166 = vsub.f32 %v2164, %v2165
    %v2167 = vand.u32 %v2166, 4294901760
    %2168 = vmatpush.msra.mxu0 %v2167
    %v2169 = vand.u32 %v1395, 4294901760
    %v2170 = vsub.f32 %v1395, %v2169
    %v2171 = vand.u32 %v2170, 4294901760
    %v2172 = vsub.f32 %v2170, %v2171
    %v2173 = vand.u32 %v2172, 4294901760
    %2174 = vmatpush.msra.mxu0 %v2173
    %v2175 = vand.u32 %v1394, 4294901760
    %v2176 = vsub.f32 %v1394, %v2175
    %v2177 = vand.u32 %v2176, 4294901760
    %v2178 = vsub.f32 %v2176, %v2177
    %v2179 = vand.u32 %v2178, 4294901760
    %2180 = vmatpush.msra.mxu0 %v2179
    %v2181 = vand.u32 %v1393, 4294901760
    %v2182 = vsub.f32 %v1393, %v2181
    %v2183 = vand.u32 %v2182, 4294901760
    %v2184 = vsub.f32 %v2182, %v2183
    %v2185 = vand.u32 %v2184, 4294901760
    %2186 = vmatpush.msra.mxu0 %v2185
    %v2187 = vand.u32 %v1392, 4294901760
    %v2188 = vsub.f32 %v1392, %v2187
    %v2189 = vand.u32 %v2188, 4294901760
    %v2190 = vsub.f32 %v2188, %v2189
    %v2191 = vand.u32 %v2190, 4294901760
    %2192 = vmatpush.msra.mxu0 %v2191
    %v2193 = vand.u32 %v1391, 4294901760
    %v2194 = vsub.f32 %v1391, %v2193
    %v2195 = vand.u32 %v2194, 4294901760
    %v2196 = vsub.f32 %v2194, %v2195
    %v2197 = vand.u32 %v2196, 4294901760
    %2198 = vmatpush.msra.mxu0 %v2197
    %v2199 = vand.u32 %v1390, 4294901760
    %v2200 = vsub.f32 %v1390, %v2199
    %v2201 = vand.u32 %v2200, 4294901760
    %v2202 = vsub.f32 %v2200, %v2201
    %v2203 = vand.u32 %v2202, 4294901760
    %2204 = vmatpush.msra.mxu0 %v2203
    %v2205 = vand.u32 %v1389, 4294901760
    %v2206 = vsub.f32 %v1389, %v2205
    %v2207 = vand.u32 %v2206, 4294901760
    %v2208 = vsub.f32 %v2206, %v2207
    %v2209 = vand.u32 %v2208, 4294901760
    %2210 = vmatpush.msra.mxu0 %v2209
    %v2211 = vand.u32 %v1388, 4294901760
    %v2212 = vsub.f32 %v1388, %v2211
    %v2213 = vand.u32 %v2212, 4294901760
    %v2214 = vsub.f32 %v2212, %v2213
    %v2215 = vand.u32 %v2214, 4294901760
    %2216 = vmatpush.msra.mxu0 %v2215
    %v2217 = vand.u32 %v2078, 4294901760
    %2218 = vmatmul.f32.gmra.mxu0 %v2217
    %v2219 = vpop.f32.mrf.mxu0
    %v2220 = vadd.f32 %v2119, %v2219
    %2221 = vdwg.mxu0
    %v2222 = vand.u32 %v1403, 4294901760
    %v2223 = vsub.f32 %v1403, %v2222
    %2224 = vmatpush.msra.mxu0 %v2223
    %v2225 = vand.u32 %v1402, 4294901760
    %v2226 = vsub.f32 %v1402, %v2225
    %2227 = vmatpush.msra.mxu0 %v2226
    %v2228 = vand.u32 %v1401, 4294901760
    %v2229 = vsub.f32 %v1401, %v2228
    %2230 = vmatpush.msra.mxu0 %v2229
    %v2231 = vand.u32 %v1400, 4294901760
    %v2232 = vsub.f32 %v1400, %v2231
    %2233 = vmatpush.msra.mxu0 %v2232
    %v2234 = vand.u32 %v1399, 4294901760
    %v2235 = vsub.f32 %v1399, %v2234
    %2236 = vmatpush.msra.mxu0 %v2235
    %v2237 = vand.u32 %v1398, 4294901760
    %v2238 = vsub.f32 %v1398, %v2237
    %2239 = vmatpush.msra.mxu0 %v2238
    %v2240 = vand.u32 %v1397, 4294901760
    %v2241 = vsub.f32 %v1397, %v2240
    %2242 = vmatpush.msra.mxu0 %v2241
    %v2243 = vand.u32 %v1396, 4294901760
    %v2244 = vsub.f32 %v1396, %v2243
    %2245 = vmatpush.msra.mxu0 %v2244
    %v2246 = vand.u32 %v1395, 4294901760
    %v2247 = vsub.f32 %v1395, %v2246
    %2248 = vmatpush.msra.mxu0 %v2247
    %v2249 = vand.u32 %v1394, 4294901760
    %v2250 = vsub.f32 %v1394, %v2249
    %2251 = vmatpush.msra.mxu0 %v2250
    %v2252 = vand.u32 %v1393, 4294901760
    %v2253 = vsub.f32 %v1393, %v2252
    %2254 = vmatpush.msra.mxu0 %v2253
    %v2255 = vand.u32 %v1392, 4294901760
    %v2256 = vsub.f32 %v1392, %v2255
    %2257 = vmatpush.msra.mxu0 %v2256
    %v2258 = vand.u32 %v1391, 4294901760
    %v2259 = vsub.f32 %v1391, %v2258
    %2260 = vmatpush.msra.mxu0 %v2259
    %v2261 = vand.u32 %v1390, 4294901760
    %v2262 = vsub.f32 %v1390, %v2261
    %2263 = vmatpush.msra.mxu0 %v2262
    %v2264 = vand.u32 %v1389, 4294901760
    %v2265 = vsub.f32 %v1389, %v2264
    %2266 = vmatpush.msra.mxu0 %v2265
    %v2267 = vand.u32 %v1388, 4294901760
    %v2268 = vsub.f32 %v1388, %v2267
    %2269 = vmatpush.msra.mxu0 %v2268
    %v2270 = vand.u32 %v2078, 4294901760
    %v2271 = vsub.f32 %v2078, %v2270
    %2272 = vmatmul.f32.gmra.mxu0 %v2271
    %v2273 = vpop.f32.mrf.mxu0
    %v2274 = vadd.f32 %v2220, %v2273
    %2275 = vdwg.mxu0
    %v2276 = vand.u32 %v1403, 4294901760
    %2277 = vmatpush.msra.mxu0 %v2276
    %v2278 = vand.u32 %v1402, 4294901760
    %2279 = vmatpush.msra.mxu0 %v2278
    %v2280 = vand.u32 %v1401, 4294901760
    %2281 = vmatpush.msra.mxu0 %v2280
    %v2282 = vand.u32 %v1400, 4294901760
    %2283 = vmatpush.msra.mxu0 %v2282
    %v2284 = vand.u32 %v1399, 4294901760
    %2285 = vmatpush.msra.mxu0 %v2284
    %v2286 = vand.u32 %v1398, 4294901760
    %2287 = vmatpush.msra.mxu0 %v2286
    %v2288 = vand.u32 %v1397, 4294901760
    %2289 = vmatpush.msra.mxu0 %v2288
    %v2290 = vand.u32 %v1396, 4294901760
    %2291 = vmatpush.msra.mxu0 %v2290
    %v2292 = vand.u32 %v1395, 4294901760
    %2293 = vmatpush.msra.mxu0 %v2292
    %v2294 = vand.u32 %v1394, 4294901760
    %2295 = vmatpush.msra.mxu0 %v2294
    %v2296 = vand.u32 %v1393, 4294901760
    %2297 = vmatpush.msra.mxu0 %v2296
    %v2298 = vand.u32 %v1392, 4294901760
    %2299 = vmatpush.msra.mxu0 %v2298
    %v2300 = vand.u32 %v1391, 4294901760
    %2301 = vmatpush.msra.mxu0 %v2300
    %v2302 = vand.u32 %v1390, 4294901760
    %2303 = vmatpush.msra.mxu0 %v2302
    %v2304 = vand.u32 %v1389, 4294901760
    %2305 = vmatpush.msra.mxu0 %v2304
    %v2306 = vand.u32 %v1388, 4294901760
    %2307 = vmatpush.msra.mxu0 %v2306
    %v2308 = vand.u32 %v2078, 4294901760
    %v2309 = vsub.f32 %v2078, %v2308
    %v2310 = vand.u32 %v2309, 4294901760
    %2311 = vmatmul.f32.gmra.mxu0 %v2310
    %v2312 = vpop.f32.mrf.mxu0
    %v2313 = vadd.f32 %v2274, %v2312
    %2314 = vdwg.mxu0
    %v2315 = vand.u32 %v1403, 4294901760
    %v2316 = vsub.f32 %v1403, %v2315
    %v2317 = vand.u32 %v2316, 4294901760
    %2318 = vmatpush.msra.mxu0 %v2317
    %v2319 = vand.u32 %v1402, 4294901760
    %v2320 = vsub.f32 %v1402, %v2319
    %v2321 = vand.u32 %v2320, 4294901760
    %2322 = vmatpush.msra.mxu0 %v2321
    %v2323 = vand.u32 %v1401, 4294901760
    %v2324 = vsub.f32 %v1401, %v2323
    %v2325 = vand.u32 %v2324, 4294901760
    %2326 = vmatpush.msra.mxu0 %v2325
    %v2327 = vand.u32 %v1400, 4294901760
    %v2328 = vsub.f32 %v1400, %v2327
    %v2329 = vand.u32 %v2328, 4294901760
    %2330 = vmatpush.msra.mxu0 %v2329
    %v2331 = vand.u32 %v1399, 4294901760
    %v2332 = vsub.f32 %v1399, %v2331
    %v2333 = vand.u32 %v2332, 4294901760
    %2334 = vmatpush.msra.mxu0 %v2333
    %v2335 = vand.u32 %v1398, 4294901760
    %v2336 = vsub.f32 %v1398, %v2335
    %v2337 = vand.u32 %v2336, 4294901760
    %2338 = vmatpush.msra.mxu0 %v2337
    %v2339 = vand.u32 %v1397, 4294901760
    %v2340 = vsub.f32 %v1397, %v2339
    %v2341 = vand.u32 %v2340, 4294901760
    %2342 = vmatpush.msra.mxu0 %v2341
    %v2343 = vand.u32 %v1396, 4294901760
    %v2344 = vsub.f32 %v1396, %v2343
    %v2345 = vand.u32 %v2344, 4294901760
    %2346 = vmatpush.msra.mxu0 %v2345
    %v2347 = vand.u32 %v1395, 4294901760
    %v2348 = vsub.f32 %v1395, %v2347
    %v2349 = vand.u32 %v2348, 4294901760
    %2350 = vmatpush.msra.mxu0 %v2349
    %v2351 = vand.u32 %v1394, 4294901760
    %v2352 = vsub.f32 %v1394, %v2351
    %v2353 = vand.u32 %v2352, 4294901760
    %2354 = vmatpush.msra.mxu0 %v2353
    %v2355 = vand.u32 %v1393, 4294901760
    %v2356 = vsub.f32 %v1393, %v2355
    %v2357 = vand.u32 %v2356, 4294901760
    %2358 = vmatpush.msra.mxu0 %v2357
    %v2359 = vand.u32 %v1392, 4294901760
    %v2360 = vsub.f32 %v1392, %v2359
    %v2361 = vand.u32 %v2360, 4294901760
    %2362 = vmatpush.msra.mxu0 %v2361
    %v2363 = vand.u32 %v1391, 4294901760
    %v2364 = vsub.f32 %v1391, %v2363
    %v2365 = vand.u32 %v2364, 4294901760
    %2366 = vmatpush.msra.mxu0 %v2365
    %v2367 = vand.u32 %v1390, 4294901760
    %v2368 = vsub.f32 %v1390, %v2367
    %v2369 = vand.u32 %v2368, 4294901760
    %2370 = vmatpush.msra.mxu0 %v2369
    %v2371 = vand.u32 %v1389, 4294901760
    %v2372 = vsub.f32 %v1389, %v2371
    %v2373 = vand.u32 %v2372, 4294901760
    %2374 = vmatpush.msra.mxu0 %v2373
    %v2375 = vand.u32 %v1388, 4294901760
    %v2376 = vsub.f32 %v1388, %v2375
    %v2377 = vand.u32 %v2376, 4294901760
    %2378 = vmatpush.msra.mxu0 %v2377
    %v2379 = vand.u32 %v2078, 4294901760
    %2380 = vmatmul.f32.gmra.mxu0 %v2379
    %v2381 = vpop.f32.mrf.mxu0
    %v2382 = vadd.f32 %v2313, %v2381
    %2383 = vdwg.mxu0
    %v2384 = vand.u32 %v1403, 4294901760
    %2385 = vmatpush.msra.mxu0 %v2384
    %v2386 = vand.u32 %v1402, 4294901760
    %2387 = vmatpush.msra.mxu0 %v2386
    %v2388 = vand.u32 %v1401, 4294901760
    %2389 = vmatpush.msra.mxu0 %v2388
    %v2390 = vand.u32 %v1400, 4294901760
    %2391 = vmatpush.msra.mxu0 %v2390
    %v2392 = vand.u32 %v1399, 4294901760
    %2393 = vmatpush.msra.mxu0 %v2392
    %v2394 = vand.u32 %v1398, 4294901760
    %2395 = vmatpush.msra.mxu0 %v2394
    %v2396 = vand.u32 %v1397, 4294901760
    %2397 = vmatpush.msra.mxu0 %v2396
    %v2398 = vand.u32 %v1396, 4294901760
    %2399 = vmatpush.msra.mxu0 %v2398
    %v2400 = vand.u32 %v1395, 4294901760
    %2401 = vmatpush.msra.mxu0 %v2400
    %v2402 = vand.u32 %v1394, 4294901760
    %2403 = vmatpush.msra.mxu0 %v2402
    %v2404 = vand.u32 %v1393, 4294901760
    %2405 = vmatpush.msra.mxu0 %v2404
    %v2406 = vand.u32 %v1392, 4294901760
    %2407 = vmatpush.msra.mxu0 %v2406
    %v2408 = vand.u32 %v1391, 4294901760
    %2409 = vmatpush.msra.mxu0 %v2408
    %v2410 = vand.u32 %v1390, 4294901760
    %2411 = vmatpush.msra.mxu0 %v2410
    %v2412 = vand.u32 %v1389, 4294901760
    %2413 = vmatpush.msra.mxu0 %v2412
    %v2414 = vand.u32 %v1388, 4294901760
    %2415 = vmatpush.msra.mxu0 %v2414
    %v2416 = vand.u32 %v2078, 4294901760
    %2417 = vmatmul.f32.gmra.mxu0 %v2416
    %v2418 = vpop.f32.mrf.mxu0
    %v2419 = vadd.f32 %v2382, %v2418
    %2420 = vdwg.mxu0
    %v2421 = vadd.f32 %v2079, %v2419
    %v2422 = vtanh.pop %v2421
    %v2423 = vld [vmem:[%s722] sm:$0x1]
    %v2424 = vand.u32 %v1403, 4294901760
    %2425 = vmatpush.msra.mxu0 %v2424
    %v2426 = vand.u32 %v1402, 4294901760
    %2427 = vmatpush.msra.mxu0 %v2426
    %v2428 = vand.u32 %v1401, 4294901760
    %2429 = vmatpush.msra.mxu0 %v2428
    %v2430 = vand.u32 %v1400, 4294901760
    %2431 = vmatpush.msra.mxu0 %v2430
    %v2432 = vand.u32 %v1399, 4294901760
    %2433 = vmatpush.msra.mxu0 %v2432
    %v2434 = vand.u32 %v1398, 4294901760
    %2435 = vmatpush.msra.mxu0 %v2434
    %v2436 = vand.u32 %v1397, 4294901760
    %2437 = vmatpush.msra.mxu0 %v2436
    %v2438 = vand.u32 %v1396, 4294901760
    %2439 = vmatpush.msra.mxu0 %v2438
    %v2440 = vand.u32 %v1395, 4294901760
    %2441 = vmatpush.msra.mxu0 %v2440
    %v2442 = vand.u32 %v1394, 4294901760
    %2443 = vmatpush.msra.mxu0 %v2442
    %v2444 = vand.u32 %v1393, 4294901760
    %2445 = vmatpush.msra.mxu0 %v2444
    %v2446 = vand.u32 %v1392, 4294901760
    %2447 = vmatpush.msra.mxu0 %v2446
    %v2448 = vand.u32 %v1391, 4294901760
    %2449 = vmatpush.msra.mxu0 %v2448
    %v2450 = vand.u32 %v1390, 4294901760
    %2451 = vmatpush.msra.mxu0 %v2450
    %v2452 = vand.u32 %v1389, 4294901760
    %2453 = vmatpush.msra.mxu0 %v2452
    %v2454 = vand.u32 %v1388, 4294901760
    %2455 = vmatpush.msra.mxu0 %v2454
    %v2456 = vand.u32 %v2422, 4294901760
    %v2457 = vsub.f32 %v2422, %v2456
    %v2458 = vand.u32 %v2457, 4294901760
    %v2459 = vsub.f32 %v2457, %v2458
    %v2460 = vand.u32 %v2459, 4294901760
    %2461 = vmatmul.f32.gmra.mxu0 %v2460
    %v2462 = vpop.f32.mrf.mxu0
    %v2463 = vadd.f32 0.0, %v2462
    %2464 = vdwg.mxu0
    %v2465 = vand.u32 %v1403, 4294901760
    %v2466 = vsub.f32 %v1403, %v2465
    %v2467 = vand.u32 %v2466, 4294901760
    %v2468 = vsub.f32 %v2466, %v2467
    %v2469 = vand.u32 %v2468, 4294901760
    %2470 = vmatpush.msra.mxu0 %v2469
    %v2471 = vand.u32 %v1402, 4294901760
    %v2472 = vsub.f32 %v1402, %v2471
    %v2473 = vand.u32 %v2472, 4294901760
    %v2474 = vsub.f32 %v2472, %v2473
    %v2475 = vand.u32 %v2474, 4294901760
    %2476 = vmatpush.msra.mxu0 %v2475
    %v2477 = vand.u32 %v1401, 4294901760
    %v2478 = vsub.f32 %v1401, %v2477
    %v2479 = vand.u32 %v2478, 4294901760
    %v2480 = vsub.f32 %v2478, %v2479
    %v2481 = vand.u32 %v2480, 4294901760
    %2482 = vmatpush.msra.mxu0 %v2481
    %v2483 = vand.u32 %v1400, 4294901760
    %v2484 = vsub.f32 %v1400, %v2483
    %v2485 = vand.u32 %v2484, 4294901760
    %v2486 = vsub.f32 %v2484, %v2485
    %v2487 = vand.u32 %v2486, 4294901760
    %2488 = vmatpush.msra.mxu0 %v2487
    %v2489 = vand.u32 %v1399, 4294901760
    %v2490 = vsub.f32 %v1399, %v2489
    %v2491 = vand.u32 %v2490, 4294901760
    %v2492 = vsub.f32 %v2490, %v2491
    %v2493 = vand.u32 %v2492, 4294901760
    %2494 = vmatpush.msra.mxu0 %v2493
    %v2495 = vand.u32 %v1398, 4294901760
    %v2496 = vsub.f32 %v1398, %v2495
    %v2497 = vand.u32 %v2496, 4294901760
    %v2498 = vsub.f32 %v2496, %v2497
    %v2499 = vand.u32 %v2498, 4294901760
    %2500 = vmatpush.msra.mxu0 %v2499
    %v2501 = vand.u32 %v1397, 4294901760
    %v2502 = vsub.f32 %v1397, %v2501
    %v2503 = vand.u32 %v2502, 4294901760
    %v2504 = vsub.f32 %v2502, %v2503
    %v2505 = vand.u32 %v2504, 4294901760
    %2506 = vmatpush.msra.mxu0 %v2505
    %v2507 = vand.u32 %v1396, 4294901760
    %v2508 = vsub.f32 %v1396, %v2507
    %v2509 = vand.u32 %v2508, 4294901760
    %v2510 = vsub.f32 %v2508, %v2509
    %v2511 = vand.u32 %v2510, 4294901760
    %2512 = vmatpush.msra.mxu0 %v2511
    %v2513 = vand.u32 %v1395, 4294901760
    %v2514 = vsub.f32 %v1395, %v2513
    %v2515 = vand.u32 %v2514, 4294901760
    %v2516 = vsub.f32 %v2514, %v2515
    %v2517 = vand.u32 %v2516, 4294901760
    %2518 = vmatpush.msra.mxu0 %v2517
    %v2519 = vand.u32 %v1394, 4294901760
    %v2520 = vsub.f32 %v1394, %v2519
    %v2521 = vand.u32 %v2520, 4294901760
    %v2522 = vsub.f32 %v2520, %v2521
    %v2523 = vand.u32 %v2522, 4294901760
    %2524 = vmatpush.msra.mxu0 %v2523
    %v2525 = vand.u32 %v1393, 4294901760
    %v2526 = vsub.f32 %v1393, %v2525
    %v2527 = vand.u32 %v2526, 4294901760
    %v2528 = vsub.f32 %v2526, %v2527
    %v2529 = vand.u32 %v2528, 4294901760
    %2530 = vmatpush.msra.mxu0 %v2529
    %v2531 = vand.u32 %v1392, 4294901760
    %v2532 = vsub.f32 %v1392, %v2531
    %v2533 = vand.u32 %v2532, 4294901760
    %v2534 = vsub.f32 %v2532, %v2533
    %v2535 = vand.u32 %v2534, 4294901760
    %2536 = vmatpush.msra.mxu0 %v2535
    %v2537 = vand.u32 %v1391, 4294901760
    %v2538 = vsub.f32 %v1391, %v2537
    %v2539 = vand.u32 %v2538, 4294901760
    %v2540 = vsub.f32 %v2538, %v2539
    %v2541 = vand.u32 %v2540, 4294901760
    %2542 = vmatpush.msra.mxu0 %v2541
    %v2543 = vand.u32 %v1390, 4294901760
    %v2544 = vsub.f32 %v1390, %v2543
    %v2545 = vand.u32 %v2544, 4294901760
    %v2546 = vsub.f32 %v2544, %v2545
    %v2547 = vand.u32 %v2546, 4294901760
    %2548 = vmatpush.msra.mxu0 %v2547
    %v2549 = vand.u32 %v1389, 4294901760
    %v2550 = vsub.f32 %v1389, %v2549
    %v2551 = vand.u32 %v2550, 4294901760
    %v2552 = vsub.f32 %v2550, %v2551
    %v2553 = vand.u32 %v2552, 4294901760
    %2554 = vmatpush.msra.mxu0 %v2553
    %v2555 = vand.u32 %v1388, 4294901760
    %v2556 = vsub.f32 %v1388, %v2555
    %v2557 = vand.u32 %v2556, 4294901760
    %v2558 = vsub.f32 %v2556, %v2557
    %v2559 = vand.u32 %v2558, 4294901760
    %2560 = vmatpush.msra.mxu0 %v2559
    %v2561 = vand.u32 %v2422, 4294901760
    %2562 = vmatmul.f32.gmra.mxu0 %v2561
    %v2563 = vpop.f32.mrf.mxu0
    %v2564 = vadd.f32 %v2463, %v2563
    %2565 = vdwg.mxu0
    %v2566 = vand.u32 %v1403, 4294901760
    %v2567 = vsub.f32 %v1403, %v2566
    %2568 = vmatpush.msra.mxu0 %v2567
    %v2569 = vand.u32 %v1402, 4294901760
    %v2570 = vsub.f32 %v1402, %v2569
    %2571 = vmatpush.msra.mxu0 %v2570
    %v2572 = vand.u32 %v1401, 4294901760
    %v2573 = vsub.f32 %v1401, %v2572
    %2574 = vmatpush.msra.mxu0 %v2573
    %v2575 = vand.u32 %v1400, 4294901760
    %v2576 = vsub.f32 %v1400, %v2575
    %2577 = vmatpush.msra.mxu0 %v2576
    %v2578 = vand.u32 %v1399, 4294901760
    %v2579 = vsub.f32 %v1399, %v2578
    %2580 = vmatpush.msra.mxu0 %v2579
    %v2581 = vand.u32 %v1398, 4294901760
    %v2582 = vsub.f32 %v1398, %v2581
    %2583 = vmatpush.msra.mxu0 %v2582
    %v2584 = vand.u32 %v1397, 4294901760
    %v2585 = vsub.f32 %v1397, %v2584
    %2586 = vmatpush.msra.mxu0 %v2585
    %v2587 = vand.u32 %v1396, 4294901760
    %v2588 = vsub.f32 %v1396, %v2587
    %2589 = vmatpush.msra.mxu0 %v2588
    %v2590 = vand.u32 %v1395, 4294901760
    %v2591 = vsub.f32 %v1395, %v2590
    %2592 = vmatpush.msra.mxu0 %v2591
    %v2593 = vand.u32 %v1394, 4294901760
    %v2594 = vsub.f32 %v1394, %v2593
    %2595 = vmatpush.msra.mxu0 %v2594
    %v2596 = vand.u32 %v1393, 4294901760
    %v2597 = vsub.f32 %v1393, %v2596
    %2598 = vmatpush.msra.mxu0 %v2597
    %v2599 = vand.u32 %v1392, 4294901760
    %v2600 = vsub.f32 %v1392, %v2599
    %2601 = vmatpush.msra.mxu0 %v2600
    %v2602 = vand.u32 %v1391, 4294901760
    %v2603 = vsub.f32 %v1391, %v2602
    %2604 = vmatpush.msra.mxu0 %v2603
    %v2605 = vand.u32 %v1390, 4294901760
    %v2606 = vsub.f32 %v1390, %v2605
    %2607 = vmatpush.msra.mxu0 %v2606
    %v2608 = vand.u32 %v1389, 4294901760
    %v2609 = vsub.f32 %v1389, %v2608
    %2610 = vmatpush.msra.mxu0 %v2609
    %v2611 = vand.u32 %v1388, 4294901760
    %v2612 = vsub.f32 %v1388, %v2611
    %2613 = vmatpush.msra.mxu0 %v2612
    %v2614 = vand.u32 %v2422, 4294901760
    %v2615 = vsub.f32 %v2422, %v2614
    %2616 = vmatmul.f32.gmra.mxu0 %v2615
    %v2617 = vpop.f32.mrf.mxu0
    %v2618 = vadd.f32 %v2564, %v2617
    %2619 = vdwg.mxu0
    %v2620 = vand.u32 %v1403, 4294901760
    %2621 = vmatpush.msra.mxu0 %v2620
    %v2622 = vand.u32 %v1402, 4294901760
    %2623 = vmatpush.msra.mxu0 %v2622
    %v2624 = vand.u32 %v1401, 4294901760
    %2625 = vmatpush.msra.mxu0 %v2624
    %v2626 = vand.u32 %v1400, 4294901760
    %2627 = vmatpush.msra.mxu0 %v2626
    %v2628 = vand.u32 %v1399, 4294901760
    %2629 = vmatpush.msra.mxu0 %v2628
    %v2630 = vand.u32 %v1398, 4294901760
    %2631 = vmatpush.msra.mxu0 %v2630
    %v2632 = vand.u32 %v1397, 4294901760
    %2633 = vmatpush.msra.mxu0 %v2632
    %v2634 = vand.u32 %v1396, 4294901760
    %2635 = vmatpush.msra.mxu0 %v2634
    %v2636 = vand.u32 %v1395, 4294901760
    %2637 = vmatpush.msra.mxu0 %v2636
    %v2638 = vand.u32 %v1394, 4294901760
    %2639 = vmatpush.msra.mxu0 %v2638
    %v2640 = vand.u32 %v1393, 4294901760
    %2641 = vmatpush.msra.mxu0 %v2640
    %v2642 = vand.u32 %v1392, 4294901760
    %2643 = vmatpush.msra.mxu0 %v2642
    %v2644 = vand.u32 %v1391, 4294901760
    %2645 = vmatpush.msra.mxu0 %v2644
    %v2646 = vand.u32 %v1390, 4294901760
    %2647 = vmatpush.msra.mxu0 %v2646
    %v2648 = vand.u32 %v1389, 4294901760
    %2649 = vmatpush.msra.mxu0 %v2648
    %v2650 = vand.u32 %v1388, 4294901760
    %2651 = vmatpush.msra.mxu0 %v2650
    %v2652 = vand.u32 %v2422, 4294901760
    %v2653 = vsub.f32 %v2422, %v2652
    %v2654 = vand.u32 %v2653, 4294901760
    %2655 = vmatmul.f32.gmra.mxu0 %v2654
    %v2656 = vpop.f32.mrf.mxu0
    %v2657 = vadd.f32 %v2618, %v2656
    %2658 = vdwg.mxu0
    %v2659 = vand.u32 %v1403, 4294901760
    %v2660 = vsub.f32 %v1403, %v2659
    %v2661 = vand.u32 %v2660, 4294901760
    %2662 = vmatpush.msra.mxu0 %v2661
    %v2663 = vand.u32 %v1402, 4294901760
    %v2664 = vsub.f32 %v1402, %v2663
    %v2665 = vand.u32 %v2664, 4294901760
    %2666 = vmatpush.msra.mxu0 %v2665
    %v2667 = vand.u32 %v1401, 4294901760
    %v2668 = vsub.f32 %v1401, %v2667
    %v2669 = vand.u32 %v2668, 4294901760
    %2670 = vmatpush.msra.mxu0 %v2669
    %v2671 = vand.u32 %v1400, 4294901760
    %v2672 = vsub.f32 %v1400, %v2671
    %v2673 = vand.u32 %v2672, 4294901760
    %2674 = vmatpush.msra.mxu0 %v2673
    %v2675 = vand.u32 %v1399, 4294901760
    %v2676 = vsub.f32 %v1399, %v2675
    %v2677 = vand.u32 %v2676, 4294901760
    %2678 = vmatpush.msra.mxu0 %v2677
    %v2679 = vand.u32 %v1398, 4294901760
    %v2680 = vsub.f32 %v1398, %v2679
    %v2681 = vand.u32 %v2680, 4294901760
    %2682 = vmatpush.msra.mxu0 %v2681
    %v2683 = vand.u32 %v1397, 4294901760
    %v2684 = vsub.f32 %v1397, %v2683
    %v2685 = vand.u32 %v2684, 4294901760
    %2686 = vmatpush.msra.mxu0 %v2685
    %v2687 = vand.u32 %v1396, 4294901760
    %v2688 = vsub.f32 %v1396, %v2687
    %v2689 = vand.u32 %v2688, 4294901760
    %2690 = vmatpush.msra.mxu0 %v2689
    %v2691 = vand.u32 %v1395, 4294901760
    %v2692 = vsub.f32 %v1395, %v2691
    %v2693 = vand.u32 %v2692, 4294901760
    %2694 = vmatpush.msra.mxu0 %v2693
    %v2695 = vand.u32 %v1394, 4294901760
    %v2696 = vsub.f32 %v1394, %v2695
    %v2697 = vand.u32 %v2696, 4294901760
    %2698 = vmatpush.msra.mxu0 %v2697
    %v2699 = vand.u32 %v1393, 4294901760
    %v2700 = vsub.f32 %v1393, %v2699
    %v2701 = vand.u32 %v2700, 4294901760
    %2702 = vmatpush.msra.mxu0 %v2701
    %v2703 = vand.u32 %v1392, 4294901760
    %v2704 = vsub.f32 %v1392, %v2703
    %v2705 = vand.u32 %v2704, 4294901760
    %2706 = vmatpush.msra.mxu0 %v2705
    %v2707 = vand.u32 %v1391, 4294901760
    %v2708 = vsub.f32 %v1391, %v2707
    %v2709 = vand.u32 %v2708, 4294901760
    %2710 = vmatpush.msra.mxu0 %v2709
    %v2711 = vand.u32 %v1390, 4294901760
    %v2712 = vsub.f32 %v1390, %v2711
    %v2713 = vand.u32 %v2712, 4294901760
    %2714 = vmatpush.msra.mxu0 %v2713
    %v2715 = vand.u32 %v1389, 4294901760
    %v2716 = vsub.f32 %v1389, %v2715
    %v2717 = vand.u32 %v2716, 4294901760
    %2718 = vmatpush.msra.mxu0 %v2717
    %v2719 = vand.u32 %v1388, 4294901760
    %v2720 = vsub.f32 %v1388, %v2719
    %v2721 = vand.u32 %v2720, 4294901760
    %2722 = vmatpush.msra.mxu0 %v2721
    %v2723 = vand.u32 %v2422, 4294901760
    %2724 = vmatmul.f32.gmra.mxu0 %v2723
    %v2725 = vpop.f32.mrf.mxu0
    %v2726 = vadd.f32 %v2657, %v2725
    %2727 = vdwg.mxu0
    %v2728 = vand.u32 %v1403, 4294901760
    %2729 = vmatpush.msra.mxu0 %v2728
    %v2730 = vand.u32 %v1402, 4294901760
    %2731 = vmatpush.msra.mxu0 %v2730
    %v2732 = vand.u32 %v1401, 4294901760
    %2733 = vmatpush.msra.mxu0 %v2732
    %v2734 = vand.u32 %v1400, 4294901760
    %2735 = vmatpush.msra.mxu0 %v2734
    %v2736 = vand.u32 %v1399, 4294901760
    %2737 = vmatpush.msra.mxu0 %v2736
    %v2738 = vand.u32 %v1398, 4294901760
    %2739 = vmatpush.msra.mxu0 %v2738
    %v2740 = vand.u32 %v1397, 4294901760
    %2741 = vmatpush.msra.mxu0 %v2740
    %v2742 = vand.u32 %v1396, 4294901760
    %2743 = vmatpush.msra.mxu0 %v2742
    %v2744 = vand.u32 %v1395, 4294901760
    %2745 = vmatpush.msra.mxu0 %v2744
    %v2746 = vand.u32 %v1394, 4294901760
    %2747 = vmatpush.msra.mxu0 %v2746
    %v2748 = vand.u32 %v1393, 4294901760
    %2749 = vmatpush.msra.mxu0 %v2748
    %v2750 = vand.u32 %v1392, 4294901760
    %2751 = vmatpush.msra.mxu0 %v2750
    %v2752 = vand.u32 %v1391, 4294901760
    %2753 = vmatpush.msra.mxu0 %v2752
    %v2754 = vand.u32 %v1390, 4294901760
    %2755 = vmatpush.msra.mxu0 %v2754
    %v2756 = vand.u32 %v1389, 4294901760
    %2757 = vmatpush.msra.mxu0 %v2756
    %v2758 = vand.u32 %v1388, 4294901760
    %2759 = vmatpush.msra.mxu0 %v2758
    %v2760 = vand.u32 %v2422, 4294901760
    %2761 = vmatmul.f32.gmra.mxu0 %v2760
    %v2762 = vpop.f32.mrf.mxu0
    %v2763 = vadd.f32 %v2726, %v2762
    %2764 = vdwg.mxu0
    %v2765 = vadd.f32 %v2423, %v2763
    %v2766 = vtanh.pop %v2765
    %v2767 = vld [vmem:[%s888] sm:$0x1]
    %v2768 = vand.u32 %v1403, 4294901760
    %2769 = vmatpush.msra.mxu0 %v2768
    %v2770 = vand.u32 %v1402, 4294901760
    %2771 = vmatpush.msra.mxu0 %v2770
    %v2772 = vand.u32 %v1401, 4294901760
    %2773 = vmatpush.msra.mxu0 %v2772
    %v2774 = vand.u32 %v1400, 4294901760
    %2775 = vmatpush.msra.mxu0 %v2774
    %v2776 = vand.u32 %v1399, 4294901760
    %2777 = vmatpush.msra.mxu0 %v2776
    %v2778 = vand.u32 %v1398, 4294901760
    %2779 = vmatpush.msra.mxu0 %v2778
    %v2780 = vand.u32 %v1397, 4294901760
    %2781 = vmatpush.msra.mxu0 %v2780
    %v2782 = vand.u32 %v1396, 4294901760
    %2783 = vmatpush.msra.mxu0 %v2782
    %v2784 = vand.u32 %v1395, 4294901760
    %2785 = vmatpush.msra.mxu0 %v2784
    %v2786 = vand.u32 %v1394, 4294901760
    %2787 = vmatpush.msra.mxu0 %v2786
    %v2788 = vand.u32 %v1393, 4294901760
    %2789 = vmatpush.msra.mxu0 %v2788
    %v2790 = vand.u32 %v1392, 4294901760
    %2791 = vmatpush.msra.mxu0 %v2790
    %v2792 = vand.u32 %v1391, 4294901760
    %2793 = vmatpush.msra.mxu0 %v2792
    %v2794 = vand.u32 %v1390, 4294901760
    %2795 = vmatpush.msra.mxu0 %v2794
    %v2796 = vand.u32 %v1389, 4294901760
    %2797 = vmatpush.msra.mxu0 %v2796
    %v2798 = vand.u32 %v1388, 4294901760
    %2799 = vmatpush.msra.mxu0 %v2798
    %v2800 = vand.u32 %v2766, 4294901760
    %v2801 = vsub.f32 %v2766, %v2800
    %v2802 = vand.u32 %v2801, 4294901760
    %v2803 = vsub.f32 %v2801, %v2802
    %v2804 = vand.u32 %v2803, 4294901760
    %2805 = vmatmul.f32.gmra.mxu0 %v2804
    %v2806 = vpop.f32.mrf.mxu0
    %v2807 = vadd.f32 0.0, %v2806
    %2808 = vdwg.mxu0
    %v2809 = vand.u32 %v1403, 4294901760
    %v2810 = vsub.f32 %v1403, %v2809
    %v2811 = vand.u32 %v2810, 4294901760
    %v2812 = vsub.f32 %v2810, %v2811
    %v2813 = vand.u32 %v2812, 4294901760
    %2814 = vmatpush.msra.mxu0 %v2813
    %v2815 = vand.u32 %v1402, 4294901760
    %v2816 = vsub.f32 %v1402, %v2815
    %v2817 = vand.u32 %v2816, 4294901760
    %v2818 = vsub.f32 %v2816, %v2817
    %v2819 = vand.u32 %v2818, 4294901760
    %2820 = vmatpush.msra.mxu0 %v2819
    %v2821 = vand.u32 %v1401, 4294901760
    %v2822 = vsub.f32 %v1401, %v2821
    %v2823 = vand.u32 %v2822, 4294901760
    %v2824 = vsub.f32 %v2822, %v2823
    %v2825 = vand.u32 %v2824, 4294901760
    %2826 = vmatpush.msra.mxu0 %v2825
    %v2827 = vand.u32 %v1400, 4294901760
    %v2828 = vsub.f32 %v1400, %v2827
    %v2829 = vand.u32 %v2828, 4294901760
    %v2830 = vsub.f32 %v2828, %v2829
    %v2831 = vand.u32 %v2830, 4294901760
    %2832 = vmatpush.msra.mxu0 %v2831
    %v2833 = vand.u32 %v1399, 4294901760
    %v2834 = vsub.f32 %v1399, %v2833
    %v2835 = vand.u32 %v2834, 4294901760
    %v2836 = vsub.f32 %v2834, %v2835
    %v2837 = vand.u32 %v2836, 4294901760
    %2838 = vmatpush.msra.mxu0 %v2837
    %v2839 = vand.u32 %v1398, 4294901760
    %v2840 = vsub.f32 %v1398, %v2839
    %v2841 = vand.u32 %v2840, 4294901760
    %v2842 = vsub.f32 %v2840, %v2841
    %v2843 = vand.u32 %v2842, 4294901760
    %2844 = vmatpush.msra.mxu0 %v2843
    %v2845 = vand.u32 %v1397, 4294901760
    %v2846 = vsub.f32 %v1397, %v2845
    %v2847 = vand.u32 %v2846, 4294901760
    %v2848 = vsub.f32 %v2846, %v2847
    %v2849 = vand.u32 %v2848, 4294901760
    %2850 = vmatpush.msra.mxu0 %v2849
    %v2851 = vand.u32 %v1396, 4294901760
    %v2852 = vsub.f32 %v1396, %v2851
    %v2853 = vand.u32 %v2852, 4294901760
    %v2854 = vsub.f32 %v2852, %v2853
    %v2855 = vand.u32 %v2854, 4294901760
    %2856 = vmatpush.msra.mxu0 %v2855
    %v2857 = vand.u32 %v1395, 4294901760
    %v2858 = vsub.f32 %v1395, %v2857
    %v2859 = vand.u32 %v2858, 4294901760
    %v2860 = vsub.f32 %v2858, %v2859
    %v2861 = vand.u32 %v2860, 4294901760
    %2862 = vmatpush.msra.mxu0 %v2861
    %v2863 = vand.u32 %v1394, 4294901760
    %v2864 = vsub.f32 %v1394, %v2863
    %v2865 = vand.u32 %v2864, 4294901760
    %v2866 = vsub.f32 %v2864, %v2865
    %v2867 = vand.u32 %v2866, 4294901760
    %2868 = vmatpush.msra.mxu0 %v2867
    %v2869 = vand.u32 %v1393, 4294901760
    %v2870 = vsub.f32 %v1393, %v2869
    %v2871 = vand.u32 %v2870, 4294901760
    %v2872 = vsub.f32 %v2870, %v2871
    %v2873 = vand.u32 %v2872, 4294901760
    %2874 = vmatpush.msra.mxu0 %v2873
    %v2875 = vand.u32 %v1392, 4294901760
    %v2876 = vsub.f32 %v1392, %v2875
    %v2877 = vand.u32 %v2876, 4294901760
    %v2878 = vsub.f32 %v2876, %v2877
    %v2879 = vand.u32 %v2878, 4294901760
    %2880 = vmatpush.msra.mxu0 %v2879
    %v2881 = vand.u32 %v1391, 4294901760
    %v2882 = vsub.f32 %v1391, %v2881
    %v2883 = vand.u32 %v2882, 4294901760
    %v2884 = vsub.f32 %v2882, %v2883
    %v2885 = vand.u32 %v2884, 4294901760
    %2886 = vmatpush.msra.mxu0 %v2885
    %v2887 = vand.u32 %v1390, 4294901760
    %v2888 = vsub.f32 %v1390, %v2887
    %v2889 = vand.u32 %v2888, 4294901760
    %v2890 = vsub.f32 %v2888, %v2889
    %v2891 = vand.u32 %v2890, 4294901760
    %2892 = vmatpush.msra.mxu0 %v2891
    %v2893 = vand.u32 %v1389, 4294901760
    %v2894 = vsub.f32 %v1389, %v2893
    %v2895 = vand.u32 %v2894, 4294901760
    %v2896 = vsub.f32 %v2894, %v2895
    %v2897 = vand.u32 %v2896, 4294901760
    %2898 = vmatpush.msra.mxu0 %v2897
    %v2899 = vand.u32 %v1388, 4294901760
    %v2900 = vsub.f32 %v1388, %v2899
    %v2901 = vand.u32 %v2900, 4294901760
    %v2902 = vsub.f32 %v2900, %v2901
    %v2903 = vand.u32 %v2902, 4294901760
    %2904 = vmatpush.msra.mxu0 %v2903
    %v2905 = vand.u32 %v2766, 4294901760
    %2906 = vmatmul.f32.gmra.mxu0 %v2905
    %v2907 = vpop.f32.mrf.mxu0
    %v2908 = vadd.f32 %v2807, %v2907
    %2909 = vdwg.mxu0
    %v2910 = vand.u32 %v1403, 4294901760
    %v2911 = vsub.f32 %v1403, %v2910
    %2912 = vmatpush.msra.mxu0 %v2911
    %v2913 = vand.u32 %v1402, 4294901760
    %v2914 = vsub.f32 %v1402, %v2913
    %2915 = vmatpush.msra.mxu0 %v2914
    %v2916 = vand.u32 %v1401, 4294901760
    %v2917 = vsub.f32 %v1401, %v2916
    %2918 = vmatpush.msra.mxu0 %v2917
    %v2919 = vand.u32 %v1400, 4294901760
    %v2920 = vsub.f32 %v1400, %v2919
    %2921 = vmatpush.msra.mxu0 %v2920
    %v2922 = vand.u32 %v1399, 4294901760
    %v2923 = vsub.f32 %v1399, %v2922
    %2924 = vmatpush.msra.mxu0 %v2923
    %v2925 = vand.u32 %v1398, 4294901760
    %v2926 = vsub.f32 %v1398, %v2925
    %2927 = vmatpush.msra.mxu0 %v2926
    %v2928 = vand.u32 %v1397, 4294901760
    %v2929 = vsub.f32 %v1397, %v2928
    %2930 = vmatpush.msra.mxu0 %v2929
    %v2931 = vand.u32 %v1396, 4294901760
    %v2932 = vsub.f32 %v1396, %v2931
    %2933 = vmatpush.msra.mxu0 %v2932
    %v2934 = vand.u32 %v1395, 4294901760
    %v2935 = vsub.f32 %v1395, %v2934
    %2936 = vmatpush.msra.mxu0 %v2935
    %v2937 = vand.u32 %v1394, 4294901760
    %v2938 = vsub.f32 %v1394, %v2937
    %2939 = vmatpush.msra.mxu0 %v2938
    %v2940 = vand.u32 %v1393, 4294901760
    %v2941 = vsub.f32 %v1393, %v2940
    %2942 = vmatpush.msra.mxu0 %v2941
    %v2943 = vand.u32 %v1392, 4294901760
    %v2944 = vsub.f32 %v1392, %v2943
    %2945 = vmatpush.msra.mxu0 %v2944
    %v2946 = vand.u32 %v1391, 4294901760
    %v2947 = vsub.f32 %v1391, %v2946
    %2948 = vmatpush.msra.mxu0 %v2947
    %v2949 = vand.u32 %v1390, 4294901760
    %v2950 = vsub.f32 %v1390, %v2949
    %2951 = vmatpush.msra.mxu0 %v2950
    %v2952 = vand.u32 %v1389, 4294901760
    %v2953 = vsub.f32 %v1389, %v2952
    %2954 = vmatpush.msra.mxu0 %v2953
    %v2955 = vand.u32 %v1388, 4294901760
    %v2956 = vsub.f32 %v1388, %v2955
    %2957 = vmatpush.msra.mxu0 %v2956
    %v2958 = vand.u32 %v2766, 4294901760
    %v2959 = vsub.f32 %v2766, %v2958
    %2960 = vmatmul.f32.gmra.mxu0 %v2959
    %v2961 = vpop.f32.mrf.mxu0
    %v2962 = vadd.f32 %v2908, %v2961
    %2963 = vdwg.mxu0
    %v2964 = vand.u32 %v1403, 4294901760
    %2965 = vmatpush.msra.mxu0 %v2964
    %v2966 = vand.u32 %v1402, 4294901760
    %2967 = vmatpush.msra.mxu0 %v2966
    %v2968 = vand.u32 %v1401, 4294901760
    %2969 = vmatpush.msra.mxu0 %v2968
    %v2970 = vand.u32 %v1400, 4294901760
    %2971 = vmatpush.msra.mxu0 %v2970
    %v2972 = vand.u32 %v1399, 4294901760
    %2973 = vmatpush.msra.mxu0 %v2972
    %v2974 = vand.u32 %v1398, 4294901760
    %2975 = vmatpush.msra.mxu0 %v2974
    %v2976 = vand.u32 %v1397, 4294901760
    %2977 = vmatpush.msra.mxu0 %v2976
    %v2978 = vand.u32 %v1396, 4294901760
    %2979 = vmatpush.msra.mxu0 %v2978
    %v2980 = vand.u32 %v1395, 4294901760
    %2981 = vmatpush.msra.mxu0 %v2980
    %v2982 = vand.u32 %v1394, 4294901760
    %2983 = vmatpush.msra.mxu0 %v2982
    %v2984 = vand.u32 %v1393, 4294901760
    %2985 = vmatpush.msra.mxu0 %v2984
    %v2986 = vand.u32 %v1392, 4294901760
    %2987 = vmatpush.msra.mxu0 %v2986
    %v2988 = vand.u32 %v1391, 4294901760
    %2989 = vmatpush.msra.mxu0 %v2988
    %v2990 = vand.u32 %v1390, 4294901760
    %2991 = vmatpush.msra.mxu0 %v2990
    %v2992 = vand.u32 %v1389, 4294901760
    %2993 = vmatpush.msra.mxu0 %v2992
    %v2994 = vand.u32 %v1388, 4294901760
    %2995 = vmatpush.msra.mxu0 %v2994
    %v2996 = vand.u32 %v2766, 4294901760
    %v2997 = vsub.f32 %v2766, %v2996
    %v2998 = vand.u32 %v2997, 4294901760
    %2999 = vmatmul.f32.gmra.mxu0 %v2998
    %v3000 = vpop.f32.mrf.mxu0
    %v3001 = vadd.f32 %v2962, %v3000
    %3002 = vdwg.mxu0
    %v3003 = vand.u32 %v1403, 4294901760
    %v3004 = vsub.f32 %v1403, %v3003
    %v3005 = vand.u32 %v3004, 4294901760
    %3006 = vmatpush.msra.mxu0 %v3005
    %v3007 = vand.u32 %v1402, 4294901760
    %v3008 = vsub.f32 %v1402, %v3007
    %v3009 = vand.u32 %v3008, 4294901760
    %3010 = vmatpush.msra.mxu0 %v3009
    %v3011 = vand.u32 %v1401, 4294901760
    %v3012 = vsub.f32 %v1401, %v3011
    %v3013 = vand.u32 %v3012, 4294901760
    %3014 = vmatpush.msra.mxu0 %v3013
    %v3015 = vand.u32 %v1400, 4294901760
    %v3016 = vsub.f32 %v1400, %v3015
    %v3017 = vand.u32 %v3016, 4294901760
    %3018 = vmatpush.msra.mxu0 %v3017
    %v3019 = vand.u32 %v1399, 4294901760
    %v3020 = vsub.f32 %v1399, %v3019
    %v3021 = vand.u32 %v3020, 4294901760
    %3022 = vmatpush.msra.mxu0 %v3021
    %v3023 = vand.u32 %v1398, 4294901760
    %v3024 = vsub.f32 %v1398, %v3023
    %v3025 = vand.u32 %v3024, 4294901760
    %3026 = vmatpush.msra.mxu0 %v3025
    %v3027 = vand.u32 %v1397, 4294901760
    %v3028 = vsub.f32 %v1397, %v3027
    %v3029 = vand.u32 %v3028, 4294901760
    %3030 = vmatpush.msra.mxu0 %v3029
    %v3031 = vand.u32 %v1396, 4294901760
    %v3032 = vsub.f32 %v1396, %v3031
    %v3033 = vand.u32 %v3032, 4294901760
    %3034 = vmatpush.msra.mxu0 %v3033
    %v3035 = vand.u32 %v1395, 4294901760
    %v3036 = vsub.f32 %v1395, %v3035
    %v3037 = vand.u32 %v3036, 4294901760
    %3038 = vmatpush.msra.mxu0 %v3037
    %v3039 = vand.u32 %v1394, 4294901760
    %v3040 = vsub.f32 %v1394, %v3039
    %v3041 = vand.u32 %v3040, 4294901760
    %3042 = vmatpush.msra.mxu0 %v3041
    %v3043 = vand.u32 %v1393, 4294901760
    %v3044 = vsub.f32 %v1393, %v3043
    %v3045 = vand.u32 %v3044, 4294901760
    %3046 = vmatpush.msra.mxu0 %v3045
    %v3047 = vand.u32 %v1392, 4294901760
    %v3048 = vsub.f32 %v1392, %v3047
    %v3049 = vand.u32 %v3048, 4294901760
    %3050 = vmatpush.msra.mxu0 %v3049
    %v3051 = vand.u32 %v1391, 4294901760
    %v3052 = vsub.f32 %v1391, %v3051
    %v3053 = vand.u32 %v3052, 4294901760
    %3054 = vmatpush.msra.mxu0 %v3053
    %v3055 = vand.u32 %v1390, 4294901760
    %v3056 = vsub.f32 %v1390, %v3055
    %v3057 = vand.u32 %v3056, 4294901760
    %3058 = vmatpush.msra.mxu0 %v3057
    %v3059 = vand.u32 %v1389, 4294901760
    %v3060 = vsub.f32 %v1389, %v3059
    %v3061 = vand.u32 %v3060, 4294901760
    %3062 = vmatpush.msra.mxu0 %v3061
    %v3063 = vand.u32 %v1388, 4294901760
    %v3064 = vsub.f32 %v1388, %v3063
    %v3065 = vand.u32 %v3064, 4294901760
    %3066 = vmatpush.msra.mxu0 %v3065
    %v3067 = vand.u32 %v2766, 4294901760
    %3068 = vmatmul.f32.gmra.mxu0 %v3067
    %v3069 = vpop.f32.mrf.mxu0
    %v3070 = vadd.f32 %v3001, %v3069
    %3071 = vdwg.mxu0
    %v3072 = vand.u32 %v1403, 4294901760
    %3073 = vmatpush.msra.mxu0 %v3072
    %v3074 = vand.u32 %v1402, 4294901760
    %3075 = vmatpush.msra.mxu0 %v3074
    %v3076 = vand.u32 %v1401, 4294901760
    %3077 = vmatpush.msra.mxu0 %v3076
    %v3078 = vand.u32 %v1400, 4294901760
    %3079 = vmatpush.msra.mxu0 %v3078
    %v3080 = vand.u32 %v1399, 4294901760
    %3081 = vmatpush.msra.mxu0 %v3080
    %v3082 = vand.u32 %v1398, 4294901760
    %3083 = vmatpush.msra.mxu0 %v3082
    %v3084 = vand.u32 %v1397, 4294901760
    %3085 = vmatpush.msra.mxu0 %v3084
    %v3086 = vand.u32 %v1396, 4294901760
    %3087 = vmatpush.msra.mxu0 %v3086
    %v3088 = vand.u32 %v1395, 4294901760
    %3089 = vmatpush.msra.mxu0 %v3088
    %v3090 = vand.u32 %v1394, 4294901760
    %3091 = vmatpush.msra.mxu0 %v3090
    %v3092 = vand.u32 %v1393, 4294901760
    %3093 = vmatpush.msra.mxu0 %v3092
    %v3094 = vand.u32 %v1392, 4294901760
    %3095 = vmatpush.msra.mxu0 %v3094
    %v3096 = vand.u32 %v1391, 4294901760
    %3097 = vmatpush.msra.mxu0 %v3096
    %v3098 = vand.u32 %v1390, 4294901760
    %3099 = vmatpush.msra.mxu0 %v3098
    %v3100 = vand.u32 %v1389, 4294901760
    %3101 = vmatpush.msra.mxu0 %v3100
    %v3102 = vand.u32 %v1388, 4294901760
    %3103 = vmatpush.msra.mxu0 %v3102
    %v3104 = vand.u32 %v2766, 4294901760
    %3105 = vmatmul.f32.gmra.mxu0 %v3104
    %v3106 = vpop.f32.mrf.mxu0
    %v3107 = vadd.f32 %v3070, %v3106
    %3108 = vdwg.mxu0
    %v3109 = vadd.f32 %v2767, %v3107
    %v3110 = vtanh.pop %v3109
    %v3111 = vld [vmem:[%s1054] sm:$0x1]
    %v3112 = vand.u32 %v1403, 4294901760
    %3113 = vmatpush.msra.mxu0 %v3112
    %v3114 = vand.u32 %v1402, 4294901760
    %3115 = vmatpush.msra.mxu0 %v3114
    %v3116 = vand.u32 %v1401, 4294901760
    %3117 = vmatpush.msra.mxu0 %v3116
    %v3118 = vand.u32 %v1400, 4294901760
    %3119 = vmatpush.msra.mxu0 %v3118
    %v3120 = vand.u32 %v1399, 4294901760
    %3121 = vmatpush.msra.mxu0 %v3120
    %v3122 = vand.u32 %v1398, 4294901760
    %3123 = vmatpush.msra.mxu0 %v3122
    %v3124 = vand.u32 %v1397, 4294901760
    %3125 = vmatpush.msra.mxu0 %v3124
    %v3126 = vand.u32 %v1396, 4294901760
    %3127 = vmatpush.msra.mxu0 %v3126
    %v3128 = vand.u32 %v1395, 4294901760
    %3129 = vmatpush.msra.mxu0 %v3128
    %v3130 = vand.u32 %v1394, 4294901760
    %3131 = vmatpush.msra.mxu0 %v3130
    %v3132 = vand.u32 %v1393, 4294901760
    %3133 = vmatpush.msra.mxu0 %v3132
    %v3134 = vand.u32 %v1392, 4294901760
    %3135 = vmatpush.msra.mxu0 %v3134
    %v3136 = vand.u32 %v1391, 4294901760
    %3137 = vmatpush.msra.mxu0 %v3136
    %v3138 = vand.u32 %v1390, 4294901760
    %3139 = vmatpush.msra.mxu0 %v3138
    %v3140 = vand.u32 %v1389, 4294901760
    %3141 = vmatpush.msra.mxu0 %v3140
    %v3142 = vand.u32 %v1388, 4294901760
    %3143 = vmatpush.msra.mxu0 %v3142
    %v3144 = vand.u32 %v3110, 4294901760
    %v3145 = vsub.f32 %v3110, %v3144
    %v3146 = vand.u32 %v3145, 4294901760
    %v3147 = vsub.f32 %v3145, %v3146
    %v3148 = vand.u32 %v3147, 4294901760
    %3149 = vmatmul.f32.gmra.mxu0 %v3148
    %v3150 = vpop.f32.mrf.mxu0
    %v3151 = vadd.f32 0.0, %v3150
    %3152 = vdwg.mxu0
    %v3153 = vand.u32 %v1403, 4294901760
    %v3154 = vsub.f32 %v1403, %v3153
    %v3155 = vand.u32 %v3154, 4294901760
    %v3156 = vsub.f32 %v3154, %v3155
    %v3157 = vand.u32 %v3156, 4294901760
    %3158 = vmatpush.msra.mxu0 %v3157
    %v3159 = vand.u32 %v1402, 4294901760
    %v3160 = vsub.f32 %v1402, %v3159
    %v3161 = vand.u32 %v3160, 4294901760
    %v3162 = vsub.f32 %v3160, %v3161
    %v3163 = vand.u32 %v3162, 4294901760
    %3164 = vmatpush.msra.mxu0 %v3163
    %v3165 = vand.u32 %v1401, 4294901760
    %v3166 = vsub.f32 %v1401, %v3165
    %v3167 = vand.u32 %v3166, 4294901760
    %v3168 = vsub.f32 %v3166, %v3167
    %v3169 = vand.u32 %v3168, 4294901760
    %3170 = vmatpush.msra.mxu0 %v3169
    %v3171 = vand.u32 %v1400, 4294901760
    %v3172 = vsub.f32 %v1400, %v3171
    %v3173 = vand.u32 %v3172, 4294901760
    %v3174 = vsub.f32 %v3172, %v3173
    %v3175 = vand.u32 %v3174, 4294901760
    %3176 = vmatpush.msra.mxu0 %v3175
    %v3177 = vand.u32 %v1399, 4294901760
    %v3178 = vsub.f32 %v1399, %v3177
    %v3179 = vand.u32 %v3178, 4294901760
    %v3180 = vsub.f32 %v3178, %v3179
    %v3181 = vand.u32 %v3180, 4294901760
    %3182 = vmatpush.msra.mxu0 %v3181
    %v3183 = vand.u32 %v1398, 4294901760
    %v3184 = vsub.f32 %v1398, %v3183
    %v3185 = vand.u32 %v3184, 4294901760
    %v3186 = vsub.f32 %v3184, %v3185
    %v3187 = vand.u32 %v3186, 4294901760
    %3188 = vmatpush.msra.mxu0 %v3187
    %v3189 = vand.u32 %v1397, 4294901760
    %v3190 = vsub.f32 %v1397, %v3189
    %v3191 = vand.u32 %v3190, 4294901760
    %v3192 = vsub.f32 %v3190, %v3191
    %v3193 = vand.u32 %v3192, 4294901760
    %3194 = vmatpush.msra.mxu0 %v3193
    %v3195 = vand.u32 %v1396, 4294901760
    %v3196 = vsub.f32 %v1396, %v3195
    %v3197 = vand.u32 %v3196, 4294901760
    %v3198 = vsub.f32 %v3196, %v3197
    %v3199 = vand.u32 %v3198, 4294901760
    %3200 = vmatpush.msra.mxu0 %v3199
    %v3201 = vand.u32 %v1395, 4294901760
    %v3202 = vsub.f32 %v1395, %v3201
    %v3203 = vand.u32 %v3202, 4294901760
    %v3204 = vsub.f32 %v3202, %v3203
    %v3205 = vand.u32 %v3204, 4294901760
    %3206 = vmatpush.msra.mxu0 %v3205
    %v3207 = vand.u32 %v1394, 4294901760
    %v3208 = vsub.f32 %v1394, %v3207
    %v3209 = vand.u32 %v3208, 4294901760
    %v3210 = vsub.f32 %v3208, %v3209
    %v3211 = vand.u32 %v3210, 4294901760
    %3212 = vmatpush.msra.mxu0 %v3211
    %v3213 = vand.u32 %v1393, 4294901760
    %v3214 = vsub.f32 %v1393, %v3213
    %v3215 = vand.u32 %v3214, 4294901760
    %v3216 = vsub.f32 %v3214, %v3215
    %v3217 = vand.u32 %v3216, 4294901760
    %3218 = vmatpush.msra.mxu0 %v3217
    %v3219 = vand.u32 %v1392, 4294901760
    %v3220 = vsub.f32 %v1392, %v3219
    %v3221 = vand.u32 %v3220, 4294901760
    %v3222 = vsub.f32 %v3220, %v3221
    %v3223 = vand.u32 %v3222, 4294901760
    %3224 = vmatpush.msra.mxu0 %v3223
    %v3225 = vand.u32 %v1391, 4294901760
    %v3226 = vsub.f32 %v1391, %v3225
    %v3227 = vand.u32 %v3226, 4294901760
    %v3228 = vsub.f32 %v3226, %v3227
    %v3229 = vand.u32 %v3228, 4294901760
    %3230 = vmatpush.msra.mxu0 %v3229
    %v3231 = vand.u32 %v1390, 4294901760
    %v3232 = vsub.f32 %v1390, %v3231
    %v3233 = vand.u32 %v3232, 4294901760
    %v3234 = vsub.f32 %v3232, %v3233
    %v3235 = vand.u32 %v3234, 4294901760
    %3236 = vmatpush.msra.mxu0 %v3235
    %v3237 = vand.u32 %v1389, 4294901760
    %v3238 = vsub.f32 %v1389, %v3237
    %v3239 = vand.u32 %v3238, 4294901760
    %v3240 = vsub.f32 %v3238, %v3239
    %v3241 = vand.u32 %v3240, 4294901760
    %3242 = vmatpush.msra.mxu0 %v3241
    %v3243 = vand.u32 %v1388, 4294901760
    %v3244 = vsub.f32 %v1388, %v3243
    %v3245 = vand.u32 %v3244, 4294901760
    %v3246 = vsub.f32 %v3244, %v3245
    %v3247 = vand.u32 %v3246, 4294901760
    %3248 = vmatpush.msra.mxu0 %v3247
    %v3249 = vand.u32 %v3110, 4294901760
    %3250 = vmatmul.f32.gmra.mxu0 %v3249
    %v3251 = vpop.f32.mrf.mxu0
    %v3252 = vadd.f32 %v3151, %v3251
    %3253 = vdwg.mxu0
    %v3254 = vand.u32 %v1403, 4294901760
    %v3255 = vsub.f32 %v1403, %v3254
    %3256 = vmatpush.msra.mxu0 %v3255
    %v3257 = vand.u32 %v1402, 4294901760
    %v3258 = vsub.f32 %v1402, %v3257
    %3259 = vmatpush.msra.mxu0 %v3258
    %v3260 = vand.u32 %v1401, 4294901760
    %v3261 = vsub.f32 %v1401, %v3260
    %3262 = vmatpush.msra.mxu0 %v3261
    %v3263 = vand.u32 %v1400, 4294901760
    %v3264 = vsub.f32 %v1400, %v3263
    %3265 = vmatpush.msra.mxu0 %v3264
    %v3266 = vand.u32 %v1399, 4294901760
    %v3267 = vsub.f32 %v1399, %v3266
    %3268 = vmatpush.msra.mxu0 %v3267
    %v3269 = vand.u32 %v1398, 4294901760
    %v3270 = vsub.f32 %v1398, %v3269
    %3271 = vmatpush.msra.mxu0 %v3270
    %v3272 = vand.u32 %v1397, 4294901760
    %v3273 = vsub.f32 %v1397, %v3272
    %3274 = vmatpush.msra.mxu0 %v3273
    %v3275 = vand.u32 %v1396, 4294901760
    %v3276 = vsub.f32 %v1396, %v3275
    %3277 = vmatpush.msra.mxu0 %v3276
    %v3278 = vand.u32 %v1395, 4294901760
    %v3279 = vsub.f32 %v1395, %v3278
    %3280 = vmatpush.msra.mxu0 %v3279
    %v3281 = vand.u32 %v1394, 4294901760
    %v3282 = vsub.f32 %v1394, %v3281
    %3283 = vmatpush.msra.mxu0 %v3282
    %v3284 = vand.u32 %v1393, 4294901760
    %v3285 = vsub.f32 %v1393, %v3284
    %3286 = vmatpush.msra.mxu0 %v3285
    %v3287 = vand.u32 %v1392, 4294901760
    %v3288 = vsub.f32 %v1392, %v3287
    %3289 = vmatpush.msra.mxu0 %v3288
    %v3290 = vand.u32 %v1391, 4294901760
    %v3291 = vsub.f32 %v1391, %v3290
    %3292 = vmatpush.msra.mxu0 %v3291
    %v3293 = vand.u32 %v1390, 4294901760
    %v3294 = vsub.f32 %v1390, %v3293
    %3295 = vmatpush.msra.mxu0 %v3294
    %v3296 = vand.u32 %v1389, 4294901760
    %v3297 = vsub.f32 %v1389, %v3296
    %3298 = vmatpush.msra.mxu0 %v3297
    %v3299 = vand.u32 %v1388, 4294901760
    %v3300 = vsub.f32 %v1388, %v3299
    %3301 = vmatpush.msra.mxu0 %v3300
    %v3302 = vand.u32 %v3110, 4294901760
    %v3303 = vsub.f32 %v3110, %v3302
    %3304 = vmatmul.f32.gmra.mxu0 %v3303
    %v3305 = vpop.f32.mrf.mxu0
    %v3306 = vadd.f32 %v3252, %v3305
    %3307 = vdwg.mxu0
    %v3308 = vand.u32 %v1403, 4294901760
    %3309 = vmatpush.msra.mxu0 %v3308
    %v3310 = vand.u32 %v1402, 4294901760
    %3311 = vmatpush.msra.mxu0 %v3310
    %v3312 = vand.u32 %v1401, 4294901760
    %3313 = vmatpush.msra.mxu0 %v3312
    %v3314 = vand.u32 %v1400, 4294901760
    %3315 = vmatpush.msra.mxu0 %v3314
    %v3316 = vand.u32 %v1399, 4294901760
    %3317 = vmatpush.msra.mxu0 %v3316
    %v3318 = vand.u32 %v1398, 4294901760
    %3319 = vmatpush.msra.mxu0 %v3318
    %v3320 = vand.u32 %v1397, 4294901760
    %3321 = vmatpush.msra.mxu0 %v3320
    %v3322 = vand.u32 %v1396, 4294901760
    %3323 = vmatpush.msra.mxu0 %v3322
    %v3324 = vand.u32 %v1395, 4294901760
    %3325 = vmatpush.msra.mxu0 %v3324
    %v3326 = vand.u32 %v1394, 4294901760
    %3327 = vmatpush.msra.mxu0 %v3326
    %v3328 = vand.u32 %v1393, 4294901760
    %3329 = vmatpush.msra.mxu0 %v3328
    %v3330 = vand.u32 %v1392, 4294901760
    %3331 = vmatpush.msra.mxu0 %v3330
    %v3332 = vand.u32 %v1391, 4294901760
    %3333 = vmatpush.msra.mxu0 %v3332
    %v3334 = vand.u32 %v1390, 4294901760
    %3335 = vmatpush.msra.mxu0 %v3334
    %v3336 = vand.u32 %v1389, 4294901760
    %3337 = vmatpush.msra.mxu0 %v3336
    %v3338 = vand.u32 %v1388, 4294901760
    %3339 = vmatpush.msra.mxu0 %v3338
    %v3340 = vand.u32 %v3110, 4294901760
    %v3341 = vsub.f32 %v3110, %v3340
    %v3342 = vand.u32 %v3341, 4294901760
    %3343 = vmatmul.f32.gmra.mxu0 %v3342
    %v3344 = vpop.f32.mrf.mxu0
    %v3345 = vadd.f32 %v3306, %v3344
    %3346 = vdwg.mxu0
    %v3347 = vand.u32 %v1403, 4294901760
    %v3348 = vsub.f32 %v1403, %v3347
    %v3349 = vand.u32 %v3348, 4294901760
    %3350 = vmatpush.msra.mxu0 %v3349
    %v3351 = vand.u32 %v1402, 4294901760
    %v3352 = vsub.f32 %v1402, %v3351
    %v3353 = vand.u32 %v3352, 4294901760
    %3354 = vmatpush.msra.mxu0 %v3353
    %v3355 = vand.u32 %v1401, 4294901760
    %v3356 = vsub.f32 %v1401, %v3355
    %v3357 = vand.u32 %v3356, 4294901760
    %3358 = vmatpush.msra.mxu0 %v3357
    %v3359 = vand.u32 %v1400, 4294901760
    %v3360 = vsub.f32 %v1400, %v3359
    %v3361 = vand.u32 %v3360, 4294901760
    %3362 = vmatpush.msra.mxu0 %v3361
    %v3363 = vand.u32 %v1399, 4294901760
    %v3364 = vsub.f32 %v1399, %v3363
    %v3365 = vand.u32 %v3364, 4294901760
    %3366 = vmatpush.msra.mxu0 %v3365
    %v3367 = vand.u32 %v1398, 4294901760
    %v3368 = vsub.f32 %v1398, %v3367
    %v3369 = vand.u32 %v3368, 4294901760
    %3370 = vmatpush.msra.mxu0 %v3369
    %v3371 = vand.u32 %v1397, 4294901760
    %v3372 = vsub.f32 %v1397, %v3371
    %v3373 = vand.u32 %v3372, 4294901760
    %3374 = vmatpush.msra.mxu0 %v3373
    %v3375 = vand.u32 %v1396, 4294901760
    %v3376 = vsub.f32 %v1396, %v3375
    %v3377 = vand.u32 %v3376, 4294901760
    %3378 = vmatpush.msra.mxu0 %v3377
    %v3379 = vand.u32 %v1395, 4294901760
    %v3380 = vsub.f32 %v1395, %v3379
    %v3381 = vand.u32 %v3380, 4294901760
    %3382 = vmatpush.msra.mxu0 %v3381
    %v3383 = vand.u32 %v1394, 4294901760
    %v3384 = vsub.f32 %v1394, %v3383
    %v3385 = vand.u32 %v3384, 4294901760
    %3386 = vmatpush.msra.mxu0 %v3385
    %v3387 = vand.u32 %v1393, 4294901760
    %v3388 = vsub.f32 %v1393, %v3387
    %v3389 = vand.u32 %v3388, 4294901760
    %3390 = vmatpush.msra.mxu0 %v3389
    %v3391 = vand.u32 %v1392, 4294901760
    %v3392 = vsub.f32 %v1392, %v3391
    %v3393 = vand.u32 %v3392, 4294901760
    %3394 = vmatpush.msra.mxu0 %v3393
    %v3395 = vand.u32 %v1391, 4294901760
    %v3396 = vsub.f32 %v1391, %v3395
    %v3397 = vand.u32 %v3396, 4294901760
    %3398 = vmatpush.msra.mxu0 %v3397
    %v3399 = vand.u32 %v1390, 4294901760
    %v3400 = vsub.f32 %v1390, %v3399
    %v3401 = vand.u32 %v3400, 4294901760
    %3402 = vmatpush.msra.mxu0 %v3401
    %v3403 = vand.u32 %v1389, 4294901760
    %v3404 = vsub.f32 %v1389, %v3403
    %v3405 = vand.u32 %v3404, 4294901760
    %3406 = vmatpush.msra.mxu0 %v3405
    %v3407 = vand.u32 %v1388, 4294901760
    %v3408 = vsub.f32 %v1388, %v3407
    %v3409 = vand.u32 %v3408, 4294901760
    %3410 = vmatpush.msra.mxu0 %v3409
    %v3411 = vand.u32 %v3110, 4294901760
    %3412 = vmatmul.f32.gmra.mxu0 %v3411
    %v3413 = vpop.f32.mrf.mxu0
    %v3414 = vadd.f32 %v3345, %v3413
    %3415 = vdwg.mxu0
    %v3416 = vand.u32 %v1403, 4294901760
    %3417 = vmatpush.msra.mxu0 %v3416
    %v3418 = vand.u32 %v1402, 4294901760
    %3419 = vmatpush.msra.mxu0 %v3418
    %v3420 = vand.u32 %v1401, 4294901760
    %3421 = vmatpush.msra.mxu0 %v3420
    %v3422 = vand.u32 %v1400, 4294901760
    %3423 = vmatpush.msra.mxu0 %v3422
    %v3424 = vand.u32 %v1399, 4294901760
    %3425 = vmatpush.msra.mxu0 %v3424
    %v3426 = vand.u32 %v1398, 4294901760
    %3427 = vmatpush.msra.mxu0 %v3426
    %v3428 = vand.u32 %v1397, 4294901760
    %3429 = vmatpush.msra.mxu0 %v3428
    %v3430 = vand.u32 %v1396, 4294901760
    %3431 = vmatpush.msra.mxu0 %v3430
    %v3432 = vand.u32 %v1395, 4294901760
    %3433 = vmatpush.msra.mxu0 %v3432
    %v3434 = vand.u32 %v1394, 4294901760
    %3435 = vmatpush.msra.mxu0 %v3434
    %v3436 = vand.u32 %v1393, 4294901760
    %3437 = vmatpush.msra.mxu0 %v3436
    %v3438 = vand.u32 %v1392, 4294901760
    %3439 = vmatpush.msra.mxu0 %v3438
    %v3440 = vand.u32 %v1391, 4294901760
    %3441 = vmatpush.msra.mxu0 %v3440
    %v3442 = vand.u32 %v1390, 4294901760
    %3443 = vmatpush.msra.mxu0 %v3442
    %v3444 = vand.u32 %v1389, 4294901760
    %3445 = vmatpush.msra.mxu0 %v3444
    %v3446 = vand.u32 %v1388, 4294901760
    %3447 = vmatpush.msra.mxu0 %v3446
    %v3448 = vand.u32 %v3110, 4294901760
    %3449 = vmatmul.f32.gmra.mxu0 %v3448
    %v3450 = vpop.f32.mrf.mxu0
    %v3451 = vadd.f32 %v3414, %v3450
    %3452 = vdwg.mxu0
    %v3453 = vadd.f32 %v3111, %v3451
    %v3454 = vtanh.pop %v3453
    %v3455 = vld [vmem:[%s1220] sm:$0x1]
    %v3456 = vand.u32 %v1403, 4294901760
    %3457 = vmatpush.msra.mxu0 %v3456
    %v3458 = vand.u32 %v1402, 4294901760
    %3459 = vmatpush.msra.mxu0 %v3458
    %v3460 = vand.u32 %v1401, 4294901760
    %3461 = vmatpush.msra.mxu0 %v3460
    %v3462 = vand.u32 %v1400, 4294901760
    %3463 = vmatpush.msra.mxu0 %v3462
    %v3464 = vand.u32 %v1399, 4294901760
    %3465 = vmatpush.msra.mxu0 %v3464
    %v3466 = vand.u32 %v1398, 4294901760
    %3467 = vmatpush.msra.mxu0 %v3466
    %v3468 = vand.u32 %v1397, 4294901760
    %3469 = vmatpush.msra.mxu0 %v3468
    %v3470 = vand.u32 %v1396, 4294901760
    %3471 = vmatpush.msra.mxu0 %v3470
    %v3472 = vand.u32 %v1395, 4294901760
    %3473 = vmatpush.msra.mxu0 %v3472
    %v3474 = vand.u32 %v1394, 4294901760
    %3475 = vmatpush.msra.mxu0 %v3474
    %v3476 = vand.u32 %v1393, 4294901760
    %3477 = vmatpush.msra.mxu0 %v3476
    %v3478 = vand.u32 %v1392, 4294901760
    %3479 = vmatpush.msra.mxu0 %v3478
    %v3480 = vand.u32 %v1391, 4294901760
    %3481 = vmatpush.msra.mxu0 %v3480
    %v3482 = vand.u32 %v1390, 4294901760
    %3483 = vmatpush.msra.mxu0 %v3482
    %v3484 = vand.u32 %v1389, 4294901760
    %3485 = vmatpush.msra.mxu0 %v3484
    %v3486 = vand.u32 %v1388, 4294901760
    %3487 = vmatpush.msra.mxu0 %v3486
    %v3488 = vand.u32 %v3454, 4294901760
    %v3489 = vsub.f32 %v3454, %v3488
    %v3490 = vand.u32 %v3489, 4294901760
    %v3491 = vsub.f32 %v3489, %v3490
    %v3492 = vand.u32 %v3491, 4294901760
    %3493 = vmatmul.f32.gmra.mxu0 %v3492
    %v3494 = vpop.f32.mrf.mxu0
    %v3495 = vadd.f32 0.0, %v3494
    %3496 = vdwg.mxu0
    %v3497 = vand.u32 %v1403, 4294901760
    %v3498 = vsub.f32 %v1403, %v3497
    %v3499 = vand.u32 %v3498, 4294901760
    %v3500 = vsub.f32 %v3498, %v3499
    %v3501 = vand.u32 %v3500, 4294901760
    %3502 = vmatpush.msra.mxu0 %v3501
    %v3503 = vand.u32 %v1402, 4294901760
    %v3504 = vsub.f32 %v1402, %v3503
    %v3505 = vand.u32 %v3504, 4294901760
    %v3506 = vsub.f32 %v3504, %v3505
    %v3507 = vand.u32 %v3506, 4294901760
    %3508 = vmatpush.msra.mxu0 %v3507
    %v3509 = vand.u32 %v1401, 4294901760
    %v3510 = vsub.f32 %v1401, %v3509
    %v3511 = vand.u32 %v3510, 4294901760
    %v3512 = vsub.f32 %v3510, %v3511
    %v3513 = vand.u32 %v3512, 4294901760
    %3514 = vmatpush.msra.mxu0 %v3513
    %v3515 = vand.u32 %v1400, 4294901760
    %v3516 = vsub.f32 %v1400, %v3515
    %v3517 = vand.u32 %v3516, 4294901760
    %v3518 = vsub.f32 %v3516, %v3517
    %v3519 = vand.u32 %v3518, 4294901760
    %3520 = vmatpush.msra.mxu0 %v3519
    %v3521 = vand.u32 %v1399, 4294901760
    %v3522 = vsub.f32 %v1399, %v3521
    %v3523 = vand.u32 %v3522, 4294901760
    %v3524 = vsub.f32 %v3522, %v3523
    %v3525 = vand.u32 %v3524, 4294901760
    %3526 = vmatpush.msra.mxu0 %v3525
    %v3527 = vand.u32 %v1398, 4294901760
    %v3528 = vsub.f32 %v1398, %v3527
    %v3529 = vand.u32 %v3528, 4294901760
    %v3530 = vsub.f32 %v3528, %v3529
    %v3531 = vand.u32 %v3530, 4294901760
    %3532 = vmatpush.msra.mxu0 %v3531
    %v3533 = vand.u32 %v1397, 4294901760
    %v3534 = vsub.f32 %v1397, %v3533
    %v3535 = vand.u32 %v3534, 4294901760
    %v3536 = vsub.f32 %v3534, %v3535
    %v3537 = vand.u32 %v3536, 4294901760
    %3538 = vmatpush.msra.mxu0 %v3537
    %v3539 = vand.u32 %v1396, 4294901760
    %v3540 = vsub.f32 %v1396, %v3539
    %v3541 = vand.u32 %v3540, 4294901760
    %v3542 = vsub.f32 %v3540, %v3541
    %v3543 = vand.u32 %v3542, 4294901760
    %3544 = vmatpush.msra.mxu0 %v3543
    %v3545 = vand.u32 %v1395, 4294901760
    %v3546 = vsub.f32 %v1395, %v3545
    %v3547 = vand.u32 %v3546, 4294901760
    %v3548 = vsub.f32 %v3546, %v3547
    %v3549 = vand.u32 %v3548, 4294901760
    %3550 = vmatpush.msra.mxu0 %v3549
    %v3551 = vand.u32 %v1394, 4294901760
    %v3552 = vsub.f32 %v1394, %v3551
    %v3553 = vand.u32 %v3552, 4294901760
    %v3554 = vsub.f32 %v3552, %v3553
    %v3555 = vand.u32 %v3554, 4294901760
    %3556 = vmatpush.msra.mxu0 %v3555
    %v3557 = vand.u32 %v1393, 4294901760
    %v3558 = vsub.f32 %v1393, %v3557
    %v3559 = vand.u32 %v3558, 4294901760
    %v3560 = vsub.f32 %v3558, %v3559
    %v3561 = vand.u32 %v3560, 4294901760
    %3562 = vmatpush.msra.mxu0 %v3561
    %v3563 = vand.u32 %v1392, 4294901760
    %v3564 = vsub.f32 %v1392, %v3563
    %v3565 = vand.u32 %v3564, 4294901760
    %v3566 = vsub.f32 %v3564, %v3565
    %v3567 = vand.u32 %v3566, 4294901760
    %3568 = vmatpush.msra.mxu0 %v3567
    %v3569 = vand.u32 %v1391, 4294901760
    %v3570 = vsub.f32 %v1391, %v3569
    %v3571 = vand.u32 %v3570, 4294901760
    %v3572 = vsub.f32 %v3570, %v3571
    %v3573 = vand.u32 %v3572, 4294901760
    %3574 = vmatpush.msra.mxu0 %v3573
    %v3575 = vand.u32 %v1390, 4294901760
    %v3576 = vsub.f32 %v1390, %v3575
    %v3577 = vand.u32 %v3576, 4294901760
    %v3578 = vsub.f32 %v3576, %v3577
    %v3579 = vand.u32 %v3578, 4294901760
    %3580 = vmatpush.msra.mxu0 %v3579
    %v3581 = vand.u32 %v1389, 4294901760
    %v3582 = vsub.f32 %v1389, %v3581
    %v3583 = vand.u32 %v3582, 4294901760
    %v3584 = vsub.f32 %v3582, %v3583
    %v3585 = vand.u32 %v3584, 4294901760
    %3586 = vmatpush.msra.mxu0 %v3585
    %v3587 = vand.u32 %v1388, 4294901760
    %v3588 = vsub.f32 %v1388, %v3587
    %v3589 = vand.u32 %v3588, 4294901760
    %v3590 = vsub.f32 %v3588, %v3589
    %v3591 = vand.u32 %v3590, 4294901760
    %3592 = vmatpush.msra.mxu0 %v3591
    %v3593 = vand.u32 %v3454, 4294901760
    %3594 = vmatmul.f32.gmra.mxu0 %v3593
    %v3595 = vpop.f32.mrf.mxu0
    %v3596 = vadd.f32 %v3495, %v3595
    %3597 = vdwg.mxu0
    %v3598 = vand.u32 %v1403, 4294901760
    %v3599 = vsub.f32 %v1403, %v3598
    %3600 = vmatpush.msra.mxu0 %v3599
    %v3601 = vand.u32 %v1402, 4294901760
    %v3602 = vsub.f32 %v1402, %v3601
    %3603 = vmatpush.msra.mxu0 %v3602
    %v3604 = vand.u32 %v1401, 4294901760
    %v3605 = vsub.f32 %v1401, %v3604
    %3606 = vmatpush.msra.mxu0 %v3605
    %v3607 = vand.u32 %v1400, 4294901760
    %v3608 = vsub.f32 %v1400, %v3607
    %3609 = vmatpush.msra.mxu0 %v3608
    %v3610 = vand.u32 %v1399, 4294901760
    %v3611 = vsub.f32 %v1399, %v3610
    %3612 = vmatpush.msra.mxu0 %v3611
    %v3613 = vand.u32 %v1398, 4294901760
    %v3614 = vsub.f32 %v1398, %v3613
    %3615 = vmatpush.msra.mxu0 %v3614
    %v3616 = vand.u32 %v1397, 4294901760
    %v3617 = vsub.f32 %v1397, %v3616
    %3618 = vmatpush.msra.mxu0 %v3617
    %v3619 = vand.u32 %v1396, 4294901760
    %v3620 = vsub.f32 %v1396, %v3619
    %3621 = vmatpush.msra.mxu0 %v3620
    %v3622 = vand.u32 %v1395, 4294901760
    %v3623 = vsub.f32 %v1395, %v3622
    %3624 = vmatpush.msra.mxu0 %v3623
    %v3625 = vand.u32 %v1394, 4294901760
    %v3626 = vsub.f32 %v1394, %v3625
    %3627 = vmatpush.msra.mxu0 %v3626
    %v3628 = vand.u32 %v1393, 4294901760
    %v3629 = vsub.f32 %v1393, %v3628
    %3630 = vmatpush.msra.mxu0 %v3629
    %v3631 = vand.u32 %v1392, 4294901760
    %v3632 = vsub.f32 %v1392, %v3631
    %3633 = vmatpush.msra.mxu0 %v3632
    %v3634 = vand.u32 %v1391, 4294901760
    %v3635 = vsub.f32 %v1391, %v3634
    %3636 = vmatpush.msra.mxu0 %v3635
    %v3637 = vand.u32 %v1390, 4294901760
    %v3638 = vsub.f32 %v1390, %v3637
    %3639 = vmatpush.msra.mxu0 %v3638
    %v3640 = vand.u32 %v1389, 4294901760
    %v3641 = vsub.f32 %v1389, %v3640
    %3642 = vmatpush.msra.mxu0 %v3641
    %v3643 = vand.u32 %v1388, 4294901760
    %v3644 = vsub.f32 %v1388, %v3643
    %3645 = vmatpush.msra.mxu0 %v3644
    %v3646 = vand.u32 %v3454, 4294901760
    %v3647 = vsub.f32 %v3454, %v3646
    %3648 = vmatmul.f32.gmra.mxu0 %v3647
    %v3649 = vpop.f32.mrf.mxu0
    %v3650 = vadd.f32 %v3596, %v3649
    %3651 = vdwg.mxu0
    %v3652 = vand.u32 %v1403, 4294901760
    %3653 = vmatpush.msra.mxu0 %v3652
    %v3654 = vand.u32 %v1402, 4294901760
    %3655 = vmatpush.msra.mxu0 %v3654
    %v3656 = vand.u32 %v1401, 4294901760
    %3657 = vmatpush.msra.mxu0 %v3656
    %v3658 = vand.u32 %v1400, 4294901760
    %3659 = vmatpush.msra.mxu0 %v3658
    %v3660 = vand.u32 %v1399, 4294901760
    %3661 = vmatpush.msra.mxu0 %v3660
    %v3662 = vand.u32 %v1398, 4294901760
    %3663 = vmatpush.msra.mxu0 %v3662
    %v3664 = vand.u32 %v1397, 4294901760
    %3665 = vmatpush.msra.mxu0 %v3664
    %v3666 = vand.u32 %v1396, 4294901760
    %3667 = vmatpush.msra.mxu0 %v3666
    %v3668 = vand.u32 %v1395, 4294901760
    %3669 = vmatpush.msra.mxu0 %v3668
    %v3670 = vand.u32 %v1394, 4294901760
    %3671 = vmatpush.msra.mxu0 %v3670
    %v3672 = vand.u32 %v1393, 4294901760
    %3673 = vmatpush.msra.mxu0 %v3672
    %v3674 = vand.u32 %v1392, 4294901760
    %3675 = vmatpush.msra.mxu0 %v3674
    %v3676 = vand.u32 %v1391, 4294901760
    %3677 = vmatpush.msra.mxu0 %v3676
    %v3678 = vand.u32 %v1390, 4294901760
    %3679 = vmatpush.msra.mxu0 %v3678
    %v3680 = vand.u32 %v1389, 4294901760
    %3681 = vmatpush.msra.mxu0 %v3680
    %v3682 = vand.u32 %v1388, 4294901760
    %3683 = vmatpush.msra.mxu0 %v3682
    %v3684 = vand.u32 %v3454, 4294901760
    %v3685 = vsub.f32 %v3454, %v3684
    %v3686 = vand.u32 %v3685, 4294901760
    %3687 = vmatmul.f32.gmra.mxu0 %v3686
    %v3688 = vpop.f32.mrf.mxu0
    %v3689 = vadd.f32 %v3650, %v3688
    %3690 = vdwg.mxu0
    %v3691 = vand.u32 %v1403, 4294901760
    %v3692 = vsub.f32 %v1403, %v3691
    %v3693 = vand.u32 %v3692, 4294901760
    %3694 = vmatpush.msra.mxu0 %v3693
    %v3695 = vand.u32 %v1402, 4294901760
    %v3696 = vsub.f32 %v1402, %v3695
    %v3697 = vand.u32 %v3696, 4294901760
    %3698 = vmatpush.msra.mxu0 %v3697
    %v3699 = vand.u32 %v1401, 4294901760
    %v3700 = vsub.f32 %v1401, %v3699
    %v3701 = vand.u32 %v3700, 4294901760
    %3702 = vmatpush.msra.mxu0 %v3701
    %v3703 = vand.u32 %v1400, 4294901760
    %v3704 = vsub.f32 %v1400, %v3703
    %v3705 = vand.u32 %v3704, 4294901760
    %3706 = vmatpush.msra.mxu0 %v3705
    %v3707 = vand.u32 %v1399, 4294901760
    %v3708 = vsub.f32 %v1399, %v3707
    %v3709 = vand.u32 %v3708, 4294901760
    %3710 = vmatpush.msra.mxu0 %v3709
    %v3711 = vand.u32 %v1398, 4294901760
    %v3712 = vsub.f32 %v1398, %v3711
    %v3713 = vand.u32 %v3712, 4294901760
    %3714 = vmatpush.msra.mxu0 %v3713
    %v3715 = vand.u32 %v1397, 4294901760
    %v3716 = vsub.f32 %v1397, %v3715
    %v3717 = vand.u32 %v3716, 4294901760
    %3718 = vmatpush.msra.mxu0 %v3717
    %v3719 = vand.u32 %v1396, 4294901760
    %v3720 = vsub.f32 %v1396, %v3719
    %v3721 = vand.u32 %v3720, 4294901760
    %3722 = vmatpush.msra.mxu0 %v3721
    %v3723 = vand.u32 %v1395, 4294901760
    %v3724 = vsub.f32 %v1395, %v3723
    %v3725 = vand.u32 %v3724, 4294901760
    %3726 = vmatpush.msra.mxu0 %v3725
    %v3727 = vand.u32 %v1394, 4294901760
    %v3728 = vsub.f32 %v1394, %v3727
    %v3729 = vand.u32 %v3728, 4294901760
    %3730 = vmatpush.msra.mxu0 %v3729
    %v3731 = vand.u32 %v1393, 4294901760
    %v3732 = vsub.f32 %v1393, %v3731
    %v3733 = vand.u32 %v3732, 4294901760
    %3734 = vmatpush.msra.mxu0 %v3733
    %v3735 = vand.u32 %v1392, 4294901760
    %v3736 = vsub.f32 %v1392, %v3735
    %v3737 = vand.u32 %v3736, 4294901760
    %3738 = vmatpush.msra.mxu0 %v3737
    %v3739 = vand.u32 %v1391, 4294901760
    %v3740 = vsub.f32 %v1391, %v3739
    %v3741 = vand.u32 %v3740, 4294901760
    %3742 = vmatpush.msra.mxu0 %v3741
    %v3743 = vand.u32 %v1390, 4294901760
    %v3744 = vsub.f32 %v1390, %v3743
    %v3745 = vand.u32 %v3744, 4294901760
    %3746 = vmatpush.msra.mxu0 %v3745
    %v3747 = vand.u32 %v1389, 4294901760
    %v3748 = vsub.f32 %v1389, %v3747
    %v3749 = vand.u32 %v3748, 4294901760
    %3750 = vmatpush.msra.mxu0 %v3749
    %v3751 = vand.u32 %v1388, 4294901760
    %v3752 = vsub.f32 %v1388, %v3751
    %v3753 = vand.u32 %v3752, 4294901760
    %3754 = vmatpush.msra.mxu0 %v3753
    %v3755 = vand.u32 %v3454, 4294901760
    %3756 = vmatmul.f32.gmra.mxu0 %v3755
    %v3757 = vpop.f32.mrf.mxu0
    %v3758 = vadd.f32 %v3689, %v3757
    %3759 = vdwg.mxu0
    %v3760 = vand.u32 %v1403, 4294901760
    %3761 = vmatpush.msra.mxu0 %v3760
    %v3762 = vand.u32 %v1402, 4294901760
    %3763 = vmatpush.msra.mxu0 %v3762
    %v3764 = vand.u32 %v1401, 4294901760
    %3765 = vmatpush.msra.mxu0 %v3764
    %v3766 = vand.u32 %v1400, 4294901760
    %3767 = vmatpush.msra.mxu0 %v3766
    %v3768 = vand.u32 %v1399, 4294901760
    %3769 = vmatpush.msra.mxu0 %v3768
    %v3770 = vand.u32 %v1398, 4294901760
    %3771 = vmatpush.msra.mxu0 %v3770
    %v3772 = vand.u32 %v1397, 4294901760
    %3773 = vmatpush.msra.mxu0 %v3772
    %v3774 = vand.u32 %v1396, 4294901760
    %3775 = vmatpush.msra.mxu0 %v3774
    %v3776 = vand.u32 %v1395, 4294901760
    %3777 = vmatpush.msra.mxu0 %v3776
    %v3778 = vand.u32 %v1394, 4294901760
    %3779 = vmatpush.msra.mxu0 %v3778
    %v3780 = vand.u32 %v1393, 4294901760
    %3781 = vmatpush.msra.mxu0 %v3780
    %v3782 = vand.u32 %v1392, 4294901760
    %3783 = vmatpush.msra.mxu0 %v3782
    %v3784 = vand.u32 %v1391, 4294901760
    %3785 = vmatpush.msra.mxu0 %v3784
    %v3786 = vand.u32 %v1390, 4294901760
    %3787 = vmatpush.msra.mxu0 %v3786
    %v3788 = vand.u32 %v1389, 4294901760
    %3789 = vmatpush.msra.mxu0 %v3788
    %v3790 = vand.u32 %v1388, 4294901760
    %3791 = vmatpush.msra.mxu0 %v3790
    %v3792 = vand.u32 %v3454, 4294901760
    %3793 = vmatmul.f32.gmra.mxu0 %v3792
    %v3794 = vpop.f32.mrf.mxu0
    %v3795 = vadd.f32 %v3758, %v3794
    %3796 = vdwg.mxu0
    %v3797 = vadd.f32 %v3455, %v3795
    %v3798 = vtanh.pop %v3797
    %v3799 = vld [vmem:[%s1386] sm:$0x1]
    %v3800 = vand.u32 %v1403, 4294901760
    %3801 = vmatpush.msra.mxu0 %v3800
    %v3802 = vand.u32 %v1402, 4294901760
    %3803 = vmatpush.msra.mxu0 %v3802
    %v3804 = vand.u32 %v1401, 4294901760
    %3805 = vmatpush.msra.mxu0 %v3804
    %v3806 = vand.u32 %v1400, 4294901760
    %3807 = vmatpush.msra.mxu0 %v3806
    %v3808 = vand.u32 %v1399, 4294901760
    %3809 = vmatpush.msra.mxu0 %v3808
    %v3810 = vand.u32 %v1398, 4294901760
    %3811 = vmatpush.msra.mxu0 %v3810
    %v3812 = vand.u32 %v1397, 4294901760
    %3813 = vmatpush.msra.mxu0 %v3812
    %v3814 = vand.u32 %v1396, 4294901760
    %3815 = vmatpush.msra.mxu0 %v3814
    %v3816 = vand.u32 %v1395, 4294901760
    %3817 = vmatpush.msra.mxu0 %v3816
    %v3818 = vand.u32 %v1394, 4294901760
    %3819 = vmatpush.msra.mxu0 %v3818
    %v3820 = vand.u32 %v1393, 4294901760
    %3821 = vmatpush.msra.mxu0 %v3820
    %v3822 = vand.u32 %v1392, 4294901760
    %3823 = vmatpush.msra.mxu0 %v3822
    %v3824 = vand.u32 %v1391, 4294901760
    %3825 = vmatpush.msra.mxu0 %v3824
    %v3826 = vand.u32 %v1390, 4294901760
    %3827 = vmatpush.msra.mxu0 %v3826
    %v3828 = vand.u32 %v1389, 4294901760
    %3829 = vmatpush.msra.mxu0 %v3828
    %v3830 = vand.u32 %v1388, 4294901760
    %3831 = vmatpush.msra.mxu0 %v3830
    %v3832 = vand.u32 %v3798, 4294901760
    %v3833 = vsub.f32 %v3798, %v3832
    %v3834 = vand.u32 %v3833, 4294901760
    %v3835 = vsub.f32 %v3833, %v3834
    %v3836 = vand.u32 %v3835, 4294901760
    %3837 = vmatmul.f32.gmra.mxu0 %v3836
    %v3838 = vpop.f32.mrf.mxu0
    %v3839 = vadd.f32 0.0, %v3838
    %3840 = vdwg.mxu0
    %v3841 = vand.u32 %v1403, 4294901760
    %v3842 = vsub.f32 %v1403, %v3841
    %v3843 = vand.u32 %v3842, 4294901760
    %v3844 = vsub.f32 %v3842, %v3843
    %v3845 = vand.u32 %v3844, 4294901760
    %3846 = vmatpush.msra.mxu0 %v3845
    %v3847 = vand.u32 %v1402, 4294901760
    %v3848 = vsub.f32 %v1402, %v3847
    %v3849 = vand.u32 %v3848, 4294901760
    %v3850 = vsub.f32 %v3848, %v3849
    %v3851 = vand.u32 %v3850, 4294901760
    %3852 = vmatpush.msra.mxu0 %v3851
    %v3853 = vand.u32 %v1401, 4294901760
    %v3854 = vsub.f32 %v1401, %v3853
    %v3855 = vand.u32 %v3854, 4294901760
    %v3856 = vsub.f32 %v3854, %v3855
    %v3857 = vand.u32 %v3856, 4294901760
    %3858 = vmatpush.msra.mxu0 %v3857
    %v3859 = vand.u32 %v1400, 4294901760
    %v3860 = vsub.f32 %v1400, %v3859
    %v3861 = vand.u32 %v3860, 4294901760
    %v3862 = vsub.f32 %v3860, %v3861
    %v3863 = vand.u32 %v3862, 4294901760
    %3864 = vmatpush.msra.mxu0 %v3863
    %v3865 = vand.u32 %v1399, 4294901760
    %v3866 = vsub.f32 %v1399, %v3865
    %v3867 = vand.u32 %v3866, 4294901760
    %v3868 = vsub.f32 %v3866, %v3867
    %v3869 = vand.u32 %v3868, 4294901760
    %3870 = vmatpush.msra.mxu0 %v3869
    %v3871 = vand.u32 %v1398, 4294901760
    %v3872 = vsub.f32 %v1398, %v3871
    %v3873 = vand.u32 %v3872, 4294901760
    %v3874 = vsub.f32 %v3872, %v3873
    %v3875 = vand.u32 %v3874, 4294901760
    %3876 = vmatpush.msra.mxu0 %v3875
    %v3877 = vand.u32 %v1397, 4294901760
    %v3878 = vsub.f32 %v1397, %v3877
    %v3879 = vand.u32 %v3878, 4294901760
    %v3880 = vsub.f32 %v3878, %v3879
    %v3881 = vand.u32 %v3880, 4294901760
    %3882 = vmatpush.msra.mxu0 %v3881
    %v3883 = vand.u32 %v1396, 4294901760
    %v3884 = vsub.f32 %v1396, %v3883
    %v3885 = vand.u32 %v3884, 4294901760
    %v3886 = vsub.f32 %v3884, %v3885
    %v3887 = vand.u32 %v3886, 4294901760
    %3888 = vmatpush.msra.mxu0 %v3887
    %v3889 = vand.u32 %v1395, 4294901760
    %v3890 = vsub.f32 %v1395, %v3889
    %v3891 = vand.u32 %v3890, 4294901760
    %v3892 = vsub.f32 %v3890, %v3891
    %v3893 = vand.u32 %v3892, 4294901760
    %3894 = vmatpush.msra.mxu0 %v3893
    %v3895 = vand.u32 %v1394, 4294901760
    %v3896 = vsub.f32 %v1394, %v3895
    %v3897 = vand.u32 %v3896, 4294901760
    %v3898 = vsub.f32 %v3896, %v3897
    %v3899 = vand.u32 %v3898, 4294901760
    %3900 = vmatpush.msra.mxu0 %v3899
    %v3901 = vand.u32 %v1393, 4294901760
    %v3902 = vsub.f32 %v1393, %v3901
    %v3903 = vand.u32 %v3902, 4294901760
    %v3904 = vsub.f32 %v3902, %v3903
    %v3905 = vand.u32 %v3904, 4294901760
    %3906 = vmatpush.msra.mxu0 %v3905
    %v3907 = vand.u32 %v1392, 4294901760
    %v3908 = vsub.f32 %v1392, %v3907
    %v3909 = vand.u32 %v3908, 4294901760
    %v3910 = vsub.f32 %v3908, %v3909
    %v3911 = vand.u32 %v3910, 4294901760
    %3912 = vmatpush.msra.mxu0 %v3911
    %v3913 = vand.u32 %v1391, 4294901760
    %v3914 = vsub.f32 %v1391, %v3913
    %v3915 = vand.u32 %v3914, 4294901760
    %v3916 = vsub.f32 %v3914, %v3915
    %v3917 = vand.u32 %v3916, 4294901760
    %3918 = vmatpush.msra.mxu0 %v3917
    %v3919 = vand.u32 %v1390, 4294901760
    %v3920 = vsub.f32 %v1390, %v3919
    %v3921 = vand.u32 %v3920, 4294901760
    %v3922 = vsub.f32 %v3920, %v3921
    %v3923 = vand.u32 %v3922, 4294901760
    %3924 = vmatpush.msra.mxu0 %v3923
    %v3925 = vand.u32 %v1389, 4294901760
    %v3926 = vsub.f32 %v1389, %v3925
    %v3927 = vand.u32 %v3926, 4294901760
    %v3928 = vsub.f32 %v3926, %v3927
    %v3929 = vand.u32 %v3928, 4294901760
    %3930 = vmatpush.msra.mxu0 %v3929
    %v3931 = vand.u32 %v1388, 4294901760
    %v3932 = vsub.f32 %v1388, %v3931
    %v3933 = vand.u32 %v3932, 4294901760
    %v3934 = vsub.f32 %v3932, %v3933
    %v3935 = vand.u32 %v3934, 4294901760
    %3936 = vmatpush.msra.mxu0 %v3935
    %v3937 = vand.u32 %v3798, 4294901760
    %3938 = vmatmul.f32.gmra.mxu0 %v3937
    %v3939 = vpop.f32.mrf.mxu0
    %v3940 = vadd.f32 %v3839, %v3939
    %3941 = vdwg.mxu0
    %v3942 = vand.u32 %v1403, 4294901760
    %v3943 = vsub.f32 %v1403, %v3942
    %3944 = vmatpush.msra.mxu0 %v3943
    %v3945 = vand.u32 %v1402, 4294901760
    %v3946 = vsub.f32 %v1402, %v3945
    %3947 = vmatpush.msra.mxu0 %v3946
    %v3948 = vand.u32 %v1401, 4294901760
    %v3949 = vsub.f32 %v1401, %v3948
    %3950 = vmatpush.msra.mxu0 %v3949
    %v3951 = vand.u32 %v1400, 4294901760
    %v3952 = vsub.f32 %v1400, %v3951
    %3953 = vmatpush.msra.mxu0 %v3952
    %v3954 = vand.u32 %v1399, 4294901760
    %v3955 = vsub.f32 %v1399, %v3954
    %3956 = vmatpush.msra.mxu0 %v3955
    %v3957 = vand.u32 %v1398, 4294901760
    %v3958 = vsub.f32 %v1398, %v3957
    %3959 = vmatpush.msra.mxu0 %v3958
    %v3960 = vand.u32 %v1397, 4294901760
    %v3961 = vsub.f32 %v1397, %v3960
    %3962 = vmatpush.msra.mxu0 %v3961
    %v3963 = vand.u32 %v1396, 4294901760
    %v3964 = vsub.f32 %v1396, %v3963
    %3965 = vmatpush.msra.mxu0 %v3964
    %v3966 = vand.u32 %v1395, 4294901760
    %v3967 = vsub.f32 %v1395, %v3966
    %3968 = vmatpush.msra.mxu0 %v3967
    %v3969 = vand.u32 %v1394, 4294901760
    %v3970 = vsub.f32 %v1394, %v3969
    %3971 = vmatpush.msra.mxu0 %v3970
    %v3972 = vand.u32 %v1393, 4294901760
    %v3973 = vsub.f32 %v1393, %v3972
    %3974 = vmatpush.msra.mxu0 %v3973
    %v3975 = vand.u32 %v1392, 4294901760
    %v3976 = vsub.f32 %v1392, %v3975
    %3977 = vmatpush.msra.mxu0 %v3976
    %v3978 = vand.u32 %v1391, 4294901760
    %v3979 = vsub.f32 %v1391, %v3978
    %3980 = vmatpush.msra.mxu0 %v3979
    %v3981 = vand.u32 %v1390, 4294901760
    %v3982 = vsub.f32 %v1390, %v3981
    %3983 = vmatpush.msra.mxu0 %v3982
    %v3984 = vand.u32 %v1389, 4294901760
    %v3985 = vsub.f32 %v1389, %v3984
    %3986 = vmatpush.msra.mxu0 %v3985
    %v3987 = vand.u32 %v1388, 4294901760
    %v3988 = vsub.f32 %v1388, %v3987
    %3989 = vmatpush.msra.mxu0 %v3988
    %v3990 = vand.u32 %v3798, 4294901760
    %v3991 = vsub.f32 %v3798, %v3990
    %3992 = vmatmul.f32.gmra.mxu0 %v3991
    %v3993 = vpop.f32.mrf.mxu0
    %v3994 = vadd.f32 %v3940, %v3993
    %3995 = vdwg.mxu0
    %v3996 = vand.u32 %v1403, 4294901760
    %3997 = vmatpush.msra.mxu0 %v3996
    %v3998 = vand.u32 %v1402, 4294901760
    %3999 = vmatpush.msra.mxu0 %v3998
    %v4000 = vand.u32 %v1401, 4294901760
    %4001 = vmatpush.msra.mxu0 %v4000
    %v4002 = vand.u32 %v1400, 4294901760
    %4003 = vmatpush.msra.mxu0 %v4002
    %v4004 = vand.u32 %v1399, 4294901760
    %4005 = vmatpush.msra.mxu0 %v4004
    %v4006 = vand.u32 %v1398, 4294901760
    %4007 = vmatpush.msra.mxu0 %v4006
    %v4008 = vand.u32 %v1397, 4294901760
    %4009 = vmatpush.msra.mxu0 %v4008
    %v4010 = vand.u32 %v1396, 4294901760
    %4011 = vmatpush.msra.mxu0 %v4010
    %v4012 = vand.u32 %v1395, 4294901760
    %4013 = vmatpush.msra.mxu0 %v4012
    %v4014 = vand.u32 %v1394, 4294901760
    %4015 = vmatpush.msra.mxu0 %v4014
    %v4016 = vand.u32 %v1393, 4294901760
    %4017 = vmatpush.msra.mxu0 %v4016
    %v4018 = vand.u32 %v1392, 4294901760
    %4019 = vmatpush.msra.mxu0 %v4018
    %v4020 = vand.u32 %v1391, 4294901760
    %4021 = vmatpush.msra.mxu0 %v4020
    %v4022 = vand.u32 %v1390, 4294901760
    %4023 = vmatpush.msra.mxu0 %v4022
    %v4024 = vand.u32 %v1389, 4294901760
    %4025 = vmatpush.msra.mxu0 %v4024
    %v4026 = vand.u32 %v1388, 4294901760
    %4027 = vmatpush.msra.mxu0 %v4026
    %v4028 = vand.u32 %v3798, 4294901760
    %v4029 = vsub.f32 %v3798, %v4028
    %v4030 = vand.u32 %v4029, 4294901760
    %4031 = vmatmul.f32.gmra.mxu0 %v4030
    %v4032 = vpop.f32.mrf.mxu0
    %v4033 = vadd.f32 %v3994, %v4032
    %4034 = vdwg.mxu0
    %v4035 = vand.u32 %v1403, 4294901760
    %v4036 = vsub.f32 %v1403, %v4035
    %v4037 = vand.u32 %v4036, 4294901760
    %4038 = vmatpush.msra.mxu0 %v4037
    %v4039 = vand.u32 %v1402, 4294901760
    %v4040 = vsub.f32 %v1402, %v4039
    %v4041 = vand.u32 %v4040, 4294901760
    %4042 = vmatpush.msra.mxu0 %v4041
    %v4043 = vand.u32 %v1401, 4294901760
    %v4044 = vsub.f32 %v1401, %v4043
    %v4045 = vand.u32 %v4044, 4294901760
    %4046 = vmatpush.msra.mxu0 %v4045
    %v4047 = vand.u32 %v1400, 4294901760
    %v4048 = vsub.f32 %v1400, %v4047
    %v4049 = vand.u32 %v4048, 4294901760
    %4050 = vmatpush.msra.mxu0 %v4049
    %v4051 = vand.u32 %v1399, 4294901760
    %v4052 = vsub.f32 %v1399, %v4051
    %v4053 = vand.u32 %v4052, 4294901760
    %4054 = vmatpush.msra.mxu0 %v4053
    %v4055 = vand.u32 %v1398, 4294901760
    %v4056 = vsub.f32 %v1398, %v4055
    %v4057 = vand.u32 %v4056, 4294901760
    %4058 = vmatpush.msra.mxu0 %v4057
    %v4059 = vand.u32 %v1397, 4294901760
    %v4060 = vsub.f32 %v1397, %v4059
    %v4061 = vand.u32 %v4060, 4294901760
    %4062 = vmatpush.msra.mxu0 %v4061
    %v4063 = vand.u32 %v1396, 4294901760
    %v4064 = vsub.f32 %v1396, %v4063
    %v4065 = vand.u32 %v4064, 4294901760
    %4066 = vmatpush.msra.mxu0 %v4065
    %v4067 = vand.u32 %v1395, 4294901760
    %v4068 = vsub.f32 %v1395, %v4067
    %v4069 = vand.u32 %v4068, 4294901760
    %4070 = vmatpush.msra.mxu0 %v4069
    %v4071 = vand.u32 %v1394, 4294901760
    %v4072 = vsub.f32 %v1394, %v4071
    %v4073 = vand.u32 %v4072, 4294901760
    %4074 = vmatpush.msra.mxu0 %v4073
    %v4075 = vand.u32 %v1393, 4294901760
    %v4076 = vsub.f32 %v1393, %v4075
    %v4077 = vand.u32 %v4076, 4294901760
    %4078 = vmatpush.msra.mxu0 %v4077
    %v4079 = vand.u32 %v1392, 4294901760
    %v4080 = vsub.f32 %v1392, %v4079
    %v4081 = vand.u32 %v4080, 4294901760
    %4082 = vmatpush.msra.mxu0 %v4081
    %v4083 = vand.u32 %v1391, 4294901760
    %v4084 = vsub.f32 %v1391, %v4083
    %v4085 = vand.u32 %v4084, 4294901760
    %4086 = vmatpush.msra.mxu0 %v4085
    %v4087 = vand.u32 %v1390, 4294901760
    %v4088 = vsub.f32 %v1390, %v4087
    %v4089 = vand.u32 %v4088, 4294901760
    %4090 = vmatpush.msra.mxu0 %v4089
    %v4091 = vand.u32 %v1389, 4294901760
    %v4092 = vsub.f32 %v1389, %v4091
    %v4093 = vand.u32 %v4092, 4294901760
    %4094 = vmatpush.msra.mxu0 %v4093
    %v4095 = vand.u32 %v1388, 4294901760
    %v4096 = vsub.f32 %v1388, %v4095
    %v4097 = vand.u32 %v4096, 4294901760
    %4098 = vmatpush.msra.mxu0 %v4097
    %v4099 = vand.u32 %v3798, 4294901760
    %4100 = vmatmul.f32.gmra.mxu0 %v4099
    %v4101 = vpop.f32.mrf.mxu0
    %v4102 = vadd.f32 %v4033, %v4101
    %4103 = vdwg.mxu0
    %v4104 = vand.u32 %v1403, 4294901760
    %4105 = vmatpush.msra.mxu0 %v4104
    %v4106 = vand.u32 %v1402, 4294901760
    %4107 = vmatpush.msra.mxu0 %v4106
    %v4108 = vand.u32 %v1401, 4294901760
    %4109 = vmatpush.msra.mxu0 %v4108
    %v4110 = vand.u32 %v1400, 4294901760
    %4111 = vmatpush.msra.mxu0 %v4110
    %v4112 = vand.u32 %v1399, 4294901760
    %4113 = vmatpush.msra.mxu0 %v4112
    %v4114 = vand.u32 %v1398, 4294901760
    %4115 = vmatpush.msra.mxu0 %v4114
    %v4116 = vand.u32 %v1397, 4294901760
    %4117 = vmatpush.msra.mxu0 %v4116
    %v4118 = vand.u32 %v1396, 4294901760
    %4119 = vmatpush.msra.mxu0 %v4118
    %v4120 = vand.u32 %v1395, 4294901760
    %4121 = vmatpush.msra.mxu0 %v4120
    %v4122 = vand.u32 %v1394, 4294901760
    %4123 = vmatpush.msra.mxu0 %v4122
    %v4124 = vand.u32 %v1393, 4294901760
    %4125 = vmatpush.msra.mxu0 %v4124
    %v4126 = vand.u32 %v1392, 4294901760
    %4127 = vmatpush.msra.mxu0 %v4126
    %v4128 = vand.u32 %v1391, 4294901760
    %4129 = vmatpush.msra.mxu0 %v4128
    %v4130 = vand.u32 %v1390, 4294901760
    %4131 = vmatpush.msra.mxu0 %v4130
    %v4132 = vand.u32 %v1389, 4294901760
    %4133 = vmatpush.msra.mxu0 %v4132
    %v4134 = vand.u32 %v1388, 4294901760
    %4135 = vmatpush.msra.mxu0 %v4134
    %v4136 = vand.u32 %v3798, 4294901760
    %4137 = vmatmul.f32.gmra.mxu0 %v4136
    %v4138 = vpop.f32.mrf.mxu0
    %v4139 = vadd.f32 %v4102, %v4138
    %4140 = vdwg.mxu0
    %v4141 = vadd.f32 %v3799, %v4139
    %v4142 = vtanh.pop %v4141
    %v4143 = vld [vmem:[%s4] sm:$0xff]
    %v4144 = vld [vmem:[%s4 + $0x8] sm:$0xff]
    %v4145 = vld [vmem:[%s4 + $0x10] sm:$0xff]
    %v4146 = vld [vmem:[%s4 + $0x18] sm:$0xff]
    %v4147 = vld [vmem:[%s4 + $0x20] sm:$0xff]
    %v4148 = vld [vmem:[%s4 + $0x28] sm:$0xff]
    %v4149 = vld [vmem:[%s4 + $0x30] sm:$0xff]
    %v4150 = vld [vmem:[%s4 + $0x38] sm:$0xff]
    %v4151 = vld [vmem:[%s4 + $0x40] sm:$0xff]
    %v4152 = vld [vmem:[%s4 + $0x48] sm:$0xff]
    %v4153 = vld [vmem:[%s4 + $0x50] sm:$0xff]
    %v4154 = vld [vmem:[%s4 + $0x58] sm:$0xff]
    %v4155 = vld [vmem:[%s4 + $0x60] sm:$0xff]
    %v4156 = vld [vmem:[%s4 + $0x68] sm:$0xff]
    %v4157 = vld [vmem:[%s4 + $0x70] sm:$0xff]
    %v4158 = vld [vmem:[%s4 + $0x78] sm:$0xff]
    %v4159 = vld [vmem:[#allocation3] sm:$0x1]
    %4161 = vset.pattern.permute.xlu0 0
    %4162 = vperm.xlu0 %4161, %v4159
    %v4163 = vpop.permute.xlu0 %4162
    %v4165 = vperm.slane %v4163, 0
    %v4166 = vand.u32 %v4158, 4294901760
    %4167 = vmatpush.msra.mxu0 %v4166
    %v4168 = vand.u32 %v4157, 4294901760
    %4169 = vmatpush.msra.mxu0 %v4168
    %v4170 = vand.u32 %v4156, 4294901760
    %4171 = vmatpush.msra.mxu0 %v4170
    %v4172 = vand.u32 %v4155, 4294901760
    %4173 = vmatpush.msra.mxu0 %v4172
    %v4174 = vand.u32 %v4154, 4294901760
    %4175 = vmatpush.msra.mxu0 %v4174
    %v4176 = vand.u32 %v4153, 4294901760
    %4177 = vmatpush.msra.mxu0 %v4176
    %v4178 = vand.u32 %v4152, 4294901760
    %4179 = vmatpush.msra.mxu0 %v4178
    %v4180 = vand.u32 %v4151, 4294901760
    %4181 = vmatpush.msra.mxu0 %v4180
    %v4182 = vand.u32 %v4150, 4294901760
    %4183 = vmatpush.msra.mxu0 %v4182
    %v4184 = vand.u32 %v4149, 4294901760
    %4185 = vmatpush.msra.mxu0 %v4184
    %v4186 = vand.u32 %v4148, 4294901760
    %4187 = vmatpush.msra.mxu0 %v4186
    %v4188 = vand.u32 %v4147, 4294901760
    %4189 = vmatpush.msra.mxu0 %v4188
    %v4190 = vand.u32 %v4146, 4294901760
    %4191 = vmatpush.msra.mxu0 %v4190
    %v4192 = vand.u32 %v4145, 4294901760
    %4193 = vmatpush.msra.mxu0 %v4192
    %v4194 = vand.u32 %v4144, 4294901760
    %4195 = vmatpush.msra.mxu0 %v4194
    %v4196 = vand.u32 %v4143, 4294901760
    %4197 = vmatpush.msra.mxu0 %v4196
    %v4198 = vand.u32 %v4142, 4294901760
    %v4199 = vsub.f32 %v4142, %v4198
    %v4200 = vand.u32 %v4199, 4294901760
    %v4201 = vsub.f32 %v4199, %v4200
    %v4202 = vand.u32 %v4201, 4294901760
    %4203 = vmatmul.f32.gmra.mxu0 %v4202
    %v4204 = vpop.f32.mrf.mxu0
    %v4205 = vadd.f32 %v4165, %v4204
    %4206 = vdwg.mxu0
    %v4207 = vand.u32 %v4158, 4294901760
    %v4208 = vsub.f32 %v4158, %v4207
    %v4209 = vand.u32 %v4208, 4294901760
    %v4210 = vsub.f32 %v4208, %v4209
    %v4211 = vand.u32 %v4210, 4294901760
    %4212 = vmatpush.msra.mxu0 %v4211
    %v4213 = vand.u32 %v4157, 4294901760
    %v4214 = vsub.f32 %v4157, %v4213
    %v4215 = vand.u32 %v4214, 4294901760
    %v4216 = vsub.f32 %v4214, %v4215
    %v4217 = vand.u32 %v4216, 4294901760
    %4218 = vmatpush.msra.mxu0 %v4217
    %v4219 = vand.u32 %v4156, 4294901760
    %v4220 = vsub.f32 %v4156, %v4219
    %v4221 = vand.u32 %v4220, 4294901760
    %v4222 = vsub.f32 %v4220, %v4221
    %v4223 = vand.u32 %v4222, 4294901760
    %4224 = vmatpush.msra.mxu0 %v4223
    %v4225 = vand.u32 %v4155, 4294901760
    %v4226 = vsub.f32 %v4155, %v4225
    %v4227 = vand.u32 %v4226, 4294901760
    %v4228 = vsub.f32 %v4226, %v4227
    %v4229 = vand.u32 %v4228, 4294901760
    %4230 = vmatpush.msra.mxu0 %v4229
    %v4231 = vand.u32 %v4154, 4294901760
    %v4232 = vsub.f32 %v4154, %v4231
    %v4233 = vand.u32 %v4232, 4294901760
    %v4234 = vsub.f32 %v4232, %v4233
    %v4235 = vand.u32 %v4234, 4294901760
    %4236 = vmatpush.msra.mxu0 %v4235
    %v4237 = vand.u32 %v4153, 4294901760
    %v4238 = vsub.f32 %v4153, %v4237
    %v4239 = vand.u32 %v4238, 4294901760
    %v4240 = vsub.f32 %v4238, %v4239
    %v4241 = vand.u32 %v4240, 4294901760
    %4242 = vmatpush.msra.mxu0 %v4241
    %v4243 = vand.u32 %v4152, 4294901760
    %v4244 = vsub.f32 %v4152, %v4243
    %v4245 = vand.u32 %v4244, 4294901760
    %v4246 = vsub.f32 %v4244, %v4245
    %v4247 = vand.u32 %v4246, 4294901760
    %4248 = vmatpush.msra.mxu0 %v4247
    %v4249 = vand.u32 %v4151, 4294901760
    %v4250 = vsub.f32 %v4151, %v4249
    %v4251 = vand.u32 %v4250, 4294901760
    %v4252 = vsub.f32 %v4250, %v4251
    %v4253 = vand.u32 %v4252, 4294901760
    %4254 = vmatpush.msra.mxu0 %v4253
    %v4255 = vand.u32 %v4150, 4294901760
    %v4256 = vsub.f32 %v4150, %v4255
    %v4257 = vand.u32 %v4256, 4294901760
    %v4258 = vsub.f32 %v4256, %v4257
    %v4259 = vand.u32 %v4258, 4294901760
    %4260 = vmatpush.msra.mxu0 %v4259
    %v4261 = vand.u32 %v4149, 4294901760
    %v4262 = vsub.f32 %v4149, %v4261
    %v4263 = vand.u32 %v4262, 4294901760
    %v4264 = vsub.f32 %v4262, %v4263
    %v4265 = vand.u32 %v4264, 4294901760
    %4266 = vmatpush.msra.mxu0 %v4265
    %v4267 = vand.u32 %v4148, 4294901760
    %v4268 = vsub.f32 %v4148, %v4267
    %v4269 = vand.u32 %v4268, 4294901760
    %v4270 = vsub.f32 %v4268, %v4269
    %v4271 = vand.u32 %v4270, 4294901760
    %4272 = vmatpush.msra.mxu0 %v4271
    %v4273 = vand.u32 %v4147, 4294901760
    %v4274 = vsub.f32 %v4147, %v4273
    %v4275 = vand.u32 %v4274, 4294901760
    %v4276 = vsub.f32 %v4274, %v4275
    %v4277 = vand.u32 %v4276, 4294901760
    %4278 = vmatpush.msra.mxu0 %v4277
    %v4279 = vand.u32 %v4146, 4294901760
    %v4280 = vsub.f32 %v4146, %v4279
    %v4281 = vand.u32 %v4280, 4294901760
    %v4282 = vsub.f32 %v4280, %v4281
    %v4283 = vand.u32 %v4282, 4294901760
    %4284 = vmatpush.msra.mxu0 %v4283
    %v4285 = vand.u32 %v4145, 4294901760
    %v4286 = vsub.f32 %v4145, %v4285
    %v4287 = vand.u32 %v4286, 4294901760
    %v4288 = vsub.f32 %v4286, %v4287
    %v4289 = vand.u32 %v4288, 4294901760
    %4290 = vmatpush.msra.mxu0 %v4289
    %v4291 = vand.u32 %v4144, 4294901760
    %v4292 = vsub.f32 %v4144, %v4291
    %v4293 = vand.u32 %v4292, 4294901760
    %v4294 = vsub.f32 %v4292, %v4293
    %v4295 = vand.u32 %v4294, 4294901760
    %4296 = vmatpush.msra.mxu0 %v4295
    %v4297 = vand.u32 %v4143, 4294901760
    %v4298 = vsub.f32 %v4143, %v4297
    %v4299 = vand.u32 %v4298, 4294901760
    %v4300 = vsub.f32 %v4298, %v4299
    %v4301 = vand.u32 %v4300, 4294901760
    %4302 = vmatpush.msra.mxu0 %v4301
    %v4303 = vand.u32 %v4142, 4294901760
    %4304 = vmatmul.f32.gmra.mxu0 %v4303
    %v4305 = vpop.f32.mrf.mxu0
    %v4306 = vadd.f32 %v4205, %v4305
    %4307 = vdwg.mxu0
    %v4308 = vand.u32 %v4158, 4294901760
    %v4309 = vsub.f32 %v4158, %v4308
    %4310 = vmatpush.msra.mxu0 %v4309
    %v4311 = vand.u32 %v4157, 4294901760
    %v4312 = vsub.f32 %v4157, %v4311
    %4313 = vmatpush.msra.mxu0 %v4312
    %v4314 = vand.u32 %v4156, 4294901760
    %v4315 = vsub.f32 %v4156, %v4314
    %4316 = vmatpush.msra.mxu0 %v4315
    %v4317 = vand.u32 %v4155, 4294901760
    %v4318 = vsub.f32 %v4155, %v4317
    %4319 = vmatpush.msra.mxu0 %v4318
    %v4320 = vand.u32 %v4154, 4294901760
    %v4321 = vsub.f32 %v4154, %v4320
    %4322 = vmatpush.msra.mxu0 %v4321
    %v4323 = vand.u32 %v4153, 4294901760
    %v4324 = vsub.f32 %v4153, %v4323
    %4325 = vmatpush.msra.mxu0 %v4324
    %v4326 = vand.u32 %v4152, 4294901760
    %v4327 = vsub.f32 %v4152, %v4326
    %4328 = vmatpush.msra.mxu0 %v4327
    %v4329 = vand.u32 %v4151, 4294901760
    %v4330 = vsub.f32 %v4151, %v4329
    %4331 = vmatpush.msra.mxu0 %v4330
    %v4332 = vand.u32 %v4150, 4294901760
    %v4333 = vsub.f32 %v4150, %v4332
    %4334 = vmatpush.msra.mxu0 %v4333
    %v4335 = vand.u32 %v4149, 4294901760
    %v4336 = vsub.f32 %v4149, %v4335
    %4337 = vmatpush.msra.mxu0 %v4336
    %v4338 = vand.u32 %v4148, 4294901760
    %v4339 = vsub.f32 %v4148, %v4338
    %4340 = vmatpush.msra.mxu0 %v4339
    %v4341 = vand.u32 %v4147, 4294901760
    %v4342 = vsub.f32 %v4147, %v4341
    %4343 = vmatpush.msra.mxu0 %v4342
    %v4344 = vand.u32 %v4146, 4294901760
    %v4345 = vsub.f32 %v4146, %v4344
    %4346 = vmatpush.msra.mxu0 %v4345
    %v4347 = vand.u32 %v4145, 4294901760
    %v4348 = vsub.f32 %v4145, %v4347
    %4349 = vmatpush.msra.mxu0 %v4348
    %v4350 = vand.u32 %v4144, 4294901760
    %v4351 = vsub.f32 %v4144, %v4350
    %4352 = vmatpush.msra.mxu0 %v4351
    %v4353 = vand.u32 %v4143, 4294901760
    %v4354 = vsub.f32 %v4143, %v4353
    %4355 = vmatpush.msra.mxu0 %v4354
    %v4356 = vand.u32 %v4142, 4294901760
    %v4357 = vsub.f32 %v4142, %v4356
    %4358 = vmatmul.f32.gmra.mxu0 %v4357
    %v4359 = vpop.f32.mrf.mxu0
    %v4360 = vadd.f32 %v4306, %v4359
    %4361 = vdwg.mxu0
    %v4362 = vand.u32 %v4158, 4294901760
    %4363 = vmatpush.msra.mxu0 %v4362
    %v4364 = vand.u32 %v4157, 4294901760
    %4365 = vmatpush.msra.mxu0 %v4364
    %v4366 = vand.u32 %v4156, 4294901760
    %4367 = vmatpush.msra.mxu0 %v4366
    %v4368 = vand.u32 %v4155, 4294901760
    %4369 = vmatpush.msra.mxu0 %v4368
    %v4370 = vand.u32 %v4154, 4294901760
    %4371 = vmatpush.msra.mxu0 %v4370
    %v4372 = vand.u32 %v4153, 4294901760
    %4373 = vmatpush.msra.mxu0 %v4372
    %v4374 = vand.u32 %v4152, 4294901760
    %4375 = vmatpush.msra.mxu0 %v4374
    %v4376 = vand.u32 %v4151, 4294901760
    %4377 = vmatpush.msra.mxu0 %v4376
    %v4378 = vand.u32 %v4150, 4294901760
    %4379 = vmatpush.msra.mxu0 %v4378
    %v4380 = vand.u32 %v4149, 4294901760
    %4381 = vmatpush.msra.mxu0 %v4380
    %v4382 = vand.u32 %v4148, 4294901760
    %4383 = vmatpush.msra.mxu0 %v4382
    %v4384 = vand.u32 %v4147, 4294901760
    %4385 = vmatpush.msra.mxu0 %v4384
    %v4386 = vand.u32 %v4146, 4294901760
    %4387 = vmatpush.msra.mxu0 %v4386
    %v4388 = vand.u32 %v4145, 4294901760
    %4389 = vmatpush.msra.mxu0 %v4388
    %v4390 = vand.u32 %v4144, 4294901760
    %4391 = vmatpush.msra.mxu0 %v4390
    %v4392 = vand.u32 %v4143, 4294901760
    %4393 = vmatpush.msra.mxu0 %v4392
    %v4394 = vand.u32 %v4142, 4294901760
    %v4395 = vsub.f32 %v4142, %v4394
    %v4396 = vand.u32 %v4395, 4294901760
    %4397 = vmatmul.f32.gmra.mxu0 %v4396
    %v4398 = vpop.f32.mrf.mxu0
    %v4399 = vadd.f32 %v4360, %v4398
    %4400 = vdwg.mxu0
    %v4401 = vand.u32 %v4158, 4294901760
    %v4402 = vsub.f32 %v4158, %v4401
    %v4403 = vand.u32 %v4402, 4294901760
    %4404 = vmatpush.msra.mxu0 %v4403
    %v4405 = vand.u32 %v4157, 4294901760
    %v4406 = vsub.f32 %v4157, %v4405
    %v4407 = vand.u32 %v4406, 4294901760
    %4408 = vmatpush.msra.mxu0 %v4407
    %v4409 = vand.u32 %v4156, 4294901760
    %v4410 = vsub.f32 %v4156, %v4409
    %v4411 = vand.u32 %v4410, 4294901760
    %4412 = vmatpush.msra.mxu0 %v4411
    %v4413 = vand.u32 %v4155, 4294901760
    %v4414 = vsub.f32 %v4155, %v4413
    %v4415 = vand.u32 %v4414, 4294901760
    %4416 = vmatpush.msra.mxu0 %v4415
    %v4417 = vand.u32 %v4154, 4294901760
    %v4418 = vsub.f32 %v4154, %v4417
    %v4419 = vand.u32 %v4418, 4294901760
    %4420 = vmatpush.msra.mxu0 %v4419
    %v4421 = vand.u32 %v4153, 4294901760
    %v4422 = vsub.f32 %v4153, %v4421
    %v4423 = vand.u32 %v4422, 4294901760
    %4424 = vmatpush.msra.mxu0 %v4423
    %v4425 = vand.u32 %v4152, 4294901760
    %v4426 = vsub.f32 %v4152, %v4425
    %v4427 = vand.u32 %v4426, 4294901760
    %4428 = vmatpush.msra.mxu0 %v4427
    %v4429 = vand.u32 %v4151, 4294901760
    %v4430 = vsub.f32 %v4151, %v4429
    %v4431 = vand.u32 %v4430, 4294901760
    %4432 = vmatpush.msra.mxu0 %v4431
    %v4433 = vand.u32 %v4150, 4294901760
    %v4434 = vsub.f32 %v4150, %v4433
    %v4435 = vand.u32 %v4434, 4294901760
    %4436 = vmatpush.msra.mxu0 %v4435
    %v4437 = vand.u32 %v4149, 4294901760
    %v4438 = vsub.f32 %v4149, %v4437
    %v4439 = vand.u32 %v4438, 4294901760
    %4440 = vmatpush.msra.mxu0 %v4439
    %v4441 = vand.u32 %v4148, 4294901760
    %v4442 = vsub.f32 %v4148, %v4441
    %v4443 = vand.u32 %v4442, 4294901760
    %4444 = vmatpush.msra.mxu0 %v4443
    %v4445 = vand.u32 %v4147, 4294901760
    %v4446 = vsub.f32 %v4147, %v4445
    %v4447 = vand.u32 %v4446, 4294901760
    %4448 = vmatpush.msra.mxu0 %v4447
    %v4449 = vand.u32 %v4146, 4294901760
    %v4450 = vsub.f32 %v4146, %v4449
    %v4451 = vand.u32 %v4450, 4294901760
    %4452 = vmatpush.msra.mxu0 %v4451
    %v4453 = vand.u32 %v4145, 4294901760
    %v4454 = vsub.f32 %v4145, %v4453
    %v4455 = vand.u32 %v4454, 4294901760
    %4456 = vmatpush.msra.mxu0 %v4455
    %v4457 = vand.u32 %v4144, 4294901760
    %v4458 = vsub.f32 %v4144, %v4457
    %v4459 = vand.u32 %v4458, 4294901760
    %4460 = vmatpush.msra.mxu0 %v4459
    %v4461 = vand.u32 %v4143, 4294901760
    %v4462 = vsub.f32 %v4143, %v4461
    %v4463 = vand.u32 %v4462, 4294901760
    %4464 = vmatpush.msra.mxu0 %v4463
    %v4465 = vand.u32 %v4142, 4294901760
    %4466 = vmatmul.f32.gmra.mxu0 %v4465
    %v4467 = vpop.f32.mrf.mxu0
    %v4468 = vadd.f32 %v4399, %v4467
    %4469 = vdwg.mxu0
    %v4470 = vand.u32 %v4158, 4294901760
    %4471 = vmatpush.msra.mxu0 %v4470
    %v4472 = vand.u32 %v4157, 4294901760
    %4473 = vmatpush.msra.mxu0 %v4472
    %v4474 = vand.u32 %v4156, 4294901760
    %4475 = vmatpush.msra.mxu0 %v4474
    %v4476 = vand.u32 %v4155, 4294901760
    %4477 = vmatpush.msra.mxu0 %v4476
    %v4478 = vand.u32 %v4154, 4294901760
    %4479 = vmatpush.msra.mxu0 %v4478
    %v4480 = vand.u32 %v4153, 4294901760
    %4481 = vmatpush.msra.mxu0 %v4480
    %v4482 = vand.u32 %v4152, 4294901760
    %4483 = vmatpush.msra.mxu0 %v4482
    %v4484 = vand.u32 %v4151, 4294901760
    %4485 = vmatpush.msra.mxu0 %v4484
    %v4486 = vand.u32 %v4150, 4294901760
    %4487 = vmatpush.msra.mxu0 %v4486
    %v4488 = vand.u32 %v4149, 4294901760
    %4489 = vmatpush.msra.mxu0 %v4488
    %v4490 = vand.u32 %v4148, 4294901760
    %4491 = vmatpush.msra.mxu0 %v4490
    %v4492 = vand.u32 %v4147, 4294901760
    %4493 = vmatpush.msra.mxu0 %v4492
    %v4494 = vand.u32 %v4146, 4294901760
    %4495 = vmatpush.msra.mxu0 %v4494
    %v4496 = vand.u32 %v4145, 4294901760
    %4497 = vmatpush.msra.mxu0 %v4496
    %v4498 = vand.u32 %v4144, 4294901760
    %4499 = vmatpush.msra.mxu0 %v4498
    %v4500 = vand.u32 %v4143, 4294901760
    %4501 = vmatpush.msra.mxu0 %v4500
    %v4502 = vand.u32 %v4142, 4294901760
    %4503 = vmatmul.f32.gmra.mxu0 %v4502
    %v4504 = vpop.f32.mrf.mxu0
    %v4505 = vadd.f32 %v4468, %v4504
    %4506 = vdwg.mxu0
    %vm4507 = vcmask 24576
    %4508 = vst.msk [vmem:[#allocation9] sm:$0x1] %vm4507, %v4505
    // Predicated region
    $region34: #{tpu_custom_call.1} parent=1 // pred_check
      _
    $region35: #{tpu_custom_call.1} parent=1 // pred_check_branch
      %4510 = sbr.rel (0) target = $region37
    $region36: #{tpu_custom_call.1} parent=1 // pred_region
      %4512 = vsyncadd [#allocation6], 0
      %s4514 = sshll.u32 [#allocation9], 4
      %s4515 = int_to_ptr.vmem [resolvable:$true] %s4514
      %s4516 = sshll.u32 %s6, 4
      %s4517 = int_to_ptr.hbm [resolvable:$true] %s4516
      %4519 = dma.vmem_to_hbm [thread:$0]  %s4515, 16, %s4517, [#allocation6]
    $region37: #{tpu_custom_call.1} parent=1 // pred_fallthru
      _
    // Predicated region
    $region38: #{tpu_custom_call.1} parent=1 // pred_check
      _
    $region39: #{tpu_custom_call.1} parent=1 // pred_check_branch
      %4521 = sbr.rel (0) target = $region41
    $region40: #{tpu_custom_call.1} parent=1 // pred_region
      %4523 = dma.done [#allocation6], 16
    $region41: #{tpu_custom_call.1} parent=1 // pred_fallthru
      _
    %4524 = vsyncpa [#allocation5], 1
    %4525 = vsyncpa [#allocation8], 1
    %4526 = vsyncpa [#allocation6], 1

</llo_original>
